<compile_context>
chip_gen: v6e
topology: v6e:2x2x1
jax: 0.10.0
libtpu: 0.0.40
codegen_flags: <defaults>
</compile_context>

<pallas_src>
import numpy as np
import jax
import jax.numpy as jnp
from jax import lax
from jax.experimental import pallas as pl
from jax.experimental.pallas import tpu as pltpu

SQRT_2_INV = 0.7071067811865476
_ERF_P = 0.3275911
_ERF_A = (0.254829592, -0.284496736, 1.421413741, -1.453152027, 1.061405429)


def _erf_approx(x):
    # Abramowitz & Stegun 7.1.26 (|err| < 1.5e-7). Reciprocal on the EUP + one Newton step.
    ax = jnp.abs(x)
    d = 1.0 + _ERF_P * ax
    t = pl.reciprocal(d, approx=True)
    t = t * (2.0 - d * t)                       # Newton refinement (2 VALU ops)
    a1, a2, a3, a4, a5 = _ERF_A
    poly = ((((a5 * t + a4) * t + a3) * t + a2) * t + a1) * t
    y = 1.0 - poly * jnp.exp(-ax * ax)
    return jnp.where(x >= 0.0, y, -y)


def _gelu_exact(x):
    return 0.5 * x * (1.0 + _erf_approx(x * SQRT_2_INV))


def _linear_tanh_kernel(x_ref, wl_ref, bl_ref, h_ref):
    # Linear(524->F) + Tanh for a whole batch block: one MXU matmul, M = Bt rows.
    h_ref[...] = jnp.tanh(
        jnp.dot(x_ref[...], wl_ref[...],
                precision=jax.lax.Precision.HIGHEST,
                preferred_element_type=jnp.float32)
        + bl_ref[...])


def _make_conv_kernel(Bt, F, C, K):
    pad = K // 2
    N = Bt * F
    offs = [dk - pad for dk in range(K)]        # e.g. K=3 -> [-1, 0, +1]

    def kernel(h_ref, mask_ref, w1_ref, c1_ref, w2_ref, c2_ref, o_ref):
        hrow = h_ref[...]                                       # (1, N) tanh(Linear), lane-dense
        masks = [mask_ref[dk:dk + 1, :] for dk in range(K)]     # (1, N) 0/1 'same'-padding masks

        def taps(v):
            # v[:, n + off] with zero 'same' padding inside each length-F segment.
            # pltpu.roll == jnp.roll: r[:, n] = v[:, (n - shift) mod N]  ->  shift = -off.
            outs = []
            for dk, off in enumerate(offs):
                if off == 0:
                    outs.append(v)
                else:
                    r = pltpu.roll(v, shift=(-off) % N, axis=1)  # XLU slot
                    outs.append(r * masks[dk])
            return outs

        # --- Conv1 (in_ch=1, K taps) + folded BN1: 3 broadcast-FMAs on the VPU. ---
        hs = taps(hrow)                                          # K x (1, N)
        z1 = w1_ref[:, 0:1] * hs[0]
        for dk in range(1, K):
            z1 = z1 + w1_ref[:, dk:dk + 1] * hs[dk]              # (C,1)*(1,N) -> (C,N)
        g1 = _gelu_exact(z1 + c1_ref[...])                       # (C, N)

        # --- Conv2 (C*K contraction) + folded BN2: ONE MXU matmul for the whole block. ---
        gstack = jnp.concatenate(taps(g1), axis=0)               # (K*C, N), row dk*C + c
        z2 = jnp.dot(w2_ref[...], gstack,
                     precision=jax.lax.Precision.HIGHEST,
                     preferred_element_type=jnp.float32) + c2_ref[...]
        o_ref[...] = _gelu_exact(z2)                             # (C, N), lane-dense store
        # Dropout(0.1): identity in eval mode.
        # TODO(synk): training-mode BatchNorm1d batch statistics and stochastic Dropout(0.1)
        #             are not implemented (eval-mode running stats / identity only).

    return kernel


def _pick_batch_block(B):
    """Returns (B_pad, Bt).  Bt up to 128; >=2 grid steps when B > 8 (v7x megacore)."""
    if B <= 8:
        return 8, 8
    if B <= 256:
        Bt = ((B + 1) // 2 + 7) // 8 * 8
        return 2 * Bt, Bt
    Bt = 128
    return (B + Bt - 1) // Bt * Bt, Bt


def bruce_processing_pallas(x, params, eps: float = 1e-5):
    """Eval-mode forward: x (B, 524) -> (B, out_channel, num_feature)."""
    B, Fin = x.shape
    F, Fin_w = params["wl"].shape
    C, cin, K = params["w1"].shape
    assert Fin_w == Fin and cin == 1 and K % 2 == 1 and F % 128 == 0
    x = x.astype(jnp.float32)

    # ---- Fold eval-mode BatchNorm into the conv weights / a single per-channel bias. ----
    s1 = params["g1"] / jnp.sqrt(params["rv1"] + eps)
    c1 = (params["b1"] - params["rm1"]) * s1 + params["beta1"]
    w1mat = (params["w1"][:, 0, :] * s1[:, None]).astype(jnp.float32)          # (C, K)
    s2 = params["g2"] / jnp.sqrt(params["rv2"] + eps)
    c2 = (params["b2"] - params["rm2"]) * s2 + params["beta2"]
    # w2p[o, dk*C + c] = w2[o, c, dk] * s2[o]  — matches the shifted-stack row order.
    w2p = jnp.transpose(params["w2"] * s2[:, None, None], (0, 2, 1)).reshape(C, K * C)
    w2p = w2p.astype(jnp.float32)
    c1_col = c1.reshape(C, 1).astype(jnp.float32)
    c2_col = c2.reshape(C, 1).astype(jnp.float32)

    # ---- Lane-align the Linear contraction: pad Fin 524 -> 640. ----
    Fin_pad = (Fin + 127) // 128 * 128
    wl_t = params["wl"].T.astype(jnp.float32)                                  # (Fin, F)
    if Fin_pad != Fin:
        wl_t = jnp.pad(wl_t, ((0, Fin_pad - Fin), (0, 0)))
        x = jnp.pad(x, ((0, 0), (0, Fin_pad - Fin)))
    bl_row = params["bl"].reshape(1, F).astype(jnp.float32)

    # ---- Batch packing. ----
    B_pad, Bt = _pick_batch_block(B)
    if B_pad != B:
        x = jnp.pad(x, ((0, B_pad - B), (0, 0)))
    n_steps = B_pad // Bt
    N_blk = Bt * F

    # ---- Kernel 1: Linear + Tanh  (x (B_pad, Fin_pad) -> h (B_pad, F)). ----
    h = pl.pallas_call(
        _linear_tanh_kernel,
        out_shape=jax.ShapeDtypeStruct((B_pad, F), jnp.float32),
        grid=(n_steps,),
        in_specs=[
            pl.BlockSpec((Bt, Fin_pad), lambda b: (b, 0)),
            pl.BlockSpec((Fin_pad, F), lambda b: (0, 0)),     # Linear weight, VMEM-resident
            pl.BlockSpec((1, F), lambda b: (0, 0)),           # Linear bias row
        ],
        out_specs=pl.BlockSpec((Bt, F), lambda b: (b, 0)),
        compiler_params=pltpu.CompilerParams(dimension_semantics=("parallel",)),
    )(x, wl_t, bl_row)

    # Free row-major reshape: batch moves onto the lane axis without an in-kernel relayout.
    h_flat = h.reshape(1, B_pad * F)

    # Hoisted 'same'-padding masks (0/1), one row per conv tap, shared by both conv stages.
    pad_k = K // 2
    fpos = jnp.tile(jnp.arange(F, dtype=jnp.int32), Bt)
    mask_rows = []
    for dk in range(K):
        off = dk - pad_k
        if off == 0:
            mask_rows.append(jnp.ones((N_blk,), jnp.float32))
        elif off > 0:
            mask_rows.append((fpos < F - off).astype(jnp.float32))
        else:
            mask_rows.append((fpos >= -off).astype(jnp.float32))
    masks = jnp.stack(mask_rows, axis=0)                                       # (K, Bt*F)

    # ---- Kernel 2: Conv1 -> BN -> GELU -> Conv2 -> BN -> GELU on (C, Bt*F) blocks. ----
    conv_kernel = _make_conv_kernel(Bt, F, C, K)
    out_flat = pl.pallas_call(
        conv_kernel,
        out_shape=jax.ShapeDtypeStruct((C, B_pad * F), jnp.float32),
        grid=(n_steps,),
        in_specs=[
            pl.BlockSpec((1, N_blk), lambda b: (0, b)),        # tanh(Linear) rows, flattened
            pl.BlockSpec((K, N_blk), lambda b: (0, 0)),        # padding masks (resident)
            pl.BlockSpec((C, K), lambda b: (0, 0)),            # conv1 taps (BN1-folded)
            pl.BlockSpec((C, 1), lambda b: (0, 0)),            # stage-1 bias column
            pl.BlockSpec((C, K * C), lambda b: (0, 0)),        # conv2 weight (BN2-folded)
            pl.BlockSpec((C, 1), lambda b: (0, 0)),            # stage-2 bias column
        ],
        out_specs=pl.BlockSpec((C, N_blk), lambda b: (0, b)),  # lane-dense output slab
        compiler_params=pltpu.CompilerParams(
            dimension_semantics=("parallel",),
            vmem_limit_bytes=32 * 1024 * 1024),
    )(h_flat, masks, w1mat, c1_col, w2p, c2_col)

    # (C, B_pad*F) -> (B, C, F); the transpose is a cheap contiguous copy done by XLA.
    out = jnp.transpose(out_flat.reshape(C, B_pad, F), (1, 0, 2))
    return out[:B]


def bruce_processing_reference(x, params, eps: float = 1e-5):
    """Plain-JAX reference mirroring the PyTorch module in eval mode."""
    hp = jax.lax.Precision.HIGHEST

    def conv1d_same(v, w, b):
        y = lax.conv_general_dilated(v, w, window_strides=(1,), padding="SAME",
                                     dimension_numbers=("NCH", "OIH", "NCH"),
                                     precision=hp)
        return y + b[None, :, None]

    def bn(v, g, bt, rm, rv):
        return ((v - rm[None, :, None]) / jnp.sqrt(rv[None, :, None] + eps)
                * g[None, :, None] + bt[None, :, None])

    h = jnp.tanh(jnp.dot(x.astype(jnp.float32), params["wl"].T, precision=hp)
                 + params["bl"])
    y = h[:, None, :]                                             # (B, 1, F)
    y = conv1d_same(y, params["w1"], params["b1"])
    y = bn(y, params["g1"], params["beta1"], params["rm1"], params["rv1"])
    y = jax.nn.gelu(y, approximate=False)
    y = conv1d_same(y, params["w2"], params["b2"])
    y = bn(y, params["g2"], params["beta2"], params["rm2"], params["rv2"])
    y = jax.nn.gelu(y, approximate=False)
    return y                                                      # Dropout = identity (eval)


if __name__ == "__main__":
    # Small shapes consistent with the module: Linear in-features fixed at 524,
    # num_feature=256, out_channel=8, kernel_size=3, batch=4.
    B, Fin, F, C, K = 4, 524, 256, 8, 3

    key = jax.random.PRNGKey(0)
    ks = jax.random.split(key, 16)
    params = {
        "wl": 0.05 * jax.random.normal(ks[0], (F, Fin), jnp.float32),
        "bl": 0.1 * jax.random.normal(ks[1], (F,), jnp.float32),
        "w1": 0.3 * jax.random.normal(ks[2], (C, 1, K), jnp.float32),
        "b1": 0.1 * jax.random.normal(ks[3], (C,), jnp.float32),
        "g1": 1.0 + 0.1 * jax.random.normal(ks[4], (C,), jnp.float32),
        "beta1": 0.1 * jax.random.normal(ks[5], (C,), jnp.float32),
        "rm1": 0.05 * jax.random.normal(ks[6], (C,), jnp.float32),
        "rv1": jax.random.uniform(ks[7], (C,), jnp.float32, 0.5, 1.5),
        "w2": 0.3 * jax.random.normal(ks[8], (C, C, K), jnp.float32),
        "b2": 0.1 * jax.random.normal(ks[9], (C,), jnp.float32),
        "g2": 1.0 + 0.1 * jax.random.normal(ks[10], (C,), jnp.float32),
        "beta2": 0.1 * jax.random.normal(ks[11], (C,), jnp.float32),
        "rm2": 0.05 * jax.random.normal(ks[12], (C,), jnp.float32),
        "rv2": jax.random.uniform(ks[13], (C,), jnp.float32, 0.5, 1.5),
    }
    x = jax.random.normal(ks[14], (B, Fin), jnp.float32)

    out = jax.block_until_ready(bruce_processing_pallas(x, params))
    ref = jax.block_until_ready(bruce_processing_reference(x, params))

    assert out.shape == (B, C, F), out.shape
    # Tolerance covers MXU bf16-pass rounding of the 524-long contraction + erf polynomial;
    # any structural bug (tap order, BN folding, roll direction) produces O(0.1) errors.
    np.testing.assert_allclose(np.asarray(out), np.asarray(ref), atol=5e-3, rtol=5e-3)
    print("KERNEL_OK")
</pallas_src>

<mosaic_0001>
module attributes {stable_mosaic.version = 11 : i64} {
  func.func @_linear_tanh_kernel(%arg0: i32, %arg1: memref<8x640xf32, #tpu.memory_space<vmem>>, %arg2: memref<640x256xf32, #tpu.memory_space<vmem>>, %arg3: memref<1x256xf32, #tpu.memory_space<vmem>>, %arg4: memref<8x256xf32, #tpu.memory_space<vmem>>) attributes {dimension_semantics = [#tpu.dimension_semantics<parallel>], iteration_bounds = array<i64: 1>, scalar_prefetch = 0 : i64, scratch_operands = 0 : i64, tpu.core_type = #tpu.core_type<tc>, window_params = [{transform_indices = @transform_0, window_bounds = array<i64: 8, 640>}, {pipeline_mode = #tpu.pipeline_mode<synchronous>, transform_indices = @transform_1, window_bounds = array<i64: 640, 256>}, {pipeline_mode = #tpu.pipeline_mode<synchronous>, transform_indices = @transform_2, window_bounds = array<i64: 1, 256>}, {transform_indices = @transform_3, window_bounds = array<i64: 8, 256>}]} {
    %c0 = arith.constant 0 : index
    %c0_0 = arith.constant 0 : index
    %0 = vector.load %arg1[%c0, %c0_0] : memref<8x640xf32, #tpu.memory_space<vmem>>, vector<8x640xf32>
    %c0_1 = arith.constant 0 : index
    %c0_2 = arith.constant 0 : index
    %1 = vector.load %arg2[%c0_1, %c0_2] : memref<640x256xf32, #tpu.memory_space<vmem>>, vector<640x256xf32>
    %cst = arith.constant dense<0.000000e+00> : vector<8x256xf32>
    %2 = tpu.matmul %0, %1, %cst {dimension_numbers = #tpu.dot_dimension_numbers<[1], [0], [0], [1], [0, 0, 1, 1], [], []>, precision = #tpu.contract_precision<fp32>} : vector<8x640xf32>, vector<640x256xf32>, vector<8x256xf32> -> vector<8x256xf32>
    %c0_3 = arith.constant 0 : index
    %c0_4 = arith.constant 0 : index
    %3 = vector.load %arg3[%c0_3, %c0_4] : memref<1x256xf32, #tpu.memory_space<vmem>>, vector<1x256xf32>
    %4 = vector.broadcast %3 : vector<1x256xf32> to vector<8x256xf32>
    %5 = arith.addf %2, %4 : vector<8x256xf32>
    %6 = math.tanh %5 : vector<8x256xf32>
    %c0_5 = arith.constant 0 : index
    %c0_6 = arith.constant 0 : index
    %7 = vector.load %arg4[%c0_5, %c0_6] : memref<8x256xf32, #tpu.memory_space<vmem>>, vector<8x256xf32>
    tpu.vector_store %arg4[%c0_5, %c0_6], %6 {strides = array<i32>} : memref<8x256xf32, #tpu.memory_space<vmem>>, vector<8x256xf32>,
    return
  }
  func.func @transform_0(%arg0: i32) -> (i32, i32) {
    %c0_i32 = arith.constant 0 : i32
    %c0_i32_0 = arith.constant 0 : i32
    return %arg0, %c0_i32 : i32, i32
  }
  func.func @transform_1(%arg0: i32) -> (i32, i32) {
    %c0_i32 = arith.constant 0 : i32
    %c0_i32_0 = arith.constant 0 : i32
    %c0_i32_1 = arith.constant 0 : i32
    return %c0_i32, %c0_i32_0 : i32, i32
  }
  func.func @transform_2(%arg0: i32) -> (i32, i32) {
    %c0_i32 = arith.constant 0 : i32
    %c0_i32_0 = arith.constant 0 : i32
    %c0_i32_1 = arith.constant 0 : i32
    return %c0_i32, %c0_i32_0 : i32, i32
  }
  func.func @transform_3(%arg0: i32) -> (i32, i32) {
    %c0_i32 = arith.constant 0 : i32
    %c0_i32_0 = arith.constant 0 : i32
    return %arg0, %c0_i32 : i32, i32
  }
}

</mosaic_0001>

<llo_original>
// kernel: tpu_custom_call.1
$region0: #{tpu_custom_call.1}
  #allocation0 [shape = 'u32[]', space=smem, size = 0x4, offset = 0x4, fixed_abs, tag = 'smem constant byte address 0x4 - core index']
  #allocation1 [shape = 'u32[144,128]{1,0:T(1,128)}', space=vmem, size = 0x12000, scoped, tag = 'internal scratch']
  %s0 = inlined_call_operand.hbm [shape: f32[8,640], index: 0, kind: input, shape index: {}]
  %s1 = inlined_call_operand.hbm [shape: f32[640,256], index: 1, kind: input, shape index: {}]
  %s2 = inlined_call_operand.vmem [shape: f32[1,256], index: 2, kind: input, shape index: {}]
  %s3 = inlined_call_operand.hbm [shape: f32[8,256], index: 3, kind: output, shape index: {}]
  %s4 = sld [smem:[#allocation0]]
  $region30: #{tpu_custom_call.1} parent=0
    _
  %s6 = ssub.s32 1, %s4
  %s7 = scalar_select 0, %s6, %s4
  $region1: #{tpu_custom_call.1} parent=0
    #allocation2 [shape = 'u8[20480]{0}', space=vmem, size = 0x5000, scoped, tag = 'input window, operand 0, single buffered']
    #allocation3 [shape = 's32[1]{0}', space=sflag, size = 0x4, scoped, tag = 'scoped memory for tpu_custom_call.1']
    #allocation4 [shape = 's32[1]{0}', space=sflag, size = 0x4, scoped, tag = 'scoped memory for tpu_custom_call.1']
    #allocation5 [shape = 'u8[655360]{0}', space=vmem, size = 0xa0000, scoped, tag = 'input window, operand 1, single buffered']
    #allocation6 [shape = 's32[1]{0}', space=sflag, size = 0x4, scoped, tag = 'scoped memory for tpu_custom_call.1']
    #allocation7 [shape = 'u8[8192]{0}', space=vmem, size = 0x2000, scoped, tag = 'output window, operand 0, single buffered']
    %8 = vsyncpa [#allocation3], 0
    %9 = vsyncpa [#allocation6], 0
    %10 = vsyncpa [#allocation4], 0
    // Predicated region
    $region2: #{tpu_custom_call.1} parent=1 // pred_check
      _
    $region3: #{tpu_custom_call.1} parent=1 // pred_check_branch
      %12 = sbr.rel (0) target = $region5
    $region4: #{tpu_custom_call.1} parent=1 // pred_region
      %s14 = ssub.s32 640, 640
      %15 = vsyncadd [#allocation3], %s14
      %s17 = sshll.u32 [#allocation2], 4
      %s18 = int_to_ptr.vmem [resolvable:$true] %s17
      %20 = dma.hbm_to_vmem [thread:$0]  %s0, 640, %s18, [#allocation3]
    $region5: #{tpu_custom_call.1} parent=1 // pred_fallthru
      _
    // Predicated region
    $region6: #{tpu_custom_call.1} parent=1 // pred_check
      _
    $region7: #{tpu_custom_call.1} parent=1 // pred_check_branch
      %22 = sbr.rel (0) target = $region9
    $region8: #{tpu_custom_call.1} parent=1 // pred_region
      %s24 = ssub.s32 20480, 20480
      %25 = vsyncadd [#allocation6], %s24
      %s26 = sshll.u32 [#allocation5], 4
      %s27 = int_to_ptr.vmem [resolvable:$true] %s26
      %32 = dma.hbm_to_vmem [thread:$0]  %s1, 20480, %s27, [#allocation6], 256, 256, 16
    $region9: #{tpu_custom_call.1} parent=1 // pred_fallthru
      _
    // Predicated region
    $region10: #{tpu_custom_call.1} parent=1 // pred_check
      _
    $region11: #{tpu_custom_call.1} parent=1 // pred_check_branch
      %34 = sbr.rel (0) target = $region13
    $region12: #{tpu_custom_call.1} parent=1 // pred_region
      _
    $region13: #{tpu_custom_call.1} parent=1 // pred_fallthru
      _
    // Predicated region
    $region14: #{tpu_custom_call.1} parent=1 // pred_check
      _
    $region15: #{tpu_custom_call.1} parent=1 // pred_check_branch
      %36 = sbr.rel (0) target = $region17
    $region16: #{tpu_custom_call.1} parent=1 // pred_region
      %37 = dma.done [#allocation3], 640
    $region17: #{tpu_custom_call.1} parent=1 // pred_fallthru
      _
    // Predicated region
    $region18: #{tpu_custom_call.1} parent=1 // pred_check
      _
    $region19: #{tpu_custom_call.1} parent=1 // pred_check_branch
      %39 = sbr.rel (0) target = $region21
    $region20: #{tpu_custom_call.1} parent=1 // pred_region
      %40 = dma.done [#allocation6], 20480
    $region21: #{tpu_custom_call.1} parent=1 // pred_fallthru
      _
    %v41 = vld [vmem:[#allocation2] sm:$0xff]
    %v42 = vld [vmem:[#allocation2 + $0x8] sm:$0xff]
    %v43 = vld [vmem:[#allocation2 + $0x10] sm:$0xff]
    %v44 = vld [vmem:[#allocation2 + $0x18] sm:$0xff]
    %v45 = vld [vmem:[#allocation2 + $0x20] sm:$0xff]
    %v46 = vld [vmem:[#allocation5] sm:$0xff]
    %v47 = vld [vmem:[#allocation5 + $0x8] sm:$0xff]
    %v48 = vld [vmem:[#allocation5 + $0x10] sm:$0xff]
    %v49 = vld [vmem:[#allocation5 + $0x18] sm:$0xff]
    %v50 = vld [vmem:[#allocation5 + $0x20] sm:$0xff]
    %v51 = vld [vmem:[#allocation5 + $0x28] sm:$0xff]
    %v52 = vld [vmem:[#allocation5 + $0x30] sm:$0xff]
    %v53 = vld [vmem:[#allocation5 + $0x38] sm:$0xff]
    %v54 = vld [vmem:[#allocation5 + $0x40] sm:$0xff]
    %v55 = vld [vmem:[#allocation5 + $0x48] sm:$0xff]
    %v56 = vld [vmem:[#allocation5 + $0x50] sm:$0xff]
    %v57 = vld [vmem:[#allocation5 + $0x58] sm:$0xff]
    %v58 = vld [vmem:[#allocation5 + $0x60] sm:$0xff]
    %v59 = vld [vmem:[#allocation5 + $0x68] sm:$0xff]
    %v60 = vld [vmem:[#allocation5 + $0x70] sm:$0xff]
    %v61 = vld [vmem:[#allocation5 + $0x78] sm:$0xff]
    %v62 = vld [vmem:[#allocation5 + $0x80] sm:$0xff]
    %v63 = vld [vmem:[#allocation5 + $0x88] sm:$0xff]
    %v64 = vld [vmem:[#allocation5 + $0x90] sm:$0xff]
    %v65 = vld [vmem:[#allocation5 + $0x98] sm:$0xff]
    %v66 = vld [vmem:[#allocation5 + $0xa0] sm:$0xff]
    %v67 = vld [vmem:[#allocation5 + $0xa8] sm:$0xff]
    %v68 = vld [vmem:[#allocation5 + $0xb0] sm:$0xff]
    %v69 = vld [vmem:[#allocation5 + $0xb8] sm:$0xff]
    %v70 = vld [vmem:[#allocation5 + $0xc0] sm:$0xff]
    %v71 = vld [vmem:[#allocation5 + $0xc8] sm:$0xff]
    %v72 = vld [vmem:[#allocation5 + $0xd0] sm:$0xff]
    %v73 = vld [vmem:[#allocation5 + $0xd8] sm:$0xff]
    %v74 = vld [vmem:[#allocation5 + $0xe0] sm:$0xff]
    %v75 = vld [vmem:[#allocation5 + $0xe8] sm:$0xff]
    %v76 = vld [vmem:[#allocation5 + $0xf0] sm:$0xff]
    %v77 = vld [vmem:[#allocation5 + $0xf8] sm:$0xff]
    %v78 = vld [vmem:[#allocation5 + $0x100] sm:$0xff]
    %v79 = vld [vmem:[#allocation5 + $0x108] sm:$0xff]
    %v80 = vld [vmem:[#allocation5 + $0x110] sm:$0xff]
    %v81 = vld [vmem:[#allocation5 + $0x118] sm:$0xff]
    %v82 = vld [vmem:[#allocation5 + $0x120] sm:$0xff]
    %v83 = vld [vmem:[#allocation5 + $0x128] sm:$0xff]
    %v84 = vld [vmem:[#allocation5 + $0x130] sm:$0xff]
    %v85 = vld [vmem:[#allocation5 + $0x138] sm:$0xff]
    %v86 = vld [vmem:[#allocation5 + $0x140] sm:$0xff]
    %v87 = vld [vmem:[#allocation5 + $0x148] sm:$0xff]
    %v88 = vld [vmem:[#allocation5 + $0x150] sm:$0xff]
    %v89 = vld [vmem:[#allocation5 + $0x158] sm:$0xff]
    %v90 = vld [vmem:[#allocation5 + $0x160] sm:$0xff]
    %v91 = vld [vmem:[#allocation5 + $0x168] sm:$0xff]
    %v92 = vld [vmem:[#allocation5 + $0x170] sm:$0xff]
    %v93 = vld [vmem:[#allocation5 + $0x178] sm:$0xff]
    %v94 = vld [vmem:[#allocation5 + $0x180] sm:$0xff]
    %v95 = vld [vmem:[#allocation5 + $0x188] sm:$0xff]
    %v96 = vld [vmem:[#allocation5 + $0x190] sm:$0xff]
    %v97 = vld [vmem:[#allocation5 + $0x198] sm:$0xff]
    %v98 = vld [vmem:[#allocation5 + $0x1a0] sm:$0xff]
    %v99 = vld [vmem:[#allocation5 + $0x1a8] sm:$0xff]
    %v100 = vld [vmem:[#allocation5 + $0x1b0] sm:$0xff]
    %v101 = vld [vmem:[#allocation5 + $0x1b8] sm:$0xff]
    %v102 = vld [vmem:[#allocation5 + $0x1c0] sm:$0xff]
    %v103 = vld [vmem:[#allocation5 + $0x1c8] sm:$0xff]
    %v104 = vld [vmem:[#allocation5 + $0x1d0] sm:$0xff]
    %v105 = vld [vmem:[#allocation5 + $0x1d8] sm:$0xff]
    %v106 = vld [vmem:[#allocation5 + $0x1e0] sm:$0xff]
    %v107 = vld [vmem:[#allocation5 + $0x1e8] sm:$0xff]
    %v108 = vld [vmem:[#allocation5 + $0x1f0] sm:$0xff]
    %v109 = vld [vmem:[#allocation5 + $0x1f8] sm:$0xff]
    %v110 = vld [vmem:[#allocation5 + $0x200] sm:$0xff]
    %v111 = vld [vmem:[#allocation5 + $0x208] sm:$0xff]
    %v112 = vld [vmem:[#allocation5 + $0x210] sm:$0xff]
    %v113 = vld [vmem:[#allocation5 + $0x218] sm:$0xff]
    %v114 = vld [vmem:[#allocation5 + $0x220] sm:$0xff]
    %v115 = vld [vmem:[#allocation5 + $0x228] sm:$0xff]
    %v116 = vld [vmem:[#allocation5 + $0x230] sm:$0xff]
    %v117 = vld [vmem:[#allocation5 + $0x238] sm:$0xff]
    %v118 = vld [vmem:[#allocation5 + $0x240] sm:$0xff]
    %v119 = vld [vmem:[#allocation5 + $0x248] sm:$0xff]
    %v120 = vld [vmem:[#allocation5 + $0x250] sm:$0xff]
    %v121 = vld [vmem:[#allocation5 + $0x258] sm:$0xff]
    %v122 = vld [vmem:[#allocation5 + $0x260] sm:$0xff]
    %v123 = vld [vmem:[#allocation5 + $0x268] sm:$0xff]
    %v124 = vld [vmem:[#allocation5 + $0x270] sm:$0xff]
    %v125 = vld [vmem:[#allocation5 + $0x278] sm:$0xff]
    %v126 = vld [vmem:[#allocation5 + $0x280] sm:$0xff]
    %v127 = vld [vmem:[#allocation5 + $0x288] sm:$0xff]
    %v128 = vld [vmem:[#allocation5 + $0x290] sm:$0xff]
    %v129 = vld [vmem:[#allocation5 + $0x298] sm:$0xff]
    %v130 = vld [vmem:[#allocation5 + $0x2a0] sm:$0xff]
    %v131 = vld [vmem:[#allocation5 + $0x2a8] sm:$0xff]
    %v132 = vld [vmem:[#allocation5 + $0x2b0] sm:$0xff]
    %v133 = vld [vmem:[#allocation5 + $0x2b8] sm:$0xff]
    %v134 = vld [vmem:[#allocation5 + $0x2c0] sm:$0xff]
    %v135 = vld [vmem:[#allocation5 + $0x2c8] sm:$0xff]
    %v136 = vld [vmem:[#allocation5 + $0x2d0] sm:$0xff]
    %v137 = vld [vmem:[#allocation5 + $0x2d8] sm:$0xff]
    %v138 = vld [vmem:[#allocation5 + $0x2e0] sm:$0xff]
    %v139 = vld [vmem:[#allocation5 + $0x2e8] sm:$0xff]
    %v140 = vld [vmem:[#allocation5 + $0x2f0] sm:$0xff]
    %v141 = vld [vmem:[#allocation5 + $0x2f8] sm:$0xff]
    %v142 = vld [vmem:[#allocation5 + $0x300] sm:$0xff]
    %v143 = vld [vmem:[#allocation5 + $0x308] sm:$0xff]
    %v144 = vld [vmem:[#allocation5 + $0x310] sm:$0xff]
    %v145 = vld [vmem:[#allocation5 + $0x318] sm:$0xff]
    %v146 = vld [vmem:[#allocation5 + $0x320] sm:$0xff]
    %v147 = vld [vmem:[#allocation5 + $0x328] sm:$0xff]
    %v148 = vld [vmem:[#allocation5 + $0x330] sm:$0xff]
    %v149 = vld [vmem:[#allocation5 + $0x338] sm:$0xff]
    %v150 = vld [vmem:[#allocation5 + $0x340] sm:$0xff]
    %v151 = vld [vmem:[#allocation5 + $0x348] sm:$0xff]
    %v152 = vld [vmem:[#allocation5 + $0x350] sm:$0xff]
    %v153 = vld [vmem:[#allocation5 + $0x358] sm:$0xff]
    %v154 = vld [vmem:[#allocation5 + $0x360] sm:$0xff]
    %v155 = vld [vmem:[#allocation5 + $0x368] sm:$0xff]
    %v156 = vld [vmem:[#allocation5 + $0x370] sm:$0xff]
    %v157 = vld [vmem:[#allocation5 + $0x378] sm:$0xff]
    %v158 = vld [vmem:[#allocation5 + $0x380] sm:$0xff]
    %v159 = vld [vmem:[#allocation5 + $0x388] sm:$0xff]
    %v160 = vld [vmem:[#allocation5 + $0x390] sm:$0xff]
    %v161 = vld [vmem:[#allocation5 + $0x398] sm:$0xff]
    %v162 = vld [vmem:[#allocation5 + $0x3a0] sm:$0xff]
    %v163 = vld [vmem:[#allocation5 + $0x3a8] sm:$0xff]
    %v164 = vld [vmem:[#allocation5 + $0x3b0] sm:$0xff]
    %v165 = vld [vmem:[#allocation5 + $0x3b8] sm:$0xff]
    %v166 = vld [vmem:[#allocation5 + $0x3c0] sm:$0xff]
    %v167 = vld [vmem:[#allocation5 + $0x3c8] sm:$0xff]
    %v168 = vld [vmem:[#allocation5 + $0x3d0] sm:$0xff]
    %v169 = vld [vmem:[#allocation5 + $0x3d8] sm:$0xff]
    %v170 = vld [vmem:[#allocation5 + $0x3e0] sm:$0xff]
    %v171 = vld [vmem:[#allocation5 + $0x3e8] sm:$0xff]
    %v172 = vld [vmem:[#allocation5 + $0x3f0] sm:$0xff]
    %v173 = vld [vmem:[#allocation5 + $0x3f8] sm:$0xff]
    %v174 = vld [vmem:[#allocation5 + $0x400] sm:$0xff]
    %v175 = vld [vmem:[#allocation5 + $0x408] sm:$0xff]
    %v176 = vld [vmem:[#allocation5 + $0x410] sm:$0xff]
    %v177 = vld [vmem:[#allocation5 + $0x418] sm:$0xff]
    %v178 = vld [vmem:[#allocation5 + $0x420] sm:$0xff]
    %v179 = vld [vmem:[#allocation5 + $0x428] sm:$0xff]
    %v180 = vld [vmem:[#allocation5 + $0x430] sm:$0xff]
    %v181 = vld [vmem:[#allocation5 + $0x438] sm:$0xff]
    %v182 = vld [vmem:[#allocation5 + $0x440] sm:$0xff]
    %v183 = vld [vmem:[#allocation5 + $0x448] sm:$0xff]
    %v184 = vld [vmem:[#allocation5 + $0x450] sm:$0xff]
    %v185 = vld [vmem:[#allocation5 + $0x458] sm:$0xff]
    %v186 = vld [vmem:[#allocation5 + $0x460] sm:$0xff]
    %v187 = vld [vmem:[#allocation5 + $0x468] sm:$0xff]
    %v188 = vld [vmem:[#allocation5 + $0x470] sm:$0xff]
    %v189 = vld [vmem:[#allocation5 + $0x478] sm:$0xff]
    %v190 = vld [vmem:[#allocation5 + $0x480] sm:$0xff]
    %v191 = vld [vmem:[#allocation5 + $0x488] sm:$0xff]
    %v192 = vld [vmem:[#allocation5 + $0x490] sm:$0xff]
    %v193 = vld [vmem:[#allocation5 + $0x498] sm:$0xff]
    %v194 = vld [vmem:[#allocation5 + $0x4a0] sm:$0xff]
    %v195 = vld [vmem:[#allocation5 + $0x4a8] sm:$0xff]
    %v196 = vld [vmem:[#allocation5 + $0x4b0] sm:$0xff]
    %v197 = vld [vmem:[#allocation5 + $0x4b8] sm:$0xff]
    %v198 = vld [vmem:[#allocation5 + $0x4c0] sm:$0xff]
    %v199 = vld [vmem:[#allocation5 + $0x4c8] sm:$0xff]
    %v200 = vld [vmem:[#allocation5 + $0x4d0] sm:$0xff]
    %v201 = vld [vmem:[#allocation5 + $0x4d8] sm:$0xff]
    %v202 = vld [vmem:[#allocation5 + $0x4e0] sm:$0xff]
    %v203 = vld [vmem:[#allocation5 + $0x4e8] sm:$0xff]
    %v204 = vld [vmem:[#allocation5 + $0x4f0] sm:$0xff]
    %v205 = vld [vmem:[#allocation5 + $0x4f8] sm:$0xff]
    %v206 = vld [vmem:[%s2] sm:$0x3]
    %v208 = vlaneseq
    %v209 = vshrl.u32 %v208, 7
    %v210 = vsub.s32 0, %v209
    %v211 = vrot.slane %v206, %v210
    %v212 = vlaneseq
    %v213 = vshrl.u32 %v212, 7
    %v214 = vsub.s32 1, %v213
    %v215 = vrot.slane %v206, %v214
    %v218 = vand.u32 %v77, 4294901760
    %219 = vmatprep.subr.mxu0 %v218
    %v220 = vand.u32 %v76, 4294901760
    %221 = vmatpush1.msra.mxu0 %v220
    %v222 = vand.u32 %v75, 4294901760
    %223 = vmatprep.subr.mxu0 %v222
    %v224 = vand.u32 %v74, 4294901760
    %225 = vmatpush1.msra.mxu0 %v224
    %v226 = vand.u32 %v73, 4294901760
    %227 = vmatprep.subr.mxu0 %v226
    %v228 = vand.u32 %v72, 4294901760
    %229 = vmatpush1.msra.mxu0 %v228
    %v230 = vand.u32 %v71, 4294901760
    %231 = vmatprep.subr.mxu0 %v230
    %v232 = vand.u32 %v70, 4294901760
    %233 = vmatpush1.msra.mxu0 %v232
    %v234 = vand.u32 %v69, 4294901760
    %235 = vmatprep.subr.mxu0 %v234
    %v236 = vand.u32 %v68, 4294901760
    %237 = vmatpush1.msra.mxu0 %v236
    %v238 = vand.u32 %v67, 4294901760
    %239 = vmatprep.subr.mxu0 %v238
    %v240 = vand.u32 %v66, 4294901760
    %241 = vmatpush1.msra.mxu0 %v240
    %v242 = vand.u32 %v65, 4294901760
    %243 = vmatprep.subr.mxu0 %v242
    %v244 = vand.u32 %v64, 4294901760
    %245 = vmatpush1.msra.mxu0 %v244
    %v246 = vand.u32 %v63, 4294901760
    %247 = vmatprep.subr.mxu0 %v246
    %v248 = vand.u32 %v62, 4294901760
    %249 = vmatpush1.msra.mxu0 %v248
    %v250 = vand.u32 %v61, 4294901760
    %251 = vmatprep.subr.mxu0 %v250
    %v252 = vand.u32 %v60, 4294901760
    %253 = vmatpush1.msra.mxu0 %v252
    %v254 = vand.u32 %v59, 4294901760
    %255 = vmatprep.subr.mxu0 %v254
    %v256 = vand.u32 %v58, 4294901760
    %257 = vmatpush1.msra.mxu0 %v256
    %v258 = vand.u32 %v57, 4294901760
    %259 = vmatprep.subr.mxu0 %v258
    %v260 = vand.u32 %v56, 4294901760
    %261 = vmatpush1.msra.mxu0 %v260
    %v262 = vand.u32 %v55, 4294901760
    %263 = vmatprep.subr.mxu0 %v262
    %v264 = vand.u32 %v54, 4294901760
    %265 = vmatpush1.msra.mxu0 %v264
    %v266 = vand.u32 %v53, 4294901760
    %267 = vmatprep.subr.mxu0 %v266
    %v268 = vand.u32 %v52, 4294901760
    %269 = vmatpush1.msra.mxu0 %v268
    %v270 = vand.u32 %v51, 4294901760
    %271 = vmatprep.subr.mxu0 %v270
    %v272 = vand.u32 %v50, 4294901760
    %273 = vmatpush1.msra.mxu0 %v272
    %v274 = vand.u32 %v49, 4294901760
    %275 = vmatprep.subr.mxu0 %v274
    %v276 = vand.u32 %v48, 4294901760
    %277 = vmatpush1.msra.mxu0 %v276
    %v278 = vand.u32 %v47, 4294901760
    %279 = vmatprep.subr.mxu0 %v278
    %v280 = vand.u32 %v46, 4294901760
    %281 = vmatpush1.msra.mxu0 %v280
    %v282 = vand.u32 %v109, 4294901760
    %283 = vmatprep.subr.mxu0 %v282
    %v284 = vand.u32 %v108, 4294901760
    %285 = vmatpush2.msra.mxu0 %v284
    %v286 = vand.u32 %v107, 4294901760
    %287 = vmatprep.subr.mxu0 %v286
    %v288 = vand.u32 %v106, 4294901760
    %289 = vmatpush2.msra.mxu0 %v288
    %v290 = vand.u32 %v105, 4294901760
    %291 = vmatprep.subr.mxu0 %v290
    %v292 = vand.u32 %v104, 4294901760
    %293 = vmatpush2.msra.mxu0 %v292
    %v294 = vand.u32 %v103, 4294901760
    %295 = vmatprep.subr.mxu0 %v294
    %v296 = vand.u32 %v102, 4294901760
    %297 = vmatpush2.msra.mxu0 %v296
    %v298 = vand.u32 %v101, 4294901760
    %299 = vmatprep.subr.mxu0 %v298
    %v300 = vand.u32 %v100, 4294901760
    %301 = vmatpush2.msra.mxu0 %v300
    %v302 = vand.u32 %v99, 4294901760
    %303 = vmatprep.subr.mxu0 %v302
    %v304 = vand.u32 %v98, 4294901760
    %305 = vmatpush2.msra.mxu0 %v304
    %v306 = vand.u32 %v97, 4294901760
    %307 = vmatprep.subr.mxu0 %v306
    %v308 = vand.u32 %v96, 4294901760
    %309 = vmatpush2.msra.mxu0 %v308
    %v310 = vand.u32 %v95, 4294901760
    %311 = vmatprep.subr.mxu0 %v310
    %v312 = vand.u32 %v94, 4294901760
    %313 = vmatpush2.msra.mxu0 %v312
    %v314 = vand.u32 %v93, 4294901760
    %315 = vmatprep.subr.mxu0 %v314
    %v316 = vand.u32 %v92, 4294901760
    %317 = vmatpush2.msra.mxu0 %v316
    %v318 = vand.u32 %v91, 4294901760
    %319 = vmatprep.subr.mxu0 %v318
    %v320 = vand.u32 %v90, 4294901760
    %321 = vmatpush2.msra.mxu0 %v320
    %v322 = vand.u32 %v89, 4294901760
    %323 = vmatprep.subr.mxu0 %v322
    %v324 = vand.u32 %v88, 4294901760
    %325 = vmatpush2.msra.mxu0 %v324
    %v326 = vand.u32 %v87, 4294901760
    %327 = vmatprep.subr.mxu0 %v326
    %v328 = vand.u32 %v86, 4294901760
    %329 = vmatpush2.msra.mxu0 %v328
    %v330 = vand.u32 %v85, 4294901760
    %331 = vmatprep.subr.mxu0 %v330
    %v332 = vand.u32 %v84, 4294901760
    %333 = vmatpush2.msra.mxu0 %v332
    %v334 = vand.u32 %v83, 4294901760
    %335 = vmatprep.subr.mxu0 %v334
    %v336 = vand.u32 %v82, 4294901760
    %337 = vmatpush2.msra.mxu0 %v336
    %v338 = vand.u32 %v81, 4294901760
    %339 = vmatprep.subr.mxu0 %v338
    %v340 = vand.u32 %v80, 4294901760
    %341 = vmatpush2.msra.mxu0 %v340
    %v342 = vand.u32 %v79, 4294901760
    %343 = vmatprep.subr.mxu0 %v342
    %v344 = vand.u32 %v78, 4294901760
    %345 = vmatpush2.msra.mxu0 %v344
    %v346 = vand.u32 %v42, 4294901760
    %v347 = vsub.f32 %v42, %v346
    %v348 = vand.u32 %v347, 4294901760
    %v349 = vsub.f32 %v347, %v348
    %v350 = vand.u32 %v349, 4294901760
    %351 = vmatprep.mubr.f32.mxu0 %v350
    %v352 = vand.u32 %v41, 4294901760
    %v353 = vsub.f32 %v41, %v352
    %v354 = vand.u32 %v353, 4294901760
    %v355 = vsub.f32 %v353, %v354
    %v356 = vand.u32 %v355, 4294901760
    %357 = vmatmul.mubr.f32.gmra.mxu0 %v356
    %v358 = vpop.f32.mrf.mxu0
    %v359 = vadd.f32 %v211, %v358
    %v360 = vpop.f32.mrf.mxu0
    %v361 = vadd.f32 %v215, %v360
    %362 = vdwg.mxu0
    %v363 = vand.u32 %v77, 4294901760
    %v364 = vsub.f32 %v77, %v363
    %v365 = vand.u32 %v364, 4294901760
    %v366 = vsub.f32 %v364, %v365
    %v367 = vand.u32 %v366, 4294901760
    %368 = vmatprep.subr.mxu0 %v367
    %v369 = vand.u32 %v76, 4294901760
    %v370 = vsub.f32 %v76, %v369
    %v371 = vand.u32 %v370, 4294901760
    %v372 = vsub.f32 %v370, %v371
    %v373 = vand.u32 %v372, 4294901760
    %374 = vmatpush1.msra.mxu0 %v373
    %v375 = vand.u32 %v75, 4294901760
    %v376 = vsub.f32 %v75, %v375
    %v377 = vand.u32 %v376, 4294901760
    %v378 = vsub.f32 %v376, %v377
    %v379 = vand.u32 %v378, 4294901760
    %380 = vmatprep.subr.mxu0 %v379
    %v381 = vand.u32 %v74, 4294901760
    %v382 = vsub.f32 %v74, %v381
    %v383 = vand.u32 %v382, 4294901760
    %v384 = vsub.f32 %v382, %v383
    %v385 = vand.u32 %v384, 4294901760
    %386 = vmatpush1.msra.mxu0 %v385
    %v387 = vand.u32 %v73, 4294901760
    %v388 = vsub.f32 %v73, %v387
    %v389 = vand.u32 %v388, 4294901760
    %v390 = vsub.f32 %v388, %v389
    %v391 = vand.u32 %v390, 4294901760
    %392 = vmatprep.subr.mxu0 %v391
    %v393 = vand.u32 %v72, 4294901760
    %v394 = vsub.f32 %v72, %v393
    %v395 = vand.u32 %v394, 4294901760
    %v396 = vsub.f32 %v394, %v395
    %v397 = vand.u32 %v396, 4294901760
    %398 = vmatpush1.msra.mxu0 %v397
    %v399 = vand.u32 %v71, 4294901760
    %v400 = vsub.f32 %v71, %v399
    %v401 = vand.u32 %v400, 4294901760
    %v402 = vsub.f32 %v400, %v401
    %v403 = vand.u32 %v402, 4294901760
    %404 = vmatprep.subr.mxu0 %v403
    %v405 = vand.u32 %v70, 4294901760
    %v406 = vsub.f32 %v70, %v405
    %v407 = vand.u32 %v406, 4294901760
    %v408 = vsub.f32 %v406, %v407
    %v409 = vand.u32 %v408, 4294901760
    %410 = vmatpush1.msra.mxu0 %v409
    %v411 = vand.u32 %v69, 4294901760
    %v412 = vsub.f32 %v69, %v411
    %v413 = vand.u32 %v412, 4294901760
    %v414 = vsub.f32 %v412, %v413
    %v415 = vand.u32 %v414, 4294901760
    %416 = vmatprep.subr.mxu0 %v415
    %v417 = vand.u32 %v68, 4294901760
    %v418 = vsub.f32 %v68, %v417
    %v419 = vand.u32 %v418, 4294901760
    %v420 = vsub.f32 %v418, %v419
    %v421 = vand.u32 %v420, 4294901760
    %422 = vmatpush1.msra.mxu0 %v421
    %v423 = vand.u32 %v67, 4294901760
    %v424 = vsub.f32 %v67, %v423
    %v425 = vand.u32 %v424, 4294901760
    %v426 = vsub.f32 %v424, %v425
    %v427 = vand.u32 %v426, 4294901760
    %428 = vmatprep.subr.mxu0 %v427
    %v429 = vand.u32 %v66, 4294901760
    %v430 = vsub.f32 %v66, %v429
    %v431 = vand.u32 %v430, 4294901760
    %v432 = vsub.f32 %v430, %v431
    %v433 = vand.u32 %v432, 4294901760
    %434 = vmatpush1.msra.mxu0 %v433
    %v435 = vand.u32 %v65, 4294901760
    %v436 = vsub.f32 %v65, %v435
    %v437 = vand.u32 %v436, 4294901760
    %v438 = vsub.f32 %v436, %v437
    %v439 = vand.u32 %v438, 4294901760
    %440 = vmatprep.subr.mxu0 %v439
    %v441 = vand.u32 %v64, 4294901760
    %v442 = vsub.f32 %v64, %v441
    %v443 = vand.u32 %v442, 4294901760
    %v444 = vsub.f32 %v442, %v443
    %v445 = vand.u32 %v444, 4294901760
    %446 = vmatpush1.msra.mxu0 %v445
    %v447 = vand.u32 %v63, 4294901760
    %v448 = vsub.f32 %v63, %v447
    %v449 = vand.u32 %v448, 4294901760
    %v450 = vsub.f32 %v448, %v449
    %v451 = vand.u32 %v450, 4294901760
    %452 = vmatprep.subr.mxu0 %v451
    %v453 = vand.u32 %v62, 4294901760
    %v454 = vsub.f32 %v62, %v453
    %v455 = vand.u32 %v454, 4294901760
    %v456 = vsub.f32 %v454, %v455
    %v457 = vand.u32 %v456, 4294901760
    %458 = vmatpush1.msra.mxu0 %v457
    %v459 = vand.u32 %v61, 4294901760
    %v460 = vsub.f32 %v61, %v459
    %v461 = vand.u32 %v460, 4294901760
    %v462 = vsub.f32 %v460, %v461
    %v463 = vand.u32 %v462, 4294901760
    %464 = vmatprep.subr.mxu0 %v463
    %v465 = vand.u32 %v60, 4294901760
    %v466 = vsub.f32 %v60, %v465
    %v467 = vand.u32 %v466, 4294901760
    %v468 = vsub.f32 %v466, %v467
    %v469 = vand.u32 %v468, 4294901760
    %470 = vmatpush1.msra.mxu0 %v469
    %v471 = vand.u32 %v59, 4294901760
    %v472 = vsub.f32 %v59, %v471
    %v473 = vand.u32 %v472, 4294901760
    %v474 = vsub.f32 %v472, %v473
    %v475 = vand.u32 %v474, 4294901760
    %476 = vmatprep.subr.mxu0 %v475
    %v477 = vand.u32 %v58, 4294901760
    %v478 = vsub.f32 %v58, %v477
    %v479 = vand.u32 %v478, 4294901760
    %v480 = vsub.f32 %v478, %v479
    %v481 = vand.u32 %v480, 4294901760
    %482 = vmatpush1.msra.mxu0 %v481
    %v483 = vand.u32 %v57, 4294901760
    %v484 = vsub.f32 %v57, %v483
    %v485 = vand.u32 %v484, 4294901760
    %v486 = vsub.f32 %v484, %v485
    %v487 = vand.u32 %v486, 4294901760
    %488 = vmatprep.subr.mxu0 %v487
    %v489 = vand.u32 %v56, 4294901760
    %v490 = vsub.f32 %v56, %v489
    %v491 = vand.u32 %v490, 4294901760
    %v492 = vsub.f32 %v490, %v491
    %v493 = vand.u32 %v492, 4294901760
    %494 = vmatpush1.msra.mxu0 %v493
    %v495 = vand.u32 %v55, 4294901760
    %v496 = vsub.f32 %v55, %v495
    %v497 = vand.u32 %v496, 4294901760
    %v498 = vsub.f32 %v496, %v497
    %v499 = vand.u32 %v498, 4294901760
    %500 = vmatprep.subr.mxu0 %v499
    %v501 = vand.u32 %v54, 4294901760
    %v502 = vsub.f32 %v54, %v501
    %v503 = vand.u32 %v502, 4294901760
    %v504 = vsub.f32 %v502, %v503
    %v505 = vand.u32 %v504, 4294901760
    %506 = vmatpush1.msra.mxu0 %v505
    %v507 = vand.u32 %v53, 4294901760
    %v508 = vsub.f32 %v53, %v507
    %v509 = vand.u32 %v508, 4294901760
    %v510 = vsub.f32 %v508, %v509
    %v511 = vand.u32 %v510, 4294901760
    %512 = vmatprep.subr.mxu0 %v511
    %v513 = vand.u32 %v52, 4294901760
    %v514 = vsub.f32 %v52, %v513
    %v515 = vand.u32 %v514, 4294901760
    %v516 = vsub.f32 %v514, %v515
    %v517 = vand.u32 %v516, 4294901760
    %518 = vmatpush1.msra.mxu0 %v517
    %v519 = vand.u32 %v51, 4294901760
    %v520 = vsub.f32 %v51, %v519
    %v521 = vand.u32 %v520, 4294901760
    %v522 = vsub.f32 %v520, %v521
    %v523 = vand.u32 %v522, 4294901760
    %524 = vmatprep.subr.mxu0 %v523
    %v525 = vand.u32 %v50, 4294901760
    %v526 = vsub.f32 %v50, %v525
    %v527 = vand.u32 %v526, 4294901760
    %v528 = vsub.f32 %v526, %v527
    %v529 = vand.u32 %v528, 4294901760
    %530 = vmatpush1.msra.mxu0 %v529
    %v531 = vand.u32 %v49, 4294901760
    %v532 = vsub.f32 %v49, %v531
    %v533 = vand.u32 %v532, 4294901760
    %v534 = vsub.f32 %v532, %v533
    %v535 = vand.u32 %v534, 4294901760
    %536 = vmatprep.subr.mxu0 %v535
    %v537 = vand.u32 %v48, 4294901760
    %v538 = vsub.f32 %v48, %v537
    %v539 = vand.u32 %v538, 4294901760
    %v540 = vsub.f32 %v538, %v539
    %v541 = vand.u32 %v540, 4294901760
    %542 = vmatpush1.msra.mxu0 %v541
    %v543 = vand.u32 %v47, 4294901760
    %v544 = vsub.f32 %v47, %v543
    %v545 = vand.u32 %v544, 4294901760
    %v546 = vsub.f32 %v544, %v545
    %v547 = vand.u32 %v546, 4294901760
    %548 = vmatprep.subr.mxu0 %v547
    %v549 = vand.u32 %v46, 4294901760
    %v550 = vsub.f32 %v46, %v549
    %v551 = vand.u32 %v550, 4294901760
    %v552 = vsub.f32 %v550, %v551
    %v553 = vand.u32 %v552, 4294901760
    %554 = vmatpush1.msra.mxu0 %v553
    %v555 = vand.u32 %v109, 4294901760
    %v556 = vsub.f32 %v109, %v555
    %v557 = vand.u32 %v556, 4294901760
    %v558 = vsub.f32 %v556, %v557
    %v559 = vand.u32 %v558, 4294901760
    %560 = vmatprep.subr.mxu0 %v559
    %v561 = vand.u32 %v108, 4294901760
    %v562 = vsub.f32 %v108, %v561
    %v563 = vand.u32 %v562, 4294901760
    %v564 = vsub.f32 %v562, %v563
    %v565 = vand.u32 %v564, 4294901760
    %566 = vmatpush2.msra.mxu0 %v565
    %v567 = vand.u32 %v107, 4294901760
    %v568 = vsub.f32 %v107, %v567
    %v569 = vand.u32 %v568, 4294901760
    %v570 = vsub.f32 %v568, %v569
    %v571 = vand.u32 %v570, 4294901760
    %572 = vmatprep.subr.mxu0 %v571
    %v573 = vand.u32 %v106, 4294901760
    %v574 = vsub.f32 %v106, %v573
    %v575 = vand.u32 %v574, 4294901760
    %v576 = vsub.f32 %v574, %v575
    %v577 = vand.u32 %v576, 4294901760
    %578 = vmatpush2.msra.mxu0 %v577
    %v579 = vand.u32 %v105, 4294901760
    %v580 = vsub.f32 %v105, %v579
    %v581 = vand.u32 %v580, 4294901760
    %v582 = vsub.f32 %v580, %v581
    %v583 = vand.u32 %v582, 4294901760
    %584 = vmatprep.subr.mxu0 %v583
    %v585 = vand.u32 %v104, 4294901760
    %v586 = vsub.f32 %v104, %v585
    %v587 = vand.u32 %v586, 4294901760
    %v588 = vsub.f32 %v586, %v587
    %v589 = vand.u32 %v588, 4294901760
    %590 = vmatpush2.msra.mxu0 %v589
    %v591 = vand.u32 %v103, 4294901760
    %v592 = vsub.f32 %v103, %v591
    %v593 = vand.u32 %v592, 4294901760
    %v594 = vsub.f32 %v592, %v593
    %v595 = vand.u32 %v594, 4294901760
    %596 = vmatprep.subr.mxu0 %v595
    %v597 = vand.u32 %v102, 4294901760
    %v598 = vsub.f32 %v102, %v597
    %v599 = vand.u32 %v598, 4294901760
    %v600 = vsub.f32 %v598, %v599
    %v601 = vand.u32 %v600, 4294901760
    %602 = vmatpush2.msra.mxu0 %v601
    %v603 = vand.u32 %v101, 4294901760
    %v604 = vsub.f32 %v101, %v603
    %v605 = vand.u32 %v604, 4294901760
    %v606 = vsub.f32 %v604, %v605
    %v607 = vand.u32 %v606, 4294901760
    %608 = vmatprep.subr.mxu0 %v607
    %v609 = vand.u32 %v100, 4294901760
    %v610 = vsub.f32 %v100, %v609
    %v611 = vand.u32 %v610, 4294901760
    %v612 = vsub.f32 %v610, %v611
    %v613 = vand.u32 %v612, 4294901760
    %614 = vmatpush2.msra.mxu0 %v613
    %v615 = vand.u32 %v99, 4294901760
    %v616 = vsub.f32 %v99, %v615
    %v617 = vand.u32 %v616, 4294901760
    %v618 = vsub.f32 %v616, %v617
    %v619 = vand.u32 %v618, 4294901760
    %620 = vmatprep.subr.mxu0 %v619
    %v621 = vand.u32 %v98, 4294901760
    %v622 = vsub.f32 %v98, %v621
    %v623 = vand.u32 %v622, 4294901760
    %v624 = vsub.f32 %v622, %v623
    %v625 = vand.u32 %v624, 4294901760
    %626 = vmatpush2.msra.mxu0 %v625
    %v627 = vand.u32 %v97, 4294901760
    %v628 = vsub.f32 %v97, %v627
    %v629 = vand.u32 %v628, 4294901760
    %v630 = vsub.f32 %v628, %v629
    %v631 = vand.u32 %v630, 4294901760
    %632 = vmatprep.subr.mxu0 %v631
    %v633 = vand.u32 %v96, 4294901760
    %v634 = vsub.f32 %v96, %v633
    %v635 = vand.u32 %v634, 4294901760
    %v636 = vsub.f32 %v634, %v635
    %v637 = vand.u32 %v636, 4294901760
    %638 = vmatpush2.msra.mxu0 %v637
    %v639 = vand.u32 %v95, 4294901760
    %v640 = vsub.f32 %v95, %v639
    %v641 = vand.u32 %v640, 4294901760
    %v642 = vsub.f32 %v640, %v641
    %v643 = vand.u32 %v642, 4294901760
    %644 = vmatprep.subr.mxu0 %v643
    %v645 = vand.u32 %v94, 4294901760
    %v646 = vsub.f32 %v94, %v645
    %v647 = vand.u32 %v646, 4294901760
    %v648 = vsub.f32 %v646, %v647
    %v649 = vand.u32 %v648, 4294901760
    %650 = vmatpush2.msra.mxu0 %v649
    %v651 = vand.u32 %v93, 4294901760
    %v652 = vsub.f32 %v93, %v651
    %v653 = vand.u32 %v652, 4294901760
    %v654 = vsub.f32 %v652, %v653
    %v655 = vand.u32 %v654, 4294901760
    %656 = vmatprep.subr.mxu0 %v655
    %v657 = vand.u32 %v92, 4294901760
    %v658 = vsub.f32 %v92, %v657
    %v659 = vand.u32 %v658, 4294901760
    %v660 = vsub.f32 %v658, %v659
    %v661 = vand.u32 %v660, 4294901760
    %662 = vmatpush2.msra.mxu0 %v661
    %v663 = vand.u32 %v91, 4294901760
    %v664 = vsub.f32 %v91, %v663
    %v665 = vand.u32 %v664, 4294901760
    %v666 = vsub.f32 %v664, %v665
    %v667 = vand.u32 %v666, 4294901760
    %668 = vmatprep.subr.mxu0 %v667
    %v669 = vand.u32 %v90, 4294901760
    %v670 = vsub.f32 %v90, %v669
    %v671 = vand.u32 %v670, 4294901760
    %v672 = vsub.f32 %v670, %v671
    %v673 = vand.u32 %v672, 4294901760
    %674 = vmatpush2.msra.mxu0 %v673
    %v675 = vand.u32 %v89, 4294901760
    %v676 = vsub.f32 %v89, %v675
    %v677 = vand.u32 %v676, 4294901760
    %v678 = vsub.f32 %v676, %v677
    %v679 = vand.u32 %v678, 4294901760
    %680 = vmatprep.subr.mxu0 %v679
    %v681 = vand.u32 %v88, 4294901760
    %v682 = vsub.f32 %v88, %v681
    %v683 = vand.u32 %v682, 4294901760
    %v684 = vsub.f32 %v682, %v683
    %v685 = vand.u32 %v684, 4294901760
    %686 = vmatpush2.msra.mxu0 %v685
    %v687 = vand.u32 %v87, 4294901760
    %v688 = vsub.f32 %v87, %v687
    %v689 = vand.u32 %v688, 4294901760
    %v690 = vsub.f32 %v688, %v689
    %v691 = vand.u32 %v690, 4294901760
    %692 = vmatprep.subr.mxu0 %v691
    %v693 = vand.u32 %v86, 4294901760
    %v694 = vsub.f32 %v86, %v693
    %v695 = vand.u32 %v694, 4294901760
    %v696 = vsub.f32 %v694, %v695
    %v697 = vand.u32 %v696, 4294901760
    %698 = vmatpush2.msra.mxu0 %v697
    %v699 = vand.u32 %v85, 4294901760
    %v700 = vsub.f32 %v85, %v699
    %v701 = vand.u32 %v700, 4294901760
    %v702 = vsub.f32 %v700, %v701
    %v703 = vand.u32 %v702, 4294901760
    %704 = vmatprep.subr.mxu0 %v703
    %v705 = vand.u32 %v84, 4294901760
    %v706 = vsub.f32 %v84, %v705
    %v707 = vand.u32 %v706, 4294901760
    %v708 = vsub.f32 %v706, %v707
    %v709 = vand.u32 %v708, 4294901760
    %710 = vmatpush2.msra.mxu0 %v709
    %v711 = vand.u32 %v83, 4294901760
    %v712 = vsub.f32 %v83, %v711
    %v713 = vand.u32 %v712, 4294901760
    %v714 = vsub.f32 %v712, %v713
    %v715 = vand.u32 %v714, 4294901760
    %716 = vmatprep.subr.mxu0 %v715
    %v717 = vand.u32 %v82, 4294901760
    %v718 = vsub.f32 %v82, %v717
    %v719 = vand.u32 %v718, 4294901760
    %v720 = vsub.f32 %v718, %v719
    %v721 = vand.u32 %v720, 4294901760
    %722 = vmatpush2.msra.mxu0 %v721
    %v723 = vand.u32 %v81, 4294901760
    %v724 = vsub.f32 %v81, %v723
    %v725 = vand.u32 %v724, 4294901760
    %v726 = vsub.f32 %v724, %v725
    %v727 = vand.u32 %v726, 4294901760
    %728 = vmatprep.subr.mxu0 %v727
    %v729 = vand.u32 %v80, 4294901760
    %v730 = vsub.f32 %v80, %v729
    %v731 = vand.u32 %v730, 4294901760
    %v732 = vsub.f32 %v730, %v731
    %v733 = vand.u32 %v732, 4294901760
    %734 = vmatpush2.msra.mxu0 %v733
    %v735 = vand.u32 %v79, 4294901760
    %v736 = vsub.f32 %v79, %v735
    %v737 = vand.u32 %v736, 4294901760
    %v738 = vsub.f32 %v736, %v737
    %v739 = vand.u32 %v738, 4294901760
    %740 = vmatprep.subr.mxu0 %v739
    %v741 = vand.u32 %v78, 4294901760
    %v742 = vsub.f32 %v78, %v741
    %v743 = vand.u32 %v742, 4294901760
    %v744 = vsub.f32 %v742, %v743
    %v745 = vand.u32 %v744, 4294901760
    %746 = vmatpush2.msra.mxu0 %v745
    %v747 = vand.u32 %v42, 4294901760
    %748 = vmatprep.mubr.f32.mxu0 %v747
    %v749 = vand.u32 %v41, 4294901760
    %750 = vmatmul.mubr.f32.gmra.mxu0 %v749
    %v751 = vpop.f32.mrf.mxu0
    %v752 = vadd.f32 %v359, %v751
    %v753 = vpop.f32.mrf.mxu0
    %v754 = vadd.f32 %v361, %v753
    %755 = vdwg.mxu0
    %v756 = vand.u32 %v77, 4294901760
    %v757 = vsub.f32 %v77, %v756
    %758 = vmatprep.subr.mxu0 %v757
    %v759 = vand.u32 %v76, 4294901760
    %v760 = vsub.f32 %v76, %v759
    %761 = vmatpush1.msra.mxu0 %v760
    %v762 = vand.u32 %v75, 4294901760
    %v763 = vsub.f32 %v75, %v762
    %764 = vmatprep.subr.mxu0 %v763
    %v765 = vand.u32 %v74, 4294901760
    %v766 = vsub.f32 %v74, %v765
    %767 = vmatpush1.msra.mxu0 %v766
    %v768 = vand.u32 %v73, 4294901760
    %v769 = vsub.f32 %v73, %v768
    %770 = vmatprep.subr.mxu0 %v769
    %v771 = vand.u32 %v72, 4294901760
    %v772 = vsub.f32 %v72, %v771
    %773 = vmatpush1.msra.mxu0 %v772
    %v774 = vand.u32 %v71, 4294901760
    %v775 = vsub.f32 %v71, %v774
    %776 = vmatprep.subr.mxu0 %v775
    %v777 = vand.u32 %v70, 4294901760
    %v778 = vsub.f32 %v70, %v777
    %779 = vmatpush1.msra.mxu0 %v778
    %v780 = vand.u32 %v69, 4294901760
    %v781 = vsub.f32 %v69, %v780
    %782 = vmatprep.subr.mxu0 %v781
    %v783 = vand.u32 %v68, 4294901760
    %v784 = vsub.f32 %v68, %v783
    %785 = vmatpush1.msra.mxu0 %v784
    %v786 = vand.u32 %v67, 4294901760
    %v787 = vsub.f32 %v67, %v786
    %788 = vmatprep.subr.mxu0 %v787
    %v789 = vand.u32 %v66, 4294901760
    %v790 = vsub.f32 %v66, %v789
    %791 = vmatpush1.msra.mxu0 %v790
    %v792 = vand.u32 %v65, 4294901760
    %v793 = vsub.f32 %v65, %v792
    %794 = vmatprep.subr.mxu0 %v793
    %v795 = vand.u32 %v64, 4294901760
    %v796 = vsub.f32 %v64, %v795
    %797 = vmatpush1.msra.mxu0 %v796
    %v798 = vand.u32 %v63, 4294901760
    %v799 = vsub.f32 %v63, %v798
    %800 = vmatprep.subr.mxu0 %v799
    %v801 = vand.u32 %v62, 4294901760
    %v802 = vsub.f32 %v62, %v801
    %803 = vmatpush1.msra.mxu0 %v802
    %v804 = vand.u32 %v61, 4294901760
    %v805 = vsub.f32 %v61, %v804
    %806 = vmatprep.subr.mxu0 %v805
    %v807 = vand.u32 %v60, 4294901760
    %v808 = vsub.f32 %v60, %v807
    %809 = vmatpush1.msra.mxu0 %v808
    %v810 = vand.u32 %v59, 4294901760
    %v811 = vsub.f32 %v59, %v810
    %812 = vmatprep.subr.mxu0 %v811
    %v813 = vand.u32 %v58, 4294901760
    %v814 = vsub.f32 %v58, %v813
    %815 = vmatpush1.msra.mxu0 %v814
    %v816 = vand.u32 %v57, 4294901760
    %v817 = vsub.f32 %v57, %v816
    %818 = vmatprep.subr.mxu0 %v817
    %v819 = vand.u32 %v56, 4294901760
    %v820 = vsub.f32 %v56, %v819
    %821 = vmatpush1.msra.mxu0 %v820
    %v822 = vand.u32 %v55, 4294901760
    %v823 = vsub.f32 %v55, %v822
    %824 = vmatprep.subr.mxu0 %v823
    %v825 = vand.u32 %v54, 4294901760
    %v826 = vsub.f32 %v54, %v825
    %827 = vmatpush1.msra.mxu0 %v826
    %v828 = vand.u32 %v53, 4294901760
    %v829 = vsub.f32 %v53, %v828
    %830 = vmatprep.subr.mxu0 %v829
    %v831 = vand.u32 %v52, 4294901760
    %v832 = vsub.f32 %v52, %v831
    %833 = vmatpush1.msra.mxu0 %v832
    %v834 = vand.u32 %v51, 4294901760
    %v835 = vsub.f32 %v51, %v834
    %836 = vmatprep.subr.mxu0 %v835
    %v837 = vand.u32 %v50, 4294901760
    %v838 = vsub.f32 %v50, %v837
    %839 = vmatpush1.msra.mxu0 %v838
    %v840 = vand.u32 %v49, 4294901760
    %v841 = vsub.f32 %v49, %v840
    %842 = vmatprep.subr.mxu0 %v841
    %v843 = vand.u32 %v48, 4294901760
    %v844 = vsub.f32 %v48, %v843
    %845 = vmatpush1.msra.mxu0 %v844
    %v846 = vand.u32 %v47, 4294901760
    %v847 = vsub.f32 %v47, %v846
    %848 = vmatprep.subr.mxu0 %v847
    %v849 = vand.u32 %v46, 4294901760
    %v850 = vsub.f32 %v46, %v849
    %851 = vmatpush1.msra.mxu0 %v850
    %v852 = vand.u32 %v109, 4294901760
    %v853 = vsub.f32 %v109, %v852
    %854 = vmatprep.subr.mxu0 %v853
    %v855 = vand.u32 %v108, 4294901760
    %v856 = vsub.f32 %v108, %v855
    %857 = vmatpush2.msra.mxu0 %v856
    %v858 = vand.u32 %v107, 4294901760
    %v859 = vsub.f32 %v107, %v858
    %860 = vmatprep.subr.mxu0 %v859
    %v861 = vand.u32 %v106, 4294901760
    %v862 = vsub.f32 %v106, %v861
    %863 = vmatpush2.msra.mxu0 %v862
    %v864 = vand.u32 %v105, 4294901760
    %v865 = vsub.f32 %v105, %v864
    %866 = vmatprep.subr.mxu0 %v865
    %v867 = vand.u32 %v104, 4294901760
    %v868 = vsub.f32 %v104, %v867
    %869 = vmatpush2.msra.mxu0 %v868
    %v870 = vand.u32 %v103, 4294901760
    %v871 = vsub.f32 %v103, %v870
    %872 = vmatprep.subr.mxu0 %v871
    %v873 = vand.u32 %v102, 4294901760
    %v874 = vsub.f32 %v102, %v873
    %875 = vmatpush2.msra.mxu0 %v874
    %v876 = vand.u32 %v101, 4294901760
    %v877 = vsub.f32 %v101, %v876
    %878 = vmatprep.subr.mxu0 %v877
    %v879 = vand.u32 %v100, 4294901760
    %v880 = vsub.f32 %v100, %v879
    %881 = vmatpush2.msra.mxu0 %v880
    %v882 = vand.u32 %v99, 4294901760
    %v883 = vsub.f32 %v99, %v882
    %884 = vmatprep.subr.mxu0 %v883
    %v885 = vand.u32 %v98, 4294901760
    %v886 = vsub.f32 %v98, %v885
    %887 = vmatpush2.msra.mxu0 %v886
    %v888 = vand.u32 %v97, 4294901760
    %v889 = vsub.f32 %v97, %v888
    %890 = vmatprep.subr.mxu0 %v889
    %v891 = vand.u32 %v96, 4294901760
    %v892 = vsub.f32 %v96, %v891
    %893 = vmatpush2.msra.mxu0 %v892
    %v894 = vand.u32 %v95, 4294901760
    %v895 = vsub.f32 %v95, %v894
    %896 = vmatprep.subr.mxu0 %v895
    %v897 = vand.u32 %v94, 4294901760
    %v898 = vsub.f32 %v94, %v897
    %899 = vmatpush2.msra.mxu0 %v898
    %v900 = vand.u32 %v93, 4294901760
    %v901 = vsub.f32 %v93, %v900
    %902 = vmatprep.subr.mxu0 %v901
    %v903 = vand.u32 %v92, 4294901760
    %v904 = vsub.f32 %v92, %v903
    %905 = vmatpush2.msra.mxu0 %v904
    %v906 = vand.u32 %v91, 4294901760
    %v907 = vsub.f32 %v91, %v906
    %908 = vmatprep.subr.mxu0 %v907
    %v909 = vand.u32 %v90, 4294901760
    %v910 = vsub.f32 %v90, %v909
    %911 = vmatpush2.msra.mxu0 %v910
    %v912 = vand.u32 %v89, 4294901760
    %v913 = vsub.f32 %v89, %v912
    %914 = vmatprep.subr.mxu0 %v913
    %v915 = vand.u32 %v88, 4294901760
    %v916 = vsub.f32 %v88, %v915
    %917 = vmatpush2.msra.mxu0 %v916
    %v918 = vand.u32 %v87, 4294901760
    %v919 = vsub.f32 %v87, %v918
    %920 = vmatprep.subr.mxu0 %v919
    %v921 = vand.u32 %v86, 4294901760
    %v922 = vsub.f32 %v86, %v921
    %923 = vmatpush2.msra.mxu0 %v922
    %v924 = vand.u32 %v85, 4294901760
    %v925 = vsub.f32 %v85, %v924
    %926 = vmatprep.subr.mxu0 %v925
    %v927 = vand.u32 %v84, 4294901760
    %v928 = vsub.f32 %v84, %v927
    %929 = vmatpush2.msra.mxu0 %v928
    %v930 = vand.u32 %v83, 4294901760
    %v931 = vsub.f32 %v83, %v930
    %932 = vmatprep.subr.mxu0 %v931
    %v933 = vand.u32 %v82, 4294901760
    %v934 = vsub.f32 %v82, %v933
    %935 = vmatpush2.msra.mxu0 %v934
    %v936 = vand.u32 %v81, 4294901760
    %v937 = vsub.f32 %v81, %v936
    %938 = vmatprep.subr.mxu0 %v937
    %v939 = vand.u32 %v80, 4294901760
    %v940 = vsub.f32 %v80, %v939
    %941 = vmatpush2.msra.mxu0 %v940
    %v942 = vand.u32 %v79, 4294901760
    %v943 = vsub.f32 %v79, %v942
    %944 = vmatprep.subr.mxu0 %v943
    %v945 = vand.u32 %v78, 4294901760
    %v946 = vsub.f32 %v78, %v945
    %947 = vmatpush2.msra.mxu0 %v946
    %v948 = vand.u32 %v42, 4294901760
    %v949 = vsub.f32 %v42, %v948
    %950 = vmatprep.mubr.f32.mxu0 %v949
    %v951 = vand.u32 %v41, 4294901760
    %v952 = vsub.f32 %v41, %v951
    %953 = vmatmul.mubr.f32.gmra.mxu0 %v952
    %v954 = vpop.f32.mrf.mxu0
    %v955 = vadd.f32 %v752, %v954
    %v956 = vpop.f32.mrf.mxu0
    %v957 = vadd.f32 %v754, %v956
    %958 = vdwg.mxu0
    %v959 = vand.u32 %v77, 4294901760
    %960 = vmatprep.subr.mxu0 %v959
    %v961 = vand.u32 %v76, 4294901760
    %962 = vmatpush1.msra.mxu0 %v961
    %v963 = vand.u32 %v75, 4294901760
    %964 = vmatprep.subr.mxu0 %v963
    %v965 = vand.u32 %v74, 4294901760
    %966 = vmatpush1.msra.mxu0 %v965
    %v967 = vand.u32 %v73, 4294901760
    %968 = vmatprep.subr.mxu0 %v967
    %v969 = vand.u32 %v72, 4294901760
    %970 = vmatpush1.msra.mxu0 %v969
    %v971 = vand.u32 %v71, 4294901760
    %972 = vmatprep.subr.mxu0 %v971
    %v973 = vand.u32 %v70, 4294901760
    %974 = vmatpush1.msra.mxu0 %v973
    %v975 = vand.u32 %v69, 4294901760
    %976 = vmatprep.subr.mxu0 %v975
    %v977 = vand.u32 %v68, 4294901760
    %978 = vmatpush1.msra.mxu0 %v977
    %v979 = vand.u32 %v67, 4294901760
    %980 = vmatprep.subr.mxu0 %v979
    %v981 = vand.u32 %v66, 4294901760
    %982 = vmatpush1.msra.mxu0 %v981
    %v983 = vand.u32 %v65, 4294901760
    %984 = vmatprep.subr.mxu0 %v983
    %v985 = vand.u32 %v64, 4294901760
    %986 = vmatpush1.msra.mxu0 %v985
    %v987 = vand.u32 %v63, 4294901760
    %988 = vmatprep.subr.mxu0 %v987
    %v989 = vand.u32 %v62, 4294901760
    %990 = vmatpush1.msra.mxu0 %v989
    %v991 = vand.u32 %v61, 4294901760
    %992 = vmatprep.subr.mxu0 %v991
    %v993 = vand.u32 %v60, 4294901760
    %994 = vmatpush1.msra.mxu0 %v993
    %v995 = vand.u32 %v59, 4294901760
    %996 = vmatprep.subr.mxu0 %v995
    %v997 = vand.u32 %v58, 4294901760
    %998 = vmatpush1.msra.mxu0 %v997
    %v999 = vand.u32 %v57, 4294901760
    %1000 = vmatprep.subr.mxu0 %v999
    %v1001 = vand.u32 %v56, 4294901760
    %1002 = vmatpush1.msra.mxu0 %v1001
    %v1003 = vand.u32 %v55, 4294901760
    %1004 = vmatprep.subr.mxu0 %v1003
    %v1005 = vand.u32 %v54, 4294901760
    %1006 = vmatpush1.msra.mxu0 %v1005
    %v1007 = vand.u32 %v53, 4294901760
    %1008 = vmatprep.subr.mxu0 %v1007
    %v1009 = vand.u32 %v52, 4294901760
    %1010 = vmatpush1.msra.mxu0 %v1009
    %v1011 = vand.u32 %v51, 4294901760
    %1012 = vmatprep.subr.mxu0 %v1011
    %v1013 = vand.u32 %v50, 4294901760
    %1014 = vmatpush1.msra.mxu0 %v1013
    %v1015 = vand.u32 %v49, 4294901760
    %1016 = vmatprep.subr.mxu0 %v1015
    %v1017 = vand.u32 %v48, 4294901760
    %1018 = vmatpush1.msra.mxu0 %v1017
    %v1019 = vand.u32 %v47, 4294901760
    %1020 = vmatprep.subr.mxu0 %v1019
    %v1021 = vand.u32 %v46, 4294901760
    %1022 = vmatpush1.msra.mxu0 %v1021
    %v1023 = vand.u32 %v109, 4294901760
    %1024 = vmatprep.subr.mxu0 %v1023
    %v1025 = vand.u32 %v108, 4294901760
    %1026 = vmatpush2.msra.mxu0 %v1025
    %v1027 = vand.u32 %v107, 4294901760
    %1028 = vmatprep.subr.mxu0 %v1027
    %v1029 = vand.u32 %v106, 4294901760
    %1030 = vmatpush2.msra.mxu0 %v1029
    %v1031 = vand.u32 %v105, 4294901760
    %1032 = vmatprep.subr.mxu0 %v1031
    %v1033 = vand.u32 %v104, 4294901760
    %1034 = vmatpush2.msra.mxu0 %v1033
    %v1035 = vand.u32 %v103, 4294901760
    %1036 = vmatprep.subr.mxu0 %v1035
    %v1037 = vand.u32 %v102, 4294901760
    %1038 = vmatpush2.msra.mxu0 %v1037
    %v1039 = vand.u32 %v101, 4294901760
    %1040 = vmatprep.subr.mxu0 %v1039
    %v1041 = vand.u32 %v100, 4294901760
    %1042 = vmatpush2.msra.mxu0 %v1041
    %v1043 = vand.u32 %v99, 4294901760
    %1044 = vmatprep.subr.mxu0 %v1043
    %v1045 = vand.u32 %v98, 4294901760
    %1046 = vmatpush2.msra.mxu0 %v1045
    %v1047 = vand.u32 %v97, 4294901760
    %1048 = vmatprep.subr.mxu0 %v1047
    %v1049 = vand.u32 %v96, 4294901760
    %1050 = vmatpush2.msra.mxu0 %v1049
    %v1051 = vand.u32 %v95, 4294901760
    %1052 = vmatprep.subr.mxu0 %v1051
    %v1053 = vand.u32 %v94, 4294901760
    %1054 = vmatpush2.msra.mxu0 %v1053
    %v1055 = vand.u32 %v93, 4294901760
    %1056 = vmatprep.subr.mxu0 %v1055
    %v1057 = vand.u32 %v92, 4294901760
    %1058 = vmatpush2.msra.mxu0 %v1057
    %v1059 = vand.u32 %v91, 4294901760
    %1060 = vmatprep.subr.mxu0 %v1059
    %v1061 = vand.u32 %v90, 4294901760
    %1062 = vmatpush2.msra.mxu0 %v1061
    %v1063 = vand.u32 %v89, 4294901760
    %1064 = vmatprep.subr.mxu0 %v1063
    %v1065 = vand.u32 %v88, 4294901760
    %1066 = vmatpush2.msra.mxu0 %v1065
    %v1067 = vand.u32 %v87, 4294901760
    %1068 = vmatprep.subr.mxu0 %v1067
    %v1069 = vand.u32 %v86, 4294901760
    %1070 = vmatpush2.msra.mxu0 %v1069
    %v1071 = vand.u32 %v85, 4294901760
    %1072 = vmatprep.subr.mxu0 %v1071
    %v1073 = vand.u32 %v84, 4294901760
    %1074 = vmatpush2.msra.mxu0 %v1073
    %v1075 = vand.u32 %v83, 4294901760
    %1076 = vmatprep.subr.mxu0 %v1075
    %v1077 = vand.u32 %v82, 4294901760
    %1078 = vmatpush2.msra.mxu0 %v1077
    %v1079 = vand.u32 %v81, 4294901760
    %1080 = vmatprep.subr.mxu0 %v1079
    %v1081 = vand.u32 %v80, 4294901760
    %1082 = vmatpush2.msra.mxu0 %v1081
    %v1083 = vand.u32 %v79, 4294901760
    %1084 = vmatprep.subr.mxu0 %v1083
    %v1085 = vand.u32 %v78, 4294901760
    %1086 = vmatpush2.msra.mxu0 %v1085
    %v1087 = vand.u32 %v42, 4294901760
    %v1088 = vsub.f32 %v42, %v1087
    %v1089 = vand.u32 %v1088, 4294901760
    %1090 = vmatprep.mubr.f32.mxu0 %v1089
    %v1091 = vand.u32 %v41, 4294901760
    %v1092 = vsub.f32 %v41, %v1091
    %v1093 = vand.u32 %v1092, 4294901760
    %1094 = vmatmul.mubr.f32.gmra.mxu0 %v1093
    %v1095 = vpop.f32.mrf.mxu0
    %v1096 = vadd.f32 %v955, %v1095
    %v1097 = vpop.f32.mrf.mxu0
    %v1098 = vadd.f32 %v957, %v1097
    %1099 = vdwg.mxu0
    %v1100 = vand.u32 %v77, 4294901760
    %v1101 = vsub.f32 %v77, %v1100
    %v1102 = vand.u32 %v1101, 4294901760
    %1103 = vmatprep.subr.mxu0 %v1102
    %v1104 = vand.u32 %v76, 4294901760
    %v1105 = vsub.f32 %v76, %v1104
    %v1106 = vand.u32 %v1105, 4294901760
    %1107 = vmatpush1.msra.mxu0 %v1106
    %v1108 = vand.u32 %v75, 4294901760
    %v1109 = vsub.f32 %v75, %v1108
    %v1110 = vand.u32 %v1109, 4294901760
    %1111 = vmatprep.subr.mxu0 %v1110
    %v1112 = vand.u32 %v74, 4294901760
    %v1113 = vsub.f32 %v74, %v1112
    %v1114 = vand.u32 %v1113, 4294901760
    %1115 = vmatpush1.msra.mxu0 %v1114
    %v1116 = vand.u32 %v73, 4294901760
    %v1117 = vsub.f32 %v73, %v1116
    %v1118 = vand.u32 %v1117, 4294901760
    %1119 = vmatprep.subr.mxu0 %v1118
    %v1120 = vand.u32 %v72, 4294901760
    %v1121 = vsub.f32 %v72, %v1120
    %v1122 = vand.u32 %v1121, 4294901760
    %1123 = vmatpush1.msra.mxu0 %v1122
    %v1124 = vand.u32 %v71, 4294901760
    %v1125 = vsub.f32 %v71, %v1124
    %v1126 = vand.u32 %v1125, 4294901760
    %1127 = vmatprep.subr.mxu0 %v1126
    %v1128 = vand.u32 %v70, 4294901760
    %v1129 = vsub.f32 %v70, %v1128
    %v1130 = vand.u32 %v1129, 4294901760
    %1131 = vmatpush1.msra.mxu0 %v1130
    %v1132 = vand.u32 %v69, 4294901760
    %v1133 = vsub.f32 %v69, %v1132
    %v1134 = vand.u32 %v1133, 4294901760
    %1135 = vmatprep.subr.mxu0 %v1134
    %v1136 = vand.u32 %v68, 4294901760
    %v1137 = vsub.f32 %v68, %v1136
    %v1138 = vand.u32 %v1137, 4294901760
    %1139 = vmatpush1.msra.mxu0 %v1138
    %v1140 = vand.u32 %v67, 4294901760
    %v1141 = vsub.f32 %v67, %v1140
    %v1142 = vand.u32 %v1141, 4294901760
    %1143 = vmatprep.subr.mxu0 %v1142
    %v1144 = vand.u32 %v66, 4294901760
    %v1145 = vsub.f32 %v66, %v1144
    %v1146 = vand.u32 %v1145, 4294901760
    %1147 = vmatpush1.msra.mxu0 %v1146
    %v1148 = vand.u32 %v65, 4294901760
    %v1149 = vsub.f32 %v65, %v1148
    %v1150 = vand.u32 %v1149, 4294901760
    %1151 = vmatprep.subr.mxu0 %v1150
    %v1152 = vand.u32 %v64, 4294901760
    %v1153 = vsub.f32 %v64, %v1152
    %v1154 = vand.u32 %v1153, 4294901760
    %1155 = vmatpush1.msra.mxu0 %v1154
    %v1156 = vand.u32 %v63, 4294901760
    %v1157 = vsub.f32 %v63, %v1156
    %v1158 = vand.u32 %v1157, 4294901760
    %1159 = vmatprep.subr.mxu0 %v1158
    %v1160 = vand.u32 %v62, 4294901760
    %v1161 = vsub.f32 %v62, %v1160
    %v1162 = vand.u32 %v1161, 4294901760
    %1163 = vmatpush1.msra.mxu0 %v1162
    %v1164 = vand.u32 %v61, 4294901760
    %v1165 = vsub.f32 %v61, %v1164
    %v1166 = vand.u32 %v1165, 4294901760
    %1167 = vmatprep.subr.mxu0 %v1166
    %v1168 = vand.u32 %v60, 4294901760
    %v1169 = vsub.f32 %v60, %v1168
    %v1170 = vand.u32 %v1169, 4294901760
    %1171 = vmatpush1.msra.mxu0 %v1170
    %v1172 = vand.u32 %v59, 4294901760
    %v1173 = vsub.f32 %v59, %v1172
    %v1174 = vand.u32 %v1173, 4294901760
    %1175 = vmatprep.subr.mxu0 %v1174
    %v1176 = vand.u32 %v58, 4294901760
    %v1177 = vsub.f32 %v58, %v1176
    %v1178 = vand.u32 %v1177, 4294901760
    %1179 = vmatpush1.msra.mxu0 %v1178
    %v1180 = vand.u32 %v57, 4294901760
    %v1181 = vsub.f32 %v57, %v1180
    %v1182 = vand.u32 %v1181, 4294901760
    %1183 = vmatprep.subr.mxu0 %v1182
    %v1184 = vand.u32 %v56, 4294901760
    %v1185 = vsub.f32 %v56, %v1184
    %v1186 = vand.u32 %v1185, 4294901760
    %1187 = vmatpush1.msra.mxu0 %v1186
    %v1188 = vand.u32 %v55, 4294901760
    %v1189 = vsub.f32 %v55, %v1188
    %v1190 = vand.u32 %v1189, 4294901760
    %1191 = vmatprep.subr.mxu0 %v1190
    %v1192 = vand.u32 %v54, 4294901760
    %v1193 = vsub.f32 %v54, %v1192
    %v1194 = vand.u32 %v1193, 4294901760
    %1195 = vmatpush1.msra.mxu0 %v1194
    %v1196 = vand.u32 %v53, 4294901760
    %v1197 = vsub.f32 %v53, %v1196
    %v1198 = vand.u32 %v1197, 4294901760
    %1199 = vmatprep.subr.mxu0 %v1198
    %v1200 = vand.u32 %v52, 4294901760
    %v1201 = vsub.f32 %v52, %v1200
    %v1202 = vand.u32 %v1201, 4294901760
    %1203 = vmatpush1.msra.mxu0 %v1202
    %v1204 = vand.u32 %v51, 4294901760
    %v1205 = vsub.f32 %v51, %v1204
    %v1206 = vand.u32 %v1205, 4294901760
    %1207 = vmatprep.subr.mxu0 %v1206
    %v1208 = vand.u32 %v50, 4294901760
    %v1209 = vsub.f32 %v50, %v1208
    %v1210 = vand.u32 %v1209, 4294901760
    %1211 = vmatpush1.msra.mxu0 %v1210
    %v1212 = vand.u32 %v49, 4294901760
    %v1213 = vsub.f32 %v49, %v1212
    %v1214 = vand.u32 %v1213, 4294901760
    %1215 = vmatprep.subr.mxu0 %v1214
    %v1216 = vand.u32 %v48, 4294901760
    %v1217 = vsub.f32 %v48, %v1216
    %v1218 = vand.u32 %v1217, 4294901760
    %1219 = vmatpush1.msra.mxu0 %v1218
    %v1220 = vand.u32 %v47, 4294901760
    %v1221 = vsub.f32 %v47, %v1220
    %v1222 = vand.u32 %v1221, 4294901760
    %1223 = vmatprep.subr.mxu0 %v1222
    %v1224 = vand.u32 %v46, 4294901760
    %v1225 = vsub.f32 %v46, %v1224
    %v1226 = vand.u32 %v1225, 4294901760
    %1227 = vmatpush1.msra.mxu0 %v1226
    %v1228 = vand.u32 %v109, 4294901760
    %v1229 = vsub.f32 %v109, %v1228
    %v1230 = vand.u32 %v1229, 4294901760
    %1231 = vmatprep.subr.mxu0 %v1230
    %v1232 = vand.u32 %v108, 4294901760
    %v1233 = vsub.f32 %v108, %v1232
    %v1234 = vand.u32 %v1233, 4294901760
    %1235 = vmatpush2.msra.mxu0 %v1234
    %v1236 = vand.u32 %v107, 4294901760
    %v1237 = vsub.f32 %v107, %v1236
    %v1238 = vand.u32 %v1237, 4294901760
    %1239 = vmatprep.subr.mxu0 %v1238
    %v1240 = vand.u32 %v106, 4294901760
    %v1241 = vsub.f32 %v106, %v1240
    %v1242 = vand.u32 %v1241, 4294901760
    %1243 = vmatpush2.msra.mxu0 %v1242
    %v1244 = vand.u32 %v105, 4294901760
    %v1245 = vsub.f32 %v105, %v1244
    %v1246 = vand.u32 %v1245, 4294901760
    %1247 = vmatprep.subr.mxu0 %v1246
    %v1248 = vand.u32 %v104, 4294901760
    %v1249 = vsub.f32 %v104, %v1248
    %v1250 = vand.u32 %v1249, 4294901760
    %1251 = vmatpush2.msra.mxu0 %v1250
    %v1252 = vand.u32 %v103, 4294901760
    %v1253 = vsub.f32 %v103, %v1252
    %v1254 = vand.u32 %v1253, 4294901760
    %1255 = vmatprep.subr.mxu0 %v1254
    %v1256 = vand.u32 %v102, 4294901760
    %v1257 = vsub.f32 %v102, %v1256
    %v1258 = vand.u32 %v1257, 4294901760
    %1259 = vmatpush2.msra.mxu0 %v1258
    %v1260 = vand.u32 %v101, 4294901760
    %v1261 = vsub.f32 %v101, %v1260
    %v1262 = vand.u32 %v1261, 4294901760
    %1263 = vmatprep.subr.mxu0 %v1262
    %v1264 = vand.u32 %v100, 4294901760
    %v1265 = vsub.f32 %v100, %v1264
    %v1266 = vand.u32 %v1265, 4294901760
    %1267 = vmatpush2.msra.mxu0 %v1266
    %v1268 = vand.u32 %v99, 4294901760
    %v1269 = vsub.f32 %v99, %v1268
    %v1270 = vand.u32 %v1269, 4294901760
    %1271 = vmatprep.subr.mxu0 %v1270
    %v1272 = vand.u32 %v98, 4294901760
    %v1273 = vsub.f32 %v98, %v1272
    %v1274 = vand.u32 %v1273, 4294901760
    %1275 = vmatpush2.msra.mxu0 %v1274
    %v1276 = vand.u32 %v97, 4294901760
    %v1277 = vsub.f32 %v97, %v1276
    %v1278 = vand.u32 %v1277, 4294901760
    %1279 = vmatprep.subr.mxu0 %v1278
    %v1280 = vand.u32 %v96, 4294901760
    %v1281 = vsub.f32 %v96, %v1280
    %v1282 = vand.u32 %v1281, 4294901760
    %1283 = vmatpush2.msra.mxu0 %v1282
    %v1284 = vand.u32 %v95, 4294901760
    %v1285 = vsub.f32 %v95, %v1284
    %v1286 = vand.u32 %v1285, 4294901760
    %1287 = vmatprep.subr.mxu0 %v1286
    %v1288 = vand.u32 %v94, 4294901760
    %v1289 = vsub.f32 %v94, %v1288
    %v1290 = vand.u32 %v1289, 4294901760
    %1291 = vmatpush2.msra.mxu0 %v1290
    %v1292 = vand.u32 %v93, 4294901760
    %v1293 = vsub.f32 %v93, %v1292
    %v1294 = vand.u32 %v1293, 4294901760
    %1295 = vmatprep.subr.mxu0 %v1294
    %v1296 = vand.u32 %v92, 4294901760
    %v1297 = vsub.f32 %v92, %v1296
    %v1298 = vand.u32 %v1297, 4294901760
    %1299 = vmatpush2.msra.mxu0 %v1298
    %v1300 = vand.u32 %v91, 4294901760
    %v1301 = vsub.f32 %v91, %v1300
    %v1302 = vand.u32 %v1301, 4294901760
    %1303 = vmatprep.subr.mxu0 %v1302
    %v1304 = vand.u32 %v90, 4294901760
    %v1305 = vsub.f32 %v90, %v1304
    %v1306 = vand.u32 %v1305, 4294901760
    %1307 = vmatpush2.msra.mxu0 %v1306
    %v1308 = vand.u32 %v89, 4294901760
    %v1309 = vsub.f32 %v89, %v1308
    %v1310 = vand.u32 %v1309, 4294901760
    %1311 = vmatprep.subr.mxu0 %v1310
    %v1312 = vand.u32 %v88, 4294901760
    %v1313 = vsub.f32 %v88, %v1312
    %v1314 = vand.u32 %v1313, 4294901760
    %1315 = vmatpush2.msra.mxu0 %v1314
    %v1316 = vand.u32 %v87, 4294901760
    %v1317 = vsub.f32 %v87, %v1316
    %v1318 = vand.u32 %v1317, 4294901760
    %1319 = vmatprep.subr.mxu0 %v1318
    %v1320 = vand.u32 %v86, 4294901760
    %v1321 = vsub.f32 %v86, %v1320
    %v1322 = vand.u32 %v1321, 4294901760
    %1323 = vmatpush2.msra.mxu0 %v1322
    %v1324 = vand.u32 %v85, 4294901760
    %v1325 = vsub.f32 %v85, %v1324
    %v1326 = vand.u32 %v1325, 4294901760
    %1327 = vmatprep.subr.mxu0 %v1326
    %v1328 = vand.u32 %v84, 4294901760
    %v1329 = vsub.f32 %v84, %v1328
    %v1330 = vand.u32 %v1329, 4294901760
    %1331 = vmatpush2.msra.mxu0 %v1330
    %v1332 = vand.u32 %v83, 4294901760
    %v1333 = vsub.f32 %v83, %v1332
    %v1334 = vand.u32 %v1333, 4294901760
    %1335 = vmatprep.subr.mxu0 %v1334
    %v1336 = vand.u32 %v82, 4294901760
    %v1337 = vsub.f32 %v82, %v1336
    %v1338 = vand.u32 %v1337, 4294901760
    %1339 = vmatpush2.msra.mxu0 %v1338
    %v1340 = vand.u32 %v81, 4294901760
    %v1341 = vsub.f32 %v81, %v1340
    %v1342 = vand.u32 %v1341, 4294901760
    %1343 = vmatprep.subr.mxu0 %v1342
    %v1344 = vand.u32 %v80, 4294901760
    %v1345 = vsub.f32 %v80, %v1344
    %v1346 = vand.u32 %v1345, 4294901760
    %1347 = vmatpush2.msra.mxu0 %v1346
    %v1348 = vand.u32 %v79, 4294901760
    %v1349 = vsub.f32 %v79, %v1348
    %v1350 = vand.u32 %v1349, 4294901760
    %1351 = vmatprep.subr.mxu0 %v1350
    %v1352 = vand.u32 %v78, 4294901760
    %v1353 = vsub.f32 %v78, %v1352
    %v1354 = vand.u32 %v1353, 4294901760
    %1355 = vmatpush2.msra.mxu0 %v1354
    %v1356 = vand.u32 %v42, 4294901760
    %1357 = vmatprep.mubr.f32.mxu0 %v1356
    %v1358 = vand.u32 %v41, 4294901760
    %1359 = vmatmul.mubr.f32.gmra.mxu0 %v1358
    %v1360 = vpop.f32.mrf.mxu0
    %v1361 = vadd.f32 %v1096, %v1360
    %v1362 = vpop.f32.mrf.mxu0
    %v1363 = vadd.f32 %v1098, %v1362
    %1364 = vdwg.mxu0
    %v1365 = vand.u32 %v77, 4294901760
    %1366 = vmatprep.subr.mxu0 %v1365
    %v1367 = vand.u32 %v76, 4294901760
    %1368 = vmatpush1.msra.mxu0 %v1367
    %v1369 = vand.u32 %v75, 4294901760
    %1370 = vmatprep.subr.mxu0 %v1369
    %v1371 = vand.u32 %v74, 4294901760
    %1372 = vmatpush1.msra.mxu0 %v1371
    %v1373 = vand.u32 %v73, 4294901760
    %1374 = vmatprep.subr.mxu0 %v1373
    %v1375 = vand.u32 %v72, 4294901760
    %1376 = vmatpush1.msra.mxu0 %v1375
    %v1377 = vand.u32 %v71, 4294901760
    %1378 = vmatprep.subr.mxu0 %v1377
    %v1379 = vand.u32 %v70, 4294901760
    %1380 = vmatpush1.msra.mxu0 %v1379
    %v1381 = vand.u32 %v69, 4294901760
    %1382 = vmatprep.subr.mxu0 %v1381
    %v1383 = vand.u32 %v68, 4294901760
    %1384 = vmatpush1.msra.mxu0 %v1383
    %v1385 = vand.u32 %v67, 4294901760
    %1386 = vmatprep.subr.mxu0 %v1385
    %v1387 = vand.u32 %v66, 4294901760
    %1388 = vmatpush1.msra.mxu0 %v1387
    %v1389 = vand.u32 %v65, 4294901760
    %1390 = vmatprep.subr.mxu0 %v1389
    %v1391 = vand.u32 %v64, 4294901760
    %1392 = vmatpush1.msra.mxu0 %v1391
    %v1393 = vand.u32 %v63, 4294901760
    %1394 = vmatprep.subr.mxu0 %v1393
    %v1395 = vand.u32 %v62, 4294901760
    %1396 = vmatpush1.msra.mxu0 %v1395
    %v1397 = vand.u32 %v61, 4294901760
    %1398 = vmatprep.subr.mxu0 %v1397
    %v1399 = vand.u32 %v60, 4294901760
    %1400 = vmatpush1.msra.mxu0 %v1399
    %v1401 = vand.u32 %v59, 4294901760
    %1402 = vmatprep.subr.mxu0 %v1401
    %v1403 = vand.u32 %v58, 4294901760
    %1404 = vmatpush1.msra.mxu0 %v1403
    %v1405 = vand.u32 %v57, 4294901760
    %1406 = vmatprep.subr.mxu0 %v1405
    %v1407 = vand.u32 %v56, 4294901760
    %1408 = vmatpush1.msra.mxu0 %v1407
    %v1409 = vand.u32 %v55, 4294901760
    %1410 = vmatprep.subr.mxu0 %v1409
    %v1411 = vand.u32 %v54, 4294901760
    %1412 = vmatpush1.msra.mxu0 %v1411
    %v1413 = vand.u32 %v53, 4294901760
    %1414 = vmatprep.subr.mxu0 %v1413
    %v1415 = vand.u32 %v52, 4294901760
    %1416 = vmatpush1.msra.mxu0 %v1415
    %v1417 = vand.u32 %v51, 4294901760
    %1418 = vmatprep.subr.mxu0 %v1417
    %v1419 = vand.u32 %v50, 4294901760
    %1420 = vmatpush1.msra.mxu0 %v1419
    %v1421 = vand.u32 %v49, 4294901760
    %1422 = vmatprep.subr.mxu0 %v1421
    %v1423 = vand.u32 %v48, 4294901760
    %1424 = vmatpush1.msra.mxu0 %v1423
    %v1425 = vand.u32 %v47, 4294901760
    %1426 = vmatprep.subr.mxu0 %v1425
    %v1427 = vand.u32 %v46, 4294901760
    %1428 = vmatpush1.msra.mxu0 %v1427
    %v1429 = vand.u32 %v109, 4294901760
    %1430 = vmatprep.subr.mxu0 %v1429
    %v1431 = vand.u32 %v108, 4294901760
    %1432 = vmatpush2.msra.mxu0 %v1431
    %v1433 = vand.u32 %v107, 4294901760
    %1434 = vmatprep.subr.mxu0 %v1433
    %v1435 = vand.u32 %v106, 4294901760
    %1436 = vmatpush2.msra.mxu0 %v1435
    %v1437 = vand.u32 %v105, 4294901760
    %1438 = vmatprep.subr.mxu0 %v1437
    %v1439 = vand.u32 %v104, 4294901760
    %1440 = vmatpush2.msra.mxu0 %v1439
    %v1441 = vand.u32 %v103, 4294901760
    %1442 = vmatprep.subr.mxu0 %v1441
    %v1443 = vand.u32 %v102, 4294901760
    %1444 = vmatpush2.msra.mxu0 %v1443
    %v1445 = vand.u32 %v101, 4294901760
    %1446 = vmatprep.subr.mxu0 %v1445
    %v1447 = vand.u32 %v100, 4294901760
    %1448 = vmatpush2.msra.mxu0 %v1447
    %v1449 = vand.u32 %v99, 4294901760
    %1450 = vmatprep.subr.mxu0 %v1449
    %v1451 = vand.u32 %v98, 4294901760
    %1452 = vmatpush2.msra.mxu0 %v1451
    %v1453 = vand.u32 %v97, 4294901760
    %1454 = vmatprep.subr.mxu0 %v1453
    %v1455 = vand.u32 %v96, 4294901760
    %1456 = vmatpush2.msra.mxu0 %v1455
    %v1457 = vand.u32 %v95, 4294901760
    %1458 = vmatprep.subr.mxu0 %v1457
    %v1459 = vand.u32 %v94, 4294901760
    %1460 = vmatpush2.msra.mxu0 %v1459
    %v1461 = vand.u32 %v93, 4294901760
    %1462 = vmatprep.subr.mxu0 %v1461
    %v1463 = vand.u32 %v92, 4294901760
    %1464 = vmatpush2.msra.mxu0 %v1463
    %v1465 = vand.u32 %v91, 4294901760
    %1466 = vmatprep.subr.mxu0 %v1465
    %v1467 = vand.u32 %v90, 4294901760
    %1468 = vmatpush2.msra.mxu0 %v1467
    %v1469 = vand.u32 %v89, 4294901760
    %1470 = vmatprep.subr.mxu0 %v1469
    %v1471 = vand.u32 %v88, 4294901760
    %1472 = vmatpush2.msra.mxu0 %v1471
    %v1473 = vand.u32 %v87, 4294901760
    %1474 = vmatprep.subr.mxu0 %v1473
    %v1475 = vand.u32 %v86, 4294901760
    %1476 = vmatpush2.msra.mxu0 %v1475
    %v1477 = vand.u32 %v85, 4294901760
    %1478 = vmatprep.subr.mxu0 %v1477
    %v1479 = vand.u32 %v84, 4294901760
    %1480 = vmatpush2.msra.mxu0 %v1479
    %v1481 = vand.u32 %v83, 4294901760
    %1482 = vmatprep.subr.mxu0 %v1481
    %v1483 = vand.u32 %v82, 4294901760
    %1484 = vmatpush2.msra.mxu0 %v1483
    %v1485 = vand.u32 %v81, 4294901760
    %1486 = vmatprep.subr.mxu0 %v1485
    %v1487 = vand.u32 %v80, 4294901760
    %1488 = vmatpush2.msra.mxu0 %v1487
    %v1489 = vand.u32 %v79, 4294901760
    %1490 = vmatprep.subr.mxu0 %v1489
    %v1491 = vand.u32 %v78, 4294901760
    %1492 = vmatpush2.msra.mxu0 %v1491
    %v1493 = vand.u32 %v42, 4294901760
    %1494 = vmatprep.mubr.f32.mxu0 %v1493
    %v1495 = vand.u32 %v41, 4294901760
    %1496 = vmatmul.mubr.f32.gmra.mxu0 %v1495
    %v1497 = vpop.f32.mrf.mxu0
    %v1498 = vadd.f32 %v1361, %v1497
    %v1499 = vpop.f32.mrf.mxu0
    %v1500 = vadd.f32 %v1363, %v1499
    %1501 = vdwg.mxu0
    %v1502 = vand.u32 %v141, 4294901760
    %1503 = vmatprep.subr.mxu0 %v1502
    %v1504 = vand.u32 %v140, 4294901760
    %1505 = vmatpush1.msra.mxu0 %v1504
    %v1506 = vand.u32 %v139, 4294901760
    %1507 = vmatprep.subr.mxu0 %v1506
    %v1508 = vand.u32 %v138, 4294901760
    %1509 = vmatpush1.msra.mxu0 %v1508
    %v1510 = vand.u32 %v137, 4294901760
    %1511 = vmatprep.subr.mxu0 %v1510
    %v1512 = vand.u32 %v136, 4294901760
    %1513 = vmatpush1.msra.mxu0 %v1512
    %v1514 = vand.u32 %v135, 4294901760
    %1515 = vmatprep.subr.mxu0 %v1514
    %v1516 = vand.u32 %v134, 4294901760
    %1517 = vmatpush1.msra.mxu0 %v1516
    %v1518 = vand.u32 %v133, 4294901760
    %1519 = vmatprep.subr.mxu0 %v1518
    %v1520 = vand.u32 %v132, 4294901760
    %1521 = vmatpush1.msra.mxu0 %v1520
    %v1522 = vand.u32 %v131, 4294901760
    %1523 = vmatprep.subr.mxu0 %v1522
    %v1524 = vand.u32 %v130, 4294901760
    %1525 = vmatpush1.msra.mxu0 %v1524
    %v1526 = vand.u32 %v129, 4294901760
    %1527 = vmatprep.subr.mxu0 %v1526
    %v1528 = vand.u32 %v128, 4294901760
    %1529 = vmatpush1.msra.mxu0 %v1528
    %v1530 = vand.u32 %v127, 4294901760
    %1531 = vmatprep.subr.mxu0 %v1530
    %v1532 = vand.u32 %v126, 4294901760
    %1533 = vmatpush1.msra.mxu0 %v1532
    %v1534 = vand.u32 %v125, 4294901760
    %1535 = vmatprep.subr.mxu0 %v1534
    %v1536 = vand.u32 %v124, 4294901760
    %1537 = vmatpush1.msra.mxu0 %v1536
    %v1538 = vand.u32 %v123, 4294901760
    %1539 = vmatprep.subr.mxu0 %v1538
    %v1540 = vand.u32 %v122, 4294901760
    %1541 = vmatpush1.msra.mxu0 %v1540
    %v1542 = vand.u32 %v121, 4294901760
    %1543 = vmatprep.subr.mxu0 %v1542
    %v1544 = vand.u32 %v120, 4294901760
    %1545 = vmatpush1.msra.mxu0 %v1544
    %v1546 = vand.u32 %v119, 4294901760
    %1547 = vmatprep.subr.mxu0 %v1546
    %v1548 = vand.u32 %v118, 4294901760
    %1549 = vmatpush1.msra.mxu0 %v1548
    %v1550 = vand.u32 %v117, 4294901760
    %1551 = vmatprep.subr.mxu0 %v1550
    %v1552 = vand.u32 %v116, 4294901760
    %1553 = vmatpush1.msra.mxu0 %v1552
    %v1554 = vand.u32 %v115, 4294901760
    %1555 = vmatprep.subr.mxu0 %v1554
    %v1556 = vand.u32 %v114, 4294901760
    %1557 = vmatpush1.msra.mxu0 %v1556
    %v1558 = vand.u32 %v113, 4294901760
    %1559 = vmatprep.subr.mxu0 %v1558
    %v1560 = vand.u32 %v112, 4294901760
    %1561 = vmatpush1.msra.mxu0 %v1560
    %v1562 = vand.u32 %v111, 4294901760
    %1563 = vmatprep.subr.mxu0 %v1562
    %v1564 = vand.u32 %v110, 4294901760
    %1565 = vmatpush1.msra.mxu0 %v1564
    %v1566 = vand.u32 %v173, 4294901760
    %1567 = vmatprep.subr.mxu0 %v1566
    %v1568 = vand.u32 %v172, 4294901760
    %1569 = vmatpush2.msra.mxu0 %v1568
    %v1570 = vand.u32 %v171, 4294901760
    %1571 = vmatprep.subr.mxu0 %v1570
    %v1572 = vand.u32 %v170, 4294901760
    %1573 = vmatpush2.msra.mxu0 %v1572
    %v1574 = vand.u32 %v169, 4294901760
    %1575 = vmatprep.subr.mxu0 %v1574
    %v1576 = vand.u32 %v168, 4294901760
    %1577 = vmatpush2.msra.mxu0 %v1576
    %v1578 = vand.u32 %v167, 4294901760
    %1579 = vmatprep.subr.mxu0 %v1578
    %v1580 = vand.u32 %v166, 4294901760
    %1581 = vmatpush2.msra.mxu0 %v1580
    %v1582 = vand.u32 %v165, 4294901760
    %1583 = vmatprep.subr.mxu0 %v1582
    %v1584 = vand.u32 %v164, 4294901760
    %1585 = vmatpush2.msra.mxu0 %v1584
    %v1586 = vand.u32 %v163, 4294901760
    %1587 = vmatprep.subr.mxu0 %v1586
    %v1588 = vand.u32 %v162, 4294901760
    %1589 = vmatpush2.msra.mxu0 %v1588
    %v1590 = vand.u32 %v161, 4294901760
    %1591 = vmatprep.subr.mxu0 %v1590
    %v1592 = vand.u32 %v160, 4294901760
    %1593 = vmatpush2.msra.mxu0 %v1592
    %v1594 = vand.u32 %v159, 4294901760
    %1595 = vmatprep.subr.mxu0 %v1594
    %v1596 = vand.u32 %v158, 4294901760
    %1597 = vmatpush2.msra.mxu0 %v1596
    %v1598 = vand.u32 %v157, 4294901760
    %1599 = vmatprep.subr.mxu0 %v1598
    %v1600 = vand.u32 %v156, 4294901760
    %1601 = vmatpush2.msra.mxu0 %v1600
    %v1602 = vand.u32 %v155, 4294901760
    %1603 = vmatprep.subr.mxu0 %v1602
    %v1604 = vand.u32 %v154, 4294901760
    %1605 = vmatpush2.msra.mxu0 %v1604
    %v1606 = vand.u32 %v153, 4294901760
    %1607 = vmatprep.subr.mxu0 %v1606
    %v1608 = vand.u32 %v152, 4294901760
    %1609 = vmatpush2.msra.mxu0 %v1608
    %v1610 = vand.u32 %v151, 4294901760
    %1611 = vmatprep.subr.mxu0 %v1610
    %v1612 = vand.u32 %v150, 4294901760
    %1613 = vmatpush2.msra.mxu0 %v1612
    %v1614 = vand.u32 %v149, 4294901760
    %1615 = vmatprep.subr.mxu0 %v1614
    %v1616 = vand.u32 %v148, 4294901760
    %1617 = vmatpush2.msra.mxu0 %v1616
    %v1618 = vand.u32 %v147, 4294901760
    %1619 = vmatprep.subr.mxu0 %v1618
    %v1620 = vand.u32 %v146, 4294901760
    %1621 = vmatpush2.msra.mxu0 %v1620
    %v1622 = vand.u32 %v145, 4294901760
    %1623 = vmatprep.subr.mxu0 %v1622
    %v1624 = vand.u32 %v144, 4294901760
    %1625 = vmatpush2.msra.mxu0 %v1624
    %v1626 = vand.u32 %v143, 4294901760
    %1627 = vmatprep.subr.mxu0 %v1626
    %v1628 = vand.u32 %v142, 4294901760
    %1629 = vmatpush2.msra.mxu0 %v1628
    %v1630 = vand.u32 %v44, 4294901760
    %v1631 = vsub.f32 %v44, %v1630
    %v1632 = vand.u32 %v1631, 4294901760
    %v1633 = vsub.f32 %v1631, %v1632
    %v1634 = vand.u32 %v1633, 4294901760
    %1635 = vmatprep.mubr.f32.mxu0 %v1634
    %v1636 = vand.u32 %v43, 4294901760
    %v1637 = vsub.f32 %v43, %v1636
    %v1638 = vand.u32 %v1637, 4294901760
    %v1639 = vsub.f32 %v1637, %v1638
    %v1640 = vand.u32 %v1639, 4294901760
    %1641 = vmatmul.mubr.f32.gmra.mxu0 %v1640
    %v1642 = vpop.f32.mrf.mxu0
    %v1643 = vadd.f32 %v1498, %v1642
    %v1644 = vpop.f32.mrf.mxu0
    %v1645 = vadd.f32 %v1500, %v1644
    %1646 = vdwg.mxu0
    %v1647 = vand.u32 %v141, 4294901760
    %v1648 = vsub.f32 %v141, %v1647
    %v1649 = vand.u32 %v1648, 4294901760
    %v1650 = vsub.f32 %v1648, %v1649
    %v1651 = vand.u32 %v1650, 4294901760
    %1652 = vmatprep.subr.mxu0 %v1651
    %v1653 = vand.u32 %v140, 4294901760
    %v1654 = vsub.f32 %v140, %v1653
    %v1655 = vand.u32 %v1654, 4294901760
    %v1656 = vsub.f32 %v1654, %v1655
    %v1657 = vand.u32 %v1656, 4294901760
    %1658 = vmatpush1.msra.mxu0 %v1657
    %v1659 = vand.u32 %v139, 4294901760
    %v1660 = vsub.f32 %v139, %v1659
    %v1661 = vand.u32 %v1660, 4294901760
    %v1662 = vsub.f32 %v1660, %v1661
    %v1663 = vand.u32 %v1662, 4294901760
    %1664 = vmatprep.subr.mxu0 %v1663
    %v1665 = vand.u32 %v138, 4294901760
    %v1666 = vsub.f32 %v138, %v1665
    %v1667 = vand.u32 %v1666, 4294901760
    %v1668 = vsub.f32 %v1666, %v1667
    %v1669 = vand.u32 %v1668, 4294901760
    %1670 = vmatpush1.msra.mxu0 %v1669
    %v1671 = vand.u32 %v137, 4294901760
    %v1672 = vsub.f32 %v137, %v1671
    %v1673 = vand.u32 %v1672, 4294901760
    %v1674 = vsub.f32 %v1672, %v1673
    %v1675 = vand.u32 %v1674, 4294901760
    %1676 = vmatprep.subr.mxu0 %v1675
    %v1677 = vand.u32 %v136, 4294901760
    %v1678 = vsub.f32 %v136, %v1677
    %v1679 = vand.u32 %v1678, 4294901760
    %v1680 = vsub.f32 %v1678, %v1679
    %v1681 = vand.u32 %v1680, 4294901760
    %1682 = vmatpush1.msra.mxu0 %v1681
    %v1683 = vand.u32 %v135, 4294901760
    %v1684 = vsub.f32 %v135, %v1683
    %v1685 = vand.u32 %v1684, 4294901760
    %v1686 = vsub.f32 %v1684, %v1685
    %v1687 = vand.u32 %v1686, 4294901760
    %1688 = vmatprep.subr.mxu0 %v1687
    %v1689 = vand.u32 %v134, 4294901760
    %v1690 = vsub.f32 %v134, %v1689
    %v1691 = vand.u32 %v1690, 4294901760
    %v1692 = vsub.f32 %v1690, %v1691
    %v1693 = vand.u32 %v1692, 4294901760
    %1694 = vmatpush1.msra.mxu0 %v1693
    %v1695 = vand.u32 %v133, 4294901760
    %v1696 = vsub.f32 %v133, %v1695
    %v1697 = vand.u32 %v1696, 4294901760
    %v1698 = vsub.f32 %v1696, %v1697
    %v1699 = vand.u32 %v1698, 4294901760
    %1700 = vmatprep.subr.mxu0 %v1699
    %v1701 = vand.u32 %v132, 4294901760
    %v1702 = vsub.f32 %v132, %v1701
    %v1703 = vand.u32 %v1702, 4294901760
    %v1704 = vsub.f32 %v1702, %v1703
    %v1705 = vand.u32 %v1704, 4294901760
    %1706 = vmatpush1.msra.mxu0 %v1705
    %v1707 = vand.u32 %v131, 4294901760
    %v1708 = vsub.f32 %v131, %v1707
    %v1709 = vand.u32 %v1708, 4294901760
    %v1710 = vsub.f32 %v1708, %v1709
    %v1711 = vand.u32 %v1710, 4294901760
    %1712 = vmatprep.subr.mxu0 %v1711
    %v1713 = vand.u32 %v130, 4294901760
    %v1714 = vsub.f32 %v130, %v1713
    %v1715 = vand.u32 %v1714, 4294901760
    %v1716 = vsub.f32 %v1714, %v1715
    %v1717 = vand.u32 %v1716, 4294901760
    %1718 = vmatpush1.msra.mxu0 %v1717
    %v1719 = vand.u32 %v129, 4294901760
    %v1720 = vsub.f32 %v129, %v1719
    %v1721 = vand.u32 %v1720, 4294901760
    %v1722 = vsub.f32 %v1720, %v1721
    %v1723 = vand.u32 %v1722, 4294901760
    %1724 = vmatprep.subr.mxu0 %v1723
    %v1725 = vand.u32 %v128, 4294901760
    %v1726 = vsub.f32 %v128, %v1725
    %v1727 = vand.u32 %v1726, 4294901760
    %v1728 = vsub.f32 %v1726, %v1727
    %v1729 = vand.u32 %v1728, 4294901760
    %1730 = vmatpush1.msra.mxu0 %v1729
    %v1731 = vand.u32 %v127, 4294901760
    %v1732 = vsub.f32 %v127, %v1731
    %v1733 = vand.u32 %v1732, 4294901760
    %v1734 = vsub.f32 %v1732, %v1733
    %v1735 = vand.u32 %v1734, 4294901760
    %1736 = vmatprep.subr.mxu0 %v1735
    %v1737 = vand.u32 %v126, 4294901760
    %v1738 = vsub.f32 %v126, %v1737
    %v1739 = vand.u32 %v1738, 4294901760
    %v1740 = vsub.f32 %v1738, %v1739
    %v1741 = vand.u32 %v1740, 4294901760
    %1742 = vmatpush1.msra.mxu0 %v1741
    %v1743 = vand.u32 %v125, 4294901760
    %v1744 = vsub.f32 %v125, %v1743
    %v1745 = vand.u32 %v1744, 4294901760
    %v1746 = vsub.f32 %v1744, %v1745
    %v1747 = vand.u32 %v1746, 4294901760
    %1748 = vmatprep.subr.mxu0 %v1747
    %v1749 = vand.u32 %v124, 4294901760
    %v1750 = vsub.f32 %v124, %v1749
    %v1751 = vand.u32 %v1750, 4294901760
    %v1752 = vsub.f32 %v1750, %v1751
    %v1753 = vand.u32 %v1752, 4294901760
    %1754 = vmatpush1.msra.mxu0 %v1753
    %v1755 = vand.u32 %v123, 4294901760
    %v1756 = vsub.f32 %v123, %v1755
    %v1757 = vand.u32 %v1756, 4294901760
    %v1758 = vsub.f32 %v1756, %v1757
    %v1759 = vand.u32 %v1758, 4294901760
    %1760 = vmatprep.subr.mxu0 %v1759
    %v1761 = vand.u32 %v122, 4294901760
    %v1762 = vsub.f32 %v122, %v1761
    %v1763 = vand.u32 %v1762, 4294901760
    %v1764 = vsub.f32 %v1762, %v1763
    %v1765 = vand.u32 %v1764, 4294901760
    %1766 = vmatpush1.msra.mxu0 %v1765
    %v1767 = vand.u32 %v121, 4294901760
    %v1768 = vsub.f32 %v121, %v1767
    %v1769 = vand.u32 %v1768, 4294901760
    %v1770 = vsub.f32 %v1768, %v1769
    %v1771 = vand.u32 %v1770, 4294901760
    %1772 = vmatprep.subr.mxu0 %v1771
    %v1773 = vand.u32 %v120, 4294901760
    %v1774 = vsub.f32 %v120, %v1773
    %v1775 = vand.u32 %v1774, 4294901760
    %v1776 = vsub.f32 %v1774, %v1775
    %v1777 = vand.u32 %v1776, 4294901760
    %1778 = vmatpush1.msra.mxu0 %v1777
    %v1779 = vand.u32 %v119, 4294901760
    %v1780 = vsub.f32 %v119, %v1779
    %v1781 = vand.u32 %v1780, 4294901760
    %v1782 = vsub.f32 %v1780, %v1781
    %v1783 = vand.u32 %v1782, 4294901760
    %1784 = vmatprep.subr.mxu0 %v1783
    %v1785 = vand.u32 %v118, 4294901760
    %v1786 = vsub.f32 %v118, %v1785
    %v1787 = vand.u32 %v1786, 4294901760
    %v1788 = vsub.f32 %v1786, %v1787
    %v1789 = vand.u32 %v1788, 4294901760
    %1790 = vmatpush1.msra.mxu0 %v1789
    %v1791 = vand.u32 %v117, 4294901760
    %v1792 = vsub.f32 %v117, %v1791
    %v1793 = vand.u32 %v1792, 4294901760
    %v1794 = vsub.f32 %v1792, %v1793
    %v1795 = vand.u32 %v1794, 4294901760
    %1796 = vmatprep.subr.mxu0 %v1795
    %v1797 = vand.u32 %v116, 4294901760
    %v1798 = vsub.f32 %v116, %v1797
    %v1799 = vand.u32 %v1798, 4294901760
    %v1800 = vsub.f32 %v1798, %v1799
    %v1801 = vand.u32 %v1800, 4294901760
    %1802 = vmatpush1.msra.mxu0 %v1801
    %v1803 = vand.u32 %v115, 4294901760
    %v1804 = vsub.f32 %v115, %v1803
    %v1805 = vand.u32 %v1804, 4294901760
    %v1806 = vsub.f32 %v1804, %v1805
    %v1807 = vand.u32 %v1806, 4294901760
    %1808 = vmatprep.subr.mxu0 %v1807
    %v1809 = vand.u32 %v114, 4294901760
    %v1810 = vsub.f32 %v114, %v1809
    %v1811 = vand.u32 %v1810, 4294901760
    %v1812 = vsub.f32 %v1810, %v1811
    %v1813 = vand.u32 %v1812, 4294901760
    %1814 = vmatpush1.msra.mxu0 %v1813
    %v1815 = vand.u32 %v113, 4294901760
    %v1816 = vsub.f32 %v113, %v1815
    %v1817 = vand.u32 %v1816, 4294901760
    %v1818 = vsub.f32 %v1816, %v1817
    %v1819 = vand.u32 %v1818, 4294901760
    %1820 = vmatprep.subr.mxu0 %v1819
    %v1821 = vand.u32 %v112, 4294901760
    %v1822 = vsub.f32 %v112, %v1821
    %v1823 = vand.u32 %v1822, 4294901760
    %v1824 = vsub.f32 %v1822, %v1823
    %v1825 = vand.u32 %v1824, 4294901760
    %1826 = vmatpush1.msra.mxu0 %v1825
    %v1827 = vand.u32 %v111, 4294901760
    %v1828 = vsub.f32 %v111, %v1827
    %v1829 = vand.u32 %v1828, 4294901760
    %v1830 = vsub.f32 %v1828, %v1829
    %v1831 = vand.u32 %v1830, 4294901760
    %1832 = vmatprep.subr.mxu0 %v1831
    %v1833 = vand.u32 %v110, 4294901760
    %v1834 = vsub.f32 %v110, %v1833
    %v1835 = vand.u32 %v1834, 4294901760
    %v1836 = vsub.f32 %v1834, %v1835
    %v1837 = vand.u32 %v1836, 4294901760
    %1838 = vmatpush1.msra.mxu0 %v1837
    %v1839 = vand.u32 %v173, 4294901760
    %v1840 = vsub.f32 %v173, %v1839
    %v1841 = vand.u32 %v1840, 4294901760
    %v1842 = vsub.f32 %v1840, %v1841
    %v1843 = vand.u32 %v1842, 4294901760
    %1844 = vmatprep.subr.mxu0 %v1843
    %v1845 = vand.u32 %v172, 4294901760
    %v1846 = vsub.f32 %v172, %v1845
    %v1847 = vand.u32 %v1846, 4294901760
    %v1848 = vsub.f32 %v1846, %v1847
    %v1849 = vand.u32 %v1848, 4294901760
    %1850 = vmatpush2.msra.mxu0 %v1849
    %v1851 = vand.u32 %v171, 4294901760
    %v1852 = vsub.f32 %v171, %v1851
    %v1853 = vand.u32 %v1852, 4294901760
    %v1854 = vsub.f32 %v1852, %v1853
    %v1855 = vand.u32 %v1854, 4294901760
    %1856 = vmatprep.subr.mxu0 %v1855
    %v1857 = vand.u32 %v170, 4294901760
    %v1858 = vsub.f32 %v170, %v1857
    %v1859 = vand.u32 %v1858, 4294901760
    %v1860 = vsub.f32 %v1858, %v1859
    %v1861 = vand.u32 %v1860, 4294901760
    %1862 = vmatpush2.msra.mxu0 %v1861
    %v1863 = vand.u32 %v169, 4294901760
    %v1864 = vsub.f32 %v169, %v1863
    %v1865 = vand.u32 %v1864, 4294901760
    %v1866 = vsub.f32 %v1864, %v1865
    %v1867 = vand.u32 %v1866, 4294901760
    %1868 = vmatprep.subr.mxu0 %v1867
    %v1869 = vand.u32 %v168, 4294901760
    %v1870 = vsub.f32 %v168, %v1869
    %v1871 = vand.u32 %v1870, 4294901760
    %v1872 = vsub.f32 %v1870, %v1871
    %v1873 = vand.u32 %v1872, 4294901760
    %1874 = vmatpush2.msra.mxu0 %v1873
    %v1875 = vand.u32 %v167, 4294901760
    %v1876 = vsub.f32 %v167, %v1875
    %v1877 = vand.u32 %v1876, 4294901760
    %v1878 = vsub.f32 %v1876, %v1877
    %v1879 = vand.u32 %v1878, 4294901760
    %1880 = vmatprep.subr.mxu0 %v1879
    %v1881 = vand.u32 %v166, 4294901760
    %v1882 = vsub.f32 %v166, %v1881
    %v1883 = vand.u32 %v1882, 4294901760
    %v1884 = vsub.f32 %v1882, %v1883
    %v1885 = vand.u32 %v1884, 4294901760
    %1886 = vmatpush2.msra.mxu0 %v1885
    %v1887 = vand.u32 %v165, 4294901760
    %v1888 = vsub.f32 %v165, %v1887
    %v1889 = vand.u32 %v1888, 4294901760
    %v1890 = vsub.f32 %v1888, %v1889
    %v1891 = vand.u32 %v1890, 4294901760
    %1892 = vmatprep.subr.mxu0 %v1891
    %v1893 = vand.u32 %v164, 4294901760
    %v1894 = vsub.f32 %v164, %v1893
    %v1895 = vand.u32 %v1894, 4294901760
    %v1896 = vsub.f32 %v1894, %v1895
    %v1897 = vand.u32 %v1896, 4294901760
    %1898 = vmatpush2.msra.mxu0 %v1897
    %v1899 = vand.u32 %v163, 4294901760
    %v1900 = vsub.f32 %v163, %v1899
    %v1901 = vand.u32 %v1900, 4294901760
    %v1902 = vsub.f32 %v1900, %v1901
    %v1903 = vand.u32 %v1902, 4294901760
    %1904 = vmatprep.subr.mxu0 %v1903
    %v1905 = vand.u32 %v162, 4294901760
    %v1906 = vsub.f32 %v162, %v1905
    %v1907 = vand.u32 %v1906, 4294901760
    %v1908 = vsub.f32 %v1906, %v1907
    %v1909 = vand.u32 %v1908, 4294901760
    %1910 = vmatpush2.msra.mxu0 %v1909
    %v1911 = vand.u32 %v161, 4294901760
    %v1912 = vsub.f32 %v161, %v1911
    %v1913 = vand.u32 %v1912, 4294901760
    %v1914 = vsub.f32 %v1912, %v1913
    %v1915 = vand.u32 %v1914, 4294901760
    %1916 = vmatprep.subr.mxu0 %v1915
    %v1917 = vand.u32 %v160, 4294901760
    %v1918 = vsub.f32 %v160, %v1917
    %v1919 = vand.u32 %v1918, 4294901760
    %v1920 = vsub.f32 %v1918, %v1919
    %v1921 = vand.u32 %v1920, 4294901760
    %1922 = vmatpush2.msra.mxu0 %v1921
    %v1923 = vand.u32 %v159, 4294901760
    %v1924 = vsub.f32 %v159, %v1923
    %v1925 = vand.u32 %v1924, 4294901760
    %v1926 = vsub.f32 %v1924, %v1925
    %v1927 = vand.u32 %v1926, 4294901760
    %1928 = vmatprep.subr.mxu0 %v1927
    %v1929 = vand.u32 %v158, 4294901760
    %v1930 = vsub.f32 %v158, %v1929
    %v1931 = vand.u32 %v1930, 4294901760
    %v1932 = vsub.f32 %v1930, %v1931
    %v1933 = vand.u32 %v1932, 4294901760
    %1934 = vmatpush2.msra.mxu0 %v1933
    %v1935 = vand.u32 %v157, 4294901760
    %v1936 = vsub.f32 %v157, %v1935
    %v1937 = vand.u32 %v1936, 4294901760
    %v1938 = vsub.f32 %v1936, %v1937
    %v1939 = vand.u32 %v1938, 4294901760
    %1940 = vmatprep.subr.mxu0 %v1939
    %v1941 = vand.u32 %v156, 4294901760
    %v1942 = vsub.f32 %v156, %v1941
    %v1943 = vand.u32 %v1942, 4294901760
    %v1944 = vsub.f32 %v1942, %v1943
    %v1945 = vand.u32 %v1944, 4294901760
    %1946 = vmatpush2.msra.mxu0 %v1945
    %v1947 = vand.u32 %v155, 4294901760
    %v1948 = vsub.f32 %v155, %v1947
    %v1949 = vand.u32 %v1948, 4294901760
    %v1950 = vsub.f32 %v1948, %v1949
    %v1951 = vand.u32 %v1950, 4294901760
    %1952 = vmatprep.subr.mxu0 %v1951
    %v1953 = vand.u32 %v154, 4294901760
    %v1954 = vsub.f32 %v154, %v1953
    %v1955 = vand.u32 %v1954, 4294901760
    %v1956 = vsub.f32 %v1954, %v1955
    %v1957 = vand.u32 %v1956, 4294901760
    %1958 = vmatpush2.msra.mxu0 %v1957
    %v1959 = vand.u32 %v153, 4294901760
    %v1960 = vsub.f32 %v153, %v1959
    %v1961 = vand.u32 %v1960, 4294901760
    %v1962 = vsub.f32 %v1960, %v1961
    %v1963 = vand.u32 %v1962, 4294901760
    %1964 = vmatprep.subr.mxu0 %v1963
    %v1965 = vand.u32 %v152, 4294901760
    %v1966 = vsub.f32 %v152, %v1965
    %v1967 = vand.u32 %v1966, 4294901760
    %v1968 = vsub.f32 %v1966, %v1967
    %v1969 = vand.u32 %v1968, 4294901760
    %1970 = vmatpush2.msra.mxu0 %v1969
    %v1971 = vand.u32 %v151, 4294901760
    %v1972 = vsub.f32 %v151, %v1971
    %v1973 = vand.u32 %v1972, 4294901760
    %v1974 = vsub.f32 %v1972, %v1973
    %v1975 = vand.u32 %v1974, 4294901760
    %1976 = vmatprep.subr.mxu0 %v1975
    %v1977 = vand.u32 %v150, 4294901760
    %v1978 = vsub.f32 %v150, %v1977
    %v1979 = vand.u32 %v1978, 4294901760
    %v1980 = vsub.f32 %v1978, %v1979
    %v1981 = vand.u32 %v1980, 4294901760
    %1982 = vmatpush2.msra.mxu0 %v1981
    %v1983 = vand.u32 %v149, 4294901760
    %v1984 = vsub.f32 %v149, %v1983
    %v1985 = vand.u32 %v1984, 4294901760
    %v1986 = vsub.f32 %v1984, %v1985
    %v1987 = vand.u32 %v1986, 4294901760
    %1988 = vmatprep.subr.mxu0 %v1987
    %v1989 = vand.u32 %v148, 4294901760
    %v1990 = vsub.f32 %v148, %v1989
    %v1991 = vand.u32 %v1990, 4294901760
    %v1992 = vsub.f32 %v1990, %v1991
    %v1993 = vand.u32 %v1992, 4294901760
    %1994 = vmatpush2.msra.mxu0 %v1993
    %v1995 = vand.u32 %v147, 4294901760
    %v1996 = vsub.f32 %v147, %v1995
    %v1997 = vand.u32 %v1996, 4294901760
    %v1998 = vsub.f32 %v1996, %v1997
    %v1999 = vand.u32 %v1998, 4294901760
    %2000 = vmatprep.subr.mxu0 %v1999
    %v2001 = vand.u32 %v146, 4294901760
    %v2002 = vsub.f32 %v146, %v2001
    %v2003 = vand.u32 %v2002, 4294901760
    %v2004 = vsub.f32 %v2002, %v2003
    %v2005 = vand.u32 %v2004, 4294901760
    %2006 = vmatpush2.msra.mxu0 %v2005
    %v2007 = vand.u32 %v145, 4294901760
    %v2008 = vsub.f32 %v145, %v2007
    %v2009 = vand.u32 %v2008, 4294901760
    %v2010 = vsub.f32 %v2008, %v2009
    %v2011 = vand.u32 %v2010, 4294901760
    %2012 = vmatprep.subr.mxu0 %v2011
    %v2013 = vand.u32 %v144, 4294901760
    %v2014 = vsub.f32 %v144, %v2013
    %v2015 = vand.u32 %v2014, 4294901760
    %v2016 = vsub.f32 %v2014, %v2015
    %v2017 = vand.u32 %v2016, 4294901760
    %2018 = vmatpush2.msra.mxu0 %v2017
    %v2019 = vand.u32 %v143, 4294901760
    %v2020 = vsub.f32 %v143, %v2019
    %v2021 = vand.u32 %v2020, 4294901760
    %v2022 = vsub.f32 %v2020, %v2021
    %v2023 = vand.u32 %v2022, 4294901760
    %2024 = vmatprep.subr.mxu0 %v2023
    %v2025 = vand.u32 %v142, 4294901760
    %v2026 = vsub.f32 %v142, %v2025
    %v2027 = vand.u32 %v2026, 4294901760
    %v2028 = vsub.f32 %v2026, %v2027
    %v2029 = vand.u32 %v2028, 4294901760
    %2030 = vmatpush2.msra.mxu0 %v2029
    %v2031 = vand.u32 %v44, 4294901760
    %2032 = vmatprep.mubr.f32.mxu0 %v2031
    %v2033 = vand.u32 %v43, 4294901760
    %2034 = vmatmul.mubr.f32.gmra.mxu0 %v2033
    %v2035 = vpop.f32.mrf.mxu0
    %v2036 = vadd.f32 %v1643, %v2035
    %v2037 = vpop.f32.mrf.mxu0
    %v2038 = vadd.f32 %v1645, %v2037
    %2039 = vdwg.mxu0
    %v2040 = vand.u32 %v141, 4294901760
    %v2041 = vsub.f32 %v141, %v2040
    %2042 = vmatprep.subr.mxu0 %v2041
    %v2043 = vand.u32 %v140, 4294901760
    %v2044 = vsub.f32 %v140, %v2043
    %2045 = vmatpush1.msra.mxu0 %v2044
    %v2046 = vand.u32 %v139, 4294901760
    %v2047 = vsub.f32 %v139, %v2046
    %2048 = vmatprep.subr.mxu0 %v2047
    %v2049 = vand.u32 %v138, 4294901760
    %v2050 = vsub.f32 %v138, %v2049
    %2051 = vmatpush1.msra.mxu0 %v2050
    %v2052 = vand.u32 %v137, 4294901760
    %v2053 = vsub.f32 %v137, %v2052
    %2054 = vmatprep.subr.mxu0 %v2053
    %v2055 = vand.u32 %v136, 4294901760
    %v2056 = vsub.f32 %v136, %v2055
    %2057 = vmatpush1.msra.mxu0 %v2056
    %v2058 = vand.u32 %v135, 4294901760
    %v2059 = vsub.f32 %v135, %v2058
    %2060 = vmatprep.subr.mxu0 %v2059
    %v2061 = vand.u32 %v134, 4294901760
    %v2062 = vsub.f32 %v134, %v2061
    %2063 = vmatpush1.msra.mxu0 %v2062
    %v2064 = vand.u32 %v133, 4294901760
    %v2065 = vsub.f32 %v133, %v2064
    %2066 = vmatprep.subr.mxu0 %v2065
    %v2067 = vand.u32 %v132, 4294901760
    %v2068 = vsub.f32 %v132, %v2067
    %2069 = vmatpush1.msra.mxu0 %v2068
    %v2070 = vand.u32 %v131, 4294901760
    %v2071 = vsub.f32 %v131, %v2070
    %2072 = vmatprep.subr.mxu0 %v2071
    %v2073 = vand.u32 %v130, 4294901760
    %v2074 = vsub.f32 %v130, %v2073
    %2075 = vmatpush1.msra.mxu0 %v2074
    %v2076 = vand.u32 %v129, 4294901760
    %v2077 = vsub.f32 %v129, %v2076
    %2078 = vmatprep.subr.mxu0 %v2077
    %v2079 = vand.u32 %v128, 4294901760
    %v2080 = vsub.f32 %v128, %v2079
    %2081 = vmatpush1.msra.mxu0 %v2080
    %v2082 = vand.u32 %v127, 4294901760
    %v2083 = vsub.f32 %v127, %v2082
    %2084 = vmatprep.subr.mxu0 %v2083
    %v2085 = vand.u32 %v126, 4294901760
    %v2086 = vsub.f32 %v126, %v2085
    %2087 = vmatpush1.msra.mxu0 %v2086
    %v2088 = vand.u32 %v125, 4294901760
    %v2089 = vsub.f32 %v125, %v2088
    %2090 = vmatprep.subr.mxu0 %v2089
    %v2091 = vand.u32 %v124, 4294901760
    %v2092 = vsub.f32 %v124, %v2091
    %2093 = vmatpush1.msra.mxu0 %v2092
    %v2094 = vand.u32 %v123, 4294901760
    %v2095 = vsub.f32 %v123, %v2094
    %2096 = vmatprep.subr.mxu0 %v2095
    %v2097 = vand.u32 %v122, 4294901760
    %v2098 = vsub.f32 %v122, %v2097
    %2099 = vmatpush1.msra.mxu0 %v2098
    %v2100 = vand.u32 %v121, 4294901760
    %v2101 = vsub.f32 %v121, %v2100
    %2102 = vmatprep.subr.mxu0 %v2101
    %v2103 = vand.u32 %v120, 4294901760
    %v2104 = vsub.f32 %v120, %v2103
    %2105 = vmatpush1.msra.mxu0 %v2104
    %v2106 = vand.u32 %v119, 4294901760
    %v2107 = vsub.f32 %v119, %v2106
    %2108 = vmatprep.subr.mxu0 %v2107
    %v2109 = vand.u32 %v118, 4294901760
    %v2110 = vsub.f32 %v118, %v2109
    %2111 = vmatpush1.msra.mxu0 %v2110
    %v2112 = vand.u32 %v117, 4294901760
    %v2113 = vsub.f32 %v117, %v2112
    %2114 = vmatprep.subr.mxu0 %v2113
    %v2115 = vand.u32 %v116, 4294901760
    %v2116 = vsub.f32 %v116, %v2115
    %2117 = vmatpush1.msra.mxu0 %v2116
    %v2118 = vand.u32 %v115, 4294901760
    %v2119 = vsub.f32 %v115, %v2118
    %2120 = vmatprep.subr.mxu0 %v2119
    %v2121 = vand.u32 %v114, 4294901760
    %v2122 = vsub.f32 %v114, %v2121
    %2123 = vmatpush1.msra.mxu0 %v2122
    %v2124 = vand.u32 %v113, 4294901760
    %v2125 = vsub.f32 %v113, %v2124
    %2126 = vmatprep.subr.mxu0 %v2125
    %v2127 = vand.u32 %v112, 4294901760
    %v2128 = vsub.f32 %v112, %v2127
    %2129 = vmatpush1.msra.mxu0 %v2128
    %v2130 = vand.u32 %v111, 4294901760
    %v2131 = vsub.f32 %v111, %v2130
    %2132 = vmatprep.subr.mxu0 %v2131
    %v2133 = vand.u32 %v110, 4294901760
    %v2134 = vsub.f32 %v110, %v2133
    %2135 = vmatpush1.msra.mxu0 %v2134
    %v2136 = vand.u32 %v173, 4294901760
    %v2137 = vsub.f32 %v173, %v2136
    %2138 = vmatprep.subr.mxu0 %v2137
    %v2139 = vand.u32 %v172, 4294901760
    %v2140 = vsub.f32 %v172, %v2139
    %2141 = vmatpush2.msra.mxu0 %v2140
    %v2142 = vand.u32 %v171, 4294901760
    %v2143 = vsub.f32 %v171, %v2142
    %2144 = vmatprep.subr.mxu0 %v2143
    %v2145 = vand.u32 %v170, 4294901760
    %v2146 = vsub.f32 %v170, %v2145
    %2147 = vmatpush2.msra.mxu0 %v2146
    %v2148 = vand.u32 %v169, 4294901760
    %v2149 = vsub.f32 %v169, %v2148
    %2150 = vmatprep.subr.mxu0 %v2149
    %v2151 = vand.u32 %v168, 4294901760
    %v2152 = vsub.f32 %v168, %v2151
    %2153 = vmatpush2.msra.mxu0 %v2152
    %v2154 = vand.u32 %v167, 4294901760
    %v2155 = vsub.f32 %v167, %v2154
    %2156 = vmatprep.subr.mxu0 %v2155
    %v2157 = vand.u32 %v166, 4294901760
    %v2158 = vsub.f32 %v166, %v2157
    %2159 = vmatpush2.msra.mxu0 %v2158
    %v2160 = vand.u32 %v165, 4294901760
    %v2161 = vsub.f32 %v165, %v2160
    %2162 = vmatprep.subr.mxu0 %v2161
    %v2163 = vand.u32 %v164, 4294901760
    %v2164 = vsub.f32 %v164, %v2163
    %2165 = vmatpush2.msra.mxu0 %v2164
    %v2166 = vand.u32 %v163, 4294901760
    %v2167 = vsub.f32 %v163, %v2166
    %2168 = vmatprep.subr.mxu0 %v2167
    %v2169 = vand.u32 %v162, 4294901760
    %v2170 = vsub.f32 %v162, %v2169
    %2171 = vmatpush2.msra.mxu0 %v2170
    %v2172 = vand.u32 %v161, 4294901760
    %v2173 = vsub.f32 %v161, %v2172
    %2174 = vmatprep.subr.mxu0 %v2173
    %v2175 = vand.u32 %v160, 4294901760
    %v2176 = vsub.f32 %v160, %v2175
    %2177 = vmatpush2.msra.mxu0 %v2176
    %v2178 = vand.u32 %v159, 4294901760
    %v2179 = vsub.f32 %v159, %v2178
    %2180 = vmatprep.subr.mxu0 %v2179
    %v2181 = vand.u32 %v158, 4294901760
    %v2182 = vsub.f32 %v158, %v2181
    %2183 = vmatpush2.msra.mxu0 %v2182
    %v2184 = vand.u32 %v157, 4294901760
    %v2185 = vsub.f32 %v157, %v2184
    %2186 = vmatprep.subr.mxu0 %v2185
    %v2187 = vand.u32 %v156, 4294901760
    %v2188 = vsub.f32 %v156, %v2187
    %2189 = vmatpush2.msra.mxu0 %v2188
    %v2190 = vand.u32 %v155, 4294901760
    %v2191 = vsub.f32 %v155, %v2190
    %2192 = vmatprep.subr.mxu0 %v2191
    %v2193 = vand.u32 %v154, 4294901760
    %v2194 = vsub.f32 %v154, %v2193
    %2195 = vmatpush2.msra.mxu0 %v2194
    %v2196 = vand.u32 %v153, 4294901760
    %v2197 = vsub.f32 %v153, %v2196
    %2198 = vmatprep.subr.mxu0 %v2197
    %v2199 = vand.u32 %v152, 4294901760
    %v2200 = vsub.f32 %v152, %v2199
    %2201 = vmatpush2.msra.mxu0 %v2200
    %v2202 = vand.u32 %v151, 4294901760
    %v2203 = vsub.f32 %v151, %v2202
    %2204 = vmatprep.subr.mxu0 %v2203
    %v2205 = vand.u32 %v150, 4294901760
    %v2206 = vsub.f32 %v150, %v2205
    %2207 = vmatpush2.msra.mxu0 %v2206
    %v2208 = vand.u32 %v149, 4294901760
    %v2209 = vsub.f32 %v149, %v2208
    %2210 = vmatprep.subr.mxu0 %v2209
    %v2211 = vand.u32 %v148, 4294901760
    %v2212 = vsub.f32 %v148, %v2211
    %2213 = vmatpush2.msra.mxu0 %v2212
    %v2214 = vand.u32 %v147, 4294901760
    %v2215 = vsub.f32 %v147, %v2214
    %2216 = vmatprep.subr.mxu0 %v2215
    %v2217 = vand.u32 %v146, 4294901760
    %v2218 = vsub.f32 %v146, %v2217
    %2219 = vmatpush2.msra.mxu0 %v2218
    %v2220 = vand.u32 %v145, 4294901760
    %v2221 = vsub.f32 %v145, %v2220
    %2222 = vmatprep.subr.mxu0 %v2221
    %v2223 = vand.u32 %v144, 4294901760
    %v2224 = vsub.f32 %v144, %v2223
    %2225 = vmatpush2.msra.mxu0 %v2224
    %v2226 = vand.u32 %v143, 4294901760
    %v2227 = vsub.f32 %v143, %v2226
    %2228 = vmatprep.subr.mxu0 %v2227
    %v2229 = vand.u32 %v142, 4294901760
    %v2230 = vsub.f32 %v142, %v2229
    %2231 = vmatpush2.msra.mxu0 %v2230
    %v2232 = vand.u32 %v44, 4294901760
    %v2233 = vsub.f32 %v44, %v2232
    %2234 = vmatprep.mubr.f32.mxu0 %v2233
    %v2235 = vand.u32 %v43, 4294901760
    %v2236 = vsub.f32 %v43, %v2235
    %2237 = vmatmul.mubr.f32.gmra.mxu0 %v2236
    %v2238 = vpop.f32.mrf.mxu0
    %v2239 = vadd.f32 %v2036, %v2238
    %v2240 = vpop.f32.mrf.mxu0
    %v2241 = vadd.f32 %v2038, %v2240
    %2242 = vdwg.mxu0
    %v2243 = vand.u32 %v141, 4294901760
    %2244 = vmatprep.subr.mxu0 %v2243
    %v2245 = vand.u32 %v140, 4294901760
    %2246 = vmatpush1.msra.mxu0 %v2245
    %v2247 = vand.u32 %v139, 4294901760
    %2248 = vmatprep.subr.mxu0 %v2247
    %v2249 = vand.u32 %v138, 4294901760
    %2250 = vmatpush1.msra.mxu0 %v2249
    %v2251 = vand.u32 %v137, 4294901760
    %2252 = vmatprep.subr.mxu0 %v2251
    %v2253 = vand.u32 %v136, 4294901760
    %2254 = vmatpush1.msra.mxu0 %v2253
    %v2255 = vand.u32 %v135, 4294901760
    %2256 = vmatprep.subr.mxu0 %v2255
    %v2257 = vand.u32 %v134, 4294901760
    %2258 = vmatpush1.msra.mxu0 %v2257
    %v2259 = vand.u32 %v133, 4294901760
    %2260 = vmatprep.subr.mxu0 %v2259
    %v2261 = vand.u32 %v132, 4294901760
    %2262 = vmatpush1.msra.mxu0 %v2261
    %v2263 = vand.u32 %v131, 4294901760
    %2264 = vmatprep.subr.mxu0 %v2263
    %v2265 = vand.u32 %v130, 4294901760
    %2266 = vmatpush1.msra.mxu0 %v2265
    %v2267 = vand.u32 %v129, 4294901760
    %2268 = vmatprep.subr.mxu0 %v2267
    %v2269 = vand.u32 %v128, 4294901760
    %2270 = vmatpush1.msra.mxu0 %v2269
    %v2271 = vand.u32 %v127, 4294901760
    %2272 = vmatprep.subr.mxu0 %v2271
    %v2273 = vand.u32 %v126, 4294901760
    %2274 = vmatpush1.msra.mxu0 %v2273
    %v2275 = vand.u32 %v125, 4294901760
    %2276 = vmatprep.subr.mxu0 %v2275
    %v2277 = vand.u32 %v124, 4294901760
    %2278 = vmatpush1.msra.mxu0 %v2277
    %v2279 = vand.u32 %v123, 4294901760
    %2280 = vmatprep.subr.mxu0 %v2279
    %v2281 = vand.u32 %v122, 4294901760
    %2282 = vmatpush1.msra.mxu0 %v2281
    %v2283 = vand.u32 %v121, 4294901760
    %2284 = vmatprep.subr.mxu0 %v2283
    %v2285 = vand.u32 %v120, 4294901760
    %2286 = vmatpush1.msra.mxu0 %v2285
    %v2287 = vand.u32 %v119, 4294901760
    %2288 = vmatprep.subr.mxu0 %v2287
    %v2289 = vand.u32 %v118, 4294901760
    %2290 = vmatpush1.msra.mxu0 %v2289
    %v2291 = vand.u32 %v117, 4294901760
    %2292 = vmatprep.subr.mxu0 %v2291
    %v2293 = vand.u32 %v116, 4294901760
    %2294 = vmatpush1.msra.mxu0 %v2293
    %v2295 = vand.u32 %v115, 4294901760
    %2296 = vmatprep.subr.mxu0 %v2295
    %v2297 = vand.u32 %v114, 4294901760
    %2298 = vmatpush1.msra.mxu0 %v2297
    %v2299 = vand.u32 %v113, 4294901760
    %2300 = vmatprep.subr.mxu0 %v2299
    %v2301 = vand.u32 %v112, 4294901760
    %2302 = vmatpush1.msra.mxu0 %v2301
    %v2303 = vand.u32 %v111, 4294901760
    %2304 = vmatprep.subr.mxu0 %v2303
    %v2305 = vand.u32 %v110, 4294901760
    %2306 = vmatpush1.msra.mxu0 %v2305
    %v2307 = vand.u32 %v173, 4294901760
    %2308 = vmatprep.subr.mxu0 %v2307
    %v2309 = vand.u32 %v172, 4294901760
    %2310 = vmatpush2.msra.mxu0 %v2309
    %v2311 = vand.u32 %v171, 4294901760
    %2312 = vmatprep.subr.mxu0 %v2311
    %v2313 = vand.u32 %v170, 4294901760
    %2314 = vmatpush2.msra.mxu0 %v2313
    %v2315 = vand.u32 %v169, 4294901760
    %2316 = vmatprep.subr.mxu0 %v2315
    %v2317 = vand.u32 %v168, 4294901760
    %2318 = vmatpush2.msra.mxu0 %v2317
    %v2319 = vand.u32 %v167, 4294901760
    %2320 = vmatprep.subr.mxu0 %v2319
    %v2321 = vand.u32 %v166, 4294901760
    %2322 = vmatpush2.msra.mxu0 %v2321
    %v2323 = vand.u32 %v165, 4294901760
    %2324 = vmatprep.subr.mxu0 %v2323
    %v2325 = vand.u32 %v164, 4294901760
    %2326 = vmatpush2.msra.mxu0 %v2325
    %v2327 = vand.u32 %v163, 4294901760
    %2328 = vmatprep.subr.mxu0 %v2327
    %v2329 = vand.u32 %v162, 4294901760
    %2330 = vmatpush2.msra.mxu0 %v2329
    %v2331 = vand.u32 %v161, 4294901760
    %2332 = vmatprep.subr.mxu0 %v2331
    %v2333 = vand.u32 %v160, 4294901760
    %2334 = vmatpush2.msra.mxu0 %v2333
    %v2335 = vand.u32 %v159, 4294901760
    %2336 = vmatprep.subr.mxu0 %v2335
    %v2337 = vand.u32 %v158, 4294901760
    %2338 = vmatpush2.msra.mxu0 %v2337
    %v2339 = vand.u32 %v157, 4294901760
    %2340 = vmatprep.subr.mxu0 %v2339
    %v2341 = vand.u32 %v156, 4294901760
    %2342 = vmatpush2.msra.mxu0 %v2341
    %v2343 = vand.u32 %v155, 4294901760
    %2344 = vmatprep.subr.mxu0 %v2343
    %v2345 = vand.u32 %v154, 4294901760
    %2346 = vmatpush2.msra.mxu0 %v2345
    %v2347 = vand.u32 %v153, 4294901760
    %2348 = vmatprep.subr.mxu0 %v2347
    %v2349 = vand.u32 %v152, 4294901760
    %2350 = vmatpush2.msra.mxu0 %v2349
    %v2351 = vand.u32 %v151, 4294901760
    %2352 = vmatprep.subr.mxu0 %v2351
    %v2353 = vand.u32 %v150, 4294901760
    %2354 = vmatpush2.msra.mxu0 %v2353
    %v2355 = vand.u32 %v149, 4294901760
    %2356 = vmatprep.subr.mxu0 %v2355
    %v2357 = vand.u32 %v148, 4294901760
    %2358 = vmatpush2.msra.mxu0 %v2357
    %v2359 = vand.u32 %v147, 4294901760
    %2360 = vmatprep.subr.mxu0 %v2359
    %v2361 = vand.u32 %v146, 4294901760
    %2362 = vmatpush2.msra.mxu0 %v2361
    %v2363 = vand.u32 %v145, 4294901760
    %2364 = vmatprep.subr.mxu0 %v2363
    %v2365 = vand.u32 %v144, 4294901760
    %2366 = vmatpush2.msra.mxu0 %v2365
    %v2367 = vand.u32 %v143, 4294901760
    %2368 = vmatprep.subr.mxu0 %v2367
    %v2369 = vand.u32 %v142, 4294901760
    %2370 = vmatpush2.msra.mxu0 %v2369
    %v2371 = vand.u32 %v44, 4294901760
    %v2372 = vsub.f32 %v44, %v2371
    %v2373 = vand.u32 %v2372, 4294901760
    %2374 = vmatprep.mubr.f32.mxu0 %v2373
    %v2375 = vand.u32 %v43, 4294901760
    %v2376 = vsub.f32 %v43, %v2375
    %v2377 = vand.u32 %v2376, 4294901760
    %2378 = vmatmul.mubr.f32.gmra.mxu0 %v2377
    %v2379 = vpop.f32.mrf.mxu0
    %v2380 = vadd.f32 %v2239, %v2379
    %v2381 = vpop.f32.mrf.mxu0
    %v2382 = vadd.f32 %v2241, %v2381
    %2383 = vdwg.mxu0
    %v2384 = vand.u32 %v141, 4294901760
    %v2385 = vsub.f32 %v141, %v2384
    %v2386 = vand.u32 %v2385, 4294901760
    %2387 = vmatprep.subr.mxu0 %v2386
    %v2388 = vand.u32 %v140, 4294901760
    %v2389 = vsub.f32 %v140, %v2388
    %v2390 = vand.u32 %v2389, 4294901760
    %2391 = vmatpush1.msra.mxu0 %v2390
    %v2392 = vand.u32 %v139, 4294901760
    %v2393 = vsub.f32 %v139, %v2392
    %v2394 = vand.u32 %v2393, 4294901760
    %2395 = vmatprep.subr.mxu0 %v2394
    %v2396 = vand.u32 %v138, 4294901760
    %v2397 = vsub.f32 %v138, %v2396
    %v2398 = vand.u32 %v2397, 4294901760
    %2399 = vmatpush1.msra.mxu0 %v2398
    %v2400 = vand.u32 %v137, 4294901760
    %v2401 = vsub.f32 %v137, %v2400
    %v2402 = vand.u32 %v2401, 4294901760
    %2403 = vmatprep.subr.mxu0 %v2402
    %v2404 = vand.u32 %v136, 4294901760
    %v2405 = vsub.f32 %v136, %v2404
    %v2406 = vand.u32 %v2405, 4294901760
    %2407 = vmatpush1.msra.mxu0 %v2406
    %v2408 = vand.u32 %v135, 4294901760
    %v2409 = vsub.f32 %v135, %v2408
    %v2410 = vand.u32 %v2409, 4294901760
    %2411 = vmatprep.subr.mxu0 %v2410
    %v2412 = vand.u32 %v134, 4294901760
    %v2413 = vsub.f32 %v134, %v2412
    %v2414 = vand.u32 %v2413, 4294901760
    %2415 = vmatpush1.msra.mxu0 %v2414
    %v2416 = vand.u32 %v133, 4294901760
    %v2417 = vsub.f32 %v133, %v2416
    %v2418 = vand.u32 %v2417, 4294901760
    %2419 = vmatprep.subr.mxu0 %v2418
    %v2420 = vand.u32 %v132, 4294901760
    %v2421 = vsub.f32 %v132, %v2420
    %v2422 = vand.u32 %v2421, 4294901760
    %2423 = vmatpush1.msra.mxu0 %v2422
    %v2424 = vand.u32 %v131, 4294901760
    %v2425 = vsub.f32 %v131, %v2424
    %v2426 = vand.u32 %v2425, 4294901760
    %2427 = vmatprep.subr.mxu0 %v2426
    %v2428 = vand.u32 %v130, 4294901760
    %v2429 = vsub.f32 %v130, %v2428
    %v2430 = vand.u32 %v2429, 4294901760
    %2431 = vmatpush1.msra.mxu0 %v2430
    %v2432 = vand.u32 %v129, 4294901760
    %v2433 = vsub.f32 %v129, %v2432
    %v2434 = vand.u32 %v2433, 4294901760
    %2435 = vmatprep.subr.mxu0 %v2434
    %v2436 = vand.u32 %v128, 4294901760
    %v2437 = vsub.f32 %v128, %v2436
    %v2438 = vand.u32 %v2437, 4294901760
    %2439 = vmatpush1.msra.mxu0 %v2438
    %v2440 = vand.u32 %v127, 4294901760
    %v2441 = vsub.f32 %v127, %v2440
    %v2442 = vand.u32 %v2441, 4294901760
    %2443 = vmatprep.subr.mxu0 %v2442
    %v2444 = vand.u32 %v126, 4294901760
    %v2445 = vsub.f32 %v126, %v2444
    %v2446 = vand.u32 %v2445, 4294901760
    %2447 = vmatpush1.msra.mxu0 %v2446
    %v2448 = vand.u32 %v125, 4294901760
    %v2449 = vsub.f32 %v125, %v2448
    %v2450 = vand.u32 %v2449, 4294901760
    %2451 = vmatprep.subr.mxu0 %v2450
    %v2452 = vand.u32 %v124, 4294901760
    %v2453 = vsub.f32 %v124, %v2452
    %v2454 = vand.u32 %v2453, 4294901760
    %2455 = vmatpush1.msra.mxu0 %v2454
    %v2456 = vand.u32 %v123, 4294901760
    %v2457 = vsub.f32 %v123, %v2456
    %v2458 = vand.u32 %v2457, 4294901760
    %2459 = vmatprep.subr.mxu0 %v2458
    %v2460 = vand.u32 %v122, 4294901760
    %v2461 = vsub.f32 %v122, %v2460
    %v2462 = vand.u32 %v2461, 4294901760
    %2463 = vmatpush1.msra.mxu0 %v2462
    %v2464 = vand.u32 %v121, 4294901760
    %v2465 = vsub.f32 %v121, %v2464
    %v2466 = vand.u32 %v2465, 4294901760
    %2467 = vmatprep.subr.mxu0 %v2466
    %v2468 = vand.u32 %v120, 4294901760
    %v2469 = vsub.f32 %v120, %v2468
    %v2470 = vand.u32 %v2469, 4294901760
    %2471 = vmatpush1.msra.mxu0 %v2470
    %v2472 = vand.u32 %v119, 4294901760
    %v2473 = vsub.f32 %v119, %v2472
    %v2474 = vand.u32 %v2473, 4294901760
    %2475 = vmatprep.subr.mxu0 %v2474
    %v2476 = vand.u32 %v118, 4294901760
    %v2477 = vsub.f32 %v118, %v2476
    %v2478 = vand.u32 %v2477, 4294901760
    %2479 = vmatpush1.msra.mxu0 %v2478
    %v2480 = vand.u32 %v117, 4294901760
    %v2481 = vsub.f32 %v117, %v2480
    %v2482 = vand.u32 %v2481, 4294901760
    %2483 = vmatprep.subr.mxu0 %v2482
    %v2484 = vand.u32 %v116, 4294901760
    %v2485 = vsub.f32 %v116, %v2484
    %v2486 = vand.u32 %v2485, 4294901760
    %2487 = vmatpush1.msra.mxu0 %v2486
    %v2488 = vand.u32 %v115, 4294901760
    %v2489 = vsub.f32 %v115, %v2488
    %v2490 = vand.u32 %v2489, 4294901760
    %2491 = vmatprep.subr.mxu0 %v2490
    %v2492 = vand.u32 %v114, 4294901760
    %v2493 = vsub.f32 %v114, %v2492
    %v2494 = vand.u32 %v2493, 4294901760
    %2495 = vmatpush1.msra.mxu0 %v2494
    %v2496 = vand.u32 %v113, 4294901760
    %v2497 = vsub.f32 %v113, %v2496
    %v2498 = vand.u32 %v2497, 4294901760
    %2499 = vmatprep.subr.mxu0 %v2498
    %v2500 = vand.u32 %v112, 4294901760
    %v2501 = vsub.f32 %v112, %v2500
    %v2502 = vand.u32 %v2501, 4294901760
    %2503 = vmatpush1.msra.mxu0 %v2502
    %v2504 = vand.u32 %v111, 4294901760
    %v2505 = vsub.f32 %v111, %v2504
    %v2506 = vand.u32 %v2505, 4294901760
    %2507 = vmatprep.subr.mxu0 %v2506
    %v2508 = vand.u32 %v110, 4294901760
    %v2509 = vsub.f32 %v110, %v2508
    %v2510 = vand.u32 %v2509, 4294901760
    %2511 = vmatpush1.msra.mxu0 %v2510
    %v2512 = vand.u32 %v173, 4294901760
    %v2513 = vsub.f32 %v173, %v2512
    %v2514 = vand.u32 %v2513, 4294901760
    %2515 = vmatprep.subr.mxu0 %v2514
    %v2516 = vand.u32 %v172, 4294901760
    %v2517 = vsub.f32 %v172, %v2516
    %v2518 = vand.u32 %v2517, 4294901760
    %2519 = vmatpush2.msra.mxu0 %v2518
    %v2520 = vand.u32 %v171, 4294901760
    %v2521 = vsub.f32 %v171, %v2520
    %v2522 = vand.u32 %v2521, 4294901760
    %2523 = vmatprep.subr.mxu0 %v2522
    %v2524 = vand.u32 %v170, 4294901760
    %v2525 = vsub.f32 %v170, %v2524
    %v2526 = vand.u32 %v2525, 4294901760
    %2527 = vmatpush2.msra.mxu0 %v2526
    %v2528 = vand.u32 %v169, 4294901760
    %v2529 = vsub.f32 %v169, %v2528
    %v2530 = vand.u32 %v2529, 4294901760
    %2531 = vmatprep.subr.mxu0 %v2530
    %v2532 = vand.u32 %v168, 4294901760
    %v2533 = vsub.f32 %v168, %v2532
    %v2534 = vand.u32 %v2533, 4294901760
    %2535 = vmatpush2.msra.mxu0 %v2534
    %v2536 = vand.u32 %v167, 4294901760
    %v2537 = vsub.f32 %v167, %v2536
    %v2538 = vand.u32 %v2537, 4294901760
    %2539 = vmatprep.subr.mxu0 %v2538
    %v2540 = vand.u32 %v166, 4294901760
    %v2541 = vsub.f32 %v166, %v2540
    %v2542 = vand.u32 %v2541, 4294901760
    %2543 = vmatpush2.msra.mxu0 %v2542
    %v2544 = vand.u32 %v165, 4294901760
    %v2545 = vsub.f32 %v165, %v2544
    %v2546 = vand.u32 %v2545, 4294901760
    %2547 = vmatprep.subr.mxu0 %v2546
    %v2548 = vand.u32 %v164, 4294901760
    %v2549 = vsub.f32 %v164, %v2548
    %v2550 = vand.u32 %v2549, 4294901760
    %2551 = vmatpush2.msra.mxu0 %v2550
    %v2552 = vand.u32 %v163, 4294901760
    %v2553 = vsub.f32 %v163, %v2552
    %v2554 = vand.u32 %v2553, 4294901760
    %2555 = vmatprep.subr.mxu0 %v2554
    %v2556 = vand.u32 %v162, 4294901760
    %v2557 = vsub.f32 %v162, %v2556
    %v2558 = vand.u32 %v2557, 4294901760
    %2559 = vmatpush2.msra.mxu0 %v2558
    %v2560 = vand.u32 %v161, 4294901760
    %v2561 = vsub.f32 %v161, %v2560
    %v2562 = vand.u32 %v2561, 4294901760
    %2563 = vmatprep.subr.mxu0 %v2562
    %v2564 = vand.u32 %v160, 4294901760
    %v2565 = vsub.f32 %v160, %v2564
    %v2566 = vand.u32 %v2565, 4294901760
    %2567 = vmatpush2.msra.mxu0 %v2566
    %v2568 = vand.u32 %v159, 4294901760
    %v2569 = vsub.f32 %v159, %v2568
    %v2570 = vand.u32 %v2569, 4294901760
    %2571 = vmatprep.subr.mxu0 %v2570
    %v2572 = vand.u32 %v158, 4294901760
    %v2573 = vsub.f32 %v158, %v2572
    %v2574 = vand.u32 %v2573, 4294901760
    %2575 = vmatpush2.msra.mxu0 %v2574
    %v2576 = vand.u32 %v157, 4294901760
    %v2577 = vsub.f32 %v157, %v2576
    %v2578 = vand.u32 %v2577, 4294901760
    %2579 = vmatprep.subr.mxu0 %v2578
    %v2580 = vand.u32 %v156, 4294901760
    %v2581 = vsub.f32 %v156, %v2580
    %v2582 = vand.u32 %v2581, 4294901760
    %2583 = vmatpush2.msra.mxu0 %v2582
    %v2584 = vand.u32 %v155, 4294901760
    %v2585 = vsub.f32 %v155, %v2584
    %v2586 = vand.u32 %v2585, 4294901760
    %2587 = vmatprep.subr.mxu0 %v2586
    %v2588 = vand.u32 %v154, 4294901760
    %v2589 = vsub.f32 %v154, %v2588
    %v2590 = vand.u32 %v2589, 4294901760
    %2591 = vmatpush2.msra.mxu0 %v2590
    %v2592 = vand.u32 %v153, 4294901760
    %v2593 = vsub.f32 %v153, %v2592
    %v2594 = vand.u32 %v2593, 4294901760
    %2595 = vmatprep.subr.mxu0 %v2594
    %v2596 = vand.u32 %v152, 4294901760
    %v2597 = vsub.f32 %v152, %v2596
    %v2598 = vand.u32 %v2597, 4294901760
    %2599 = vmatpush2.msra.mxu0 %v2598
    %v2600 = vand.u32 %v151, 4294901760
    %v2601 = vsub.f32 %v151, %v2600
    %v2602 = vand.u32 %v2601, 4294901760
    %2603 = vmatprep.subr.mxu0 %v2602
    %v2604 = vand.u32 %v150, 4294901760
    %v2605 = vsub.f32 %v150, %v2604
    %v2606 = vand.u32 %v2605, 4294901760
    %2607 = vmatpush2.msra.mxu0 %v2606
    %v2608 = vand.u32 %v149, 4294901760
    %v2609 = vsub.f32 %v149, %v2608
    %v2610 = vand.u32 %v2609, 4294901760
    %2611 = vmatprep.subr.mxu0 %v2610
    %v2612 = vand.u32 %v148, 4294901760
    %v2613 = vsub.f32 %v148, %v2612
    %v2614 = vand.u32 %v2613, 4294901760
    %2615 = vmatpush2.msra.mxu0 %v2614
    %v2616 = vand.u32 %v147, 4294901760
    %v2617 = vsub.f32 %v147, %v2616
    %v2618 = vand.u32 %v2617, 4294901760
    %2619 = vmatprep.subr.mxu0 %v2618
    %v2620 = vand.u32 %v146, 4294901760
    %v2621 = vsub.f32 %v146, %v2620
    %v2622 = vand.u32 %v2621, 4294901760
    %2623 = vmatpush2.msra.mxu0 %v2622
    %v2624 = vand.u32 %v145, 4294901760
    %v2625 = vsub.f32 %v145, %v2624
    %v2626 = vand.u32 %v2625, 4294901760
    %2627 = vmatprep.subr.mxu0 %v2626
    %v2628 = vand.u32 %v144, 4294901760
    %v2629 = vsub.f32 %v144, %v2628
    %v2630 = vand.u32 %v2629, 4294901760
    %2631 = vmatpush2.msra.mxu0 %v2630
    %v2632 = vand.u32 %v143, 4294901760
    %v2633 = vsub.f32 %v143, %v2632
    %v2634 = vand.u32 %v2633, 4294901760
    %2635 = vmatprep.subr.mxu0 %v2634
    %v2636 = vand.u32 %v142, 4294901760
    %v2637 = vsub.f32 %v142, %v2636
    %v2638 = vand.u32 %v2637, 4294901760
    %2639 = vmatpush2.msra.mxu0 %v2638
    %v2640 = vand.u32 %v44, 4294901760
    %2641 = vmatprep.mubr.f32.mxu0 %v2640
    %v2642 = vand.u32 %v43, 4294901760
    %2643 = vmatmul.mubr.f32.gmra.mxu0 %v2642
    %v2644 = vpop.f32.mrf.mxu0
    %v2645 = vadd.f32 %v2380, %v2644
    %v2646 = vpop.f32.mrf.mxu0
    %v2647 = vadd.f32 %v2382, %v2646
    %2648 = vdwg.mxu0
    %v2649 = vand.u32 %v141, 4294901760
    %2650 = vmatprep.subr.mxu0 %v2649
    %v2651 = vand.u32 %v140, 4294901760
    %2652 = vmatpush1.msra.mxu0 %v2651
    %v2653 = vand.u32 %v139, 4294901760
    %2654 = vmatprep.subr.mxu0 %v2653
    %v2655 = vand.u32 %v138, 4294901760
    %2656 = vmatpush1.msra.mxu0 %v2655
    %v2657 = vand.u32 %v137, 4294901760
    %2658 = vmatprep.subr.mxu0 %v2657
    %v2659 = vand.u32 %v136, 4294901760
    %2660 = vmatpush1.msra.mxu0 %v2659
    %v2661 = vand.u32 %v135, 4294901760
    %2662 = vmatprep.subr.mxu0 %v2661
    %v2663 = vand.u32 %v134, 4294901760
    %2664 = vmatpush1.msra.mxu0 %v2663
    %v2665 = vand.u32 %v133, 4294901760
    %2666 = vmatprep.subr.mxu0 %v2665
    %v2667 = vand.u32 %v132, 4294901760
    %2668 = vmatpush1.msra.mxu0 %v2667
    %v2669 = vand.u32 %v131, 4294901760
    %2670 = vmatprep.subr.mxu0 %v2669
    %v2671 = vand.u32 %v130, 4294901760
    %2672 = vmatpush1.msra.mxu0 %v2671
    %v2673 = vand.u32 %v129, 4294901760
    %2674 = vmatprep.subr.mxu0 %v2673
    %v2675 = vand.u32 %v128, 4294901760
    %2676 = vmatpush1.msra.mxu0 %v2675
    %v2677 = vand.u32 %v127, 4294901760
    %2678 = vmatprep.subr.mxu0 %v2677
    %v2679 = vand.u32 %v126, 4294901760
    %2680 = vmatpush1.msra.mxu0 %v2679
    %v2681 = vand.u32 %v125, 4294901760
    %2682 = vmatprep.subr.mxu0 %v2681
    %v2683 = vand.u32 %v124, 4294901760
    %2684 = vmatpush1.msra.mxu0 %v2683
    %v2685 = vand.u32 %v123, 4294901760
    %2686 = vmatprep.subr.mxu0 %v2685
    %v2687 = vand.u32 %v122, 4294901760
    %2688 = vmatpush1.msra.mxu0 %v2687
    %v2689 = vand.u32 %v121, 4294901760
    %2690 = vmatprep.subr.mxu0 %v2689
    %v2691 = vand.u32 %v120, 4294901760
    %2692 = vmatpush1.msra.mxu0 %v2691
    %v2693 = vand.u32 %v119, 4294901760
    %2694 = vmatprep.subr.mxu0 %v2693
    %v2695 = vand.u32 %v118, 4294901760
    %2696 = vmatpush1.msra.mxu0 %v2695
    %v2697 = vand.u32 %v117, 4294901760
    %2698 = vmatprep.subr.mxu0 %v2697
    %v2699 = vand.u32 %v116, 4294901760
    %2700 = vmatpush1.msra.mxu0 %v2699
    %v2701 = vand.u32 %v115, 4294901760
    %2702 = vmatprep.subr.mxu0 %v2701
    %v2703 = vand.u32 %v114, 4294901760
    %2704 = vmatpush1.msra.mxu0 %v2703
    %v2705 = vand.u32 %v113, 4294901760
    %2706 = vmatprep.subr.mxu0 %v2705
    %v2707 = vand.u32 %v112, 4294901760
    %2708 = vmatpush1.msra.mxu0 %v2707
    %v2709 = vand.u32 %v111, 4294901760
    %2710 = vmatprep.subr.mxu0 %v2709
    %v2711 = vand.u32 %v110, 4294901760
    %2712 = vmatpush1.msra.mxu0 %v2711
    %v2713 = vand.u32 %v173, 4294901760
    %2714 = vmatprep.subr.mxu0 %v2713
    %v2715 = vand.u32 %v172, 4294901760
    %2716 = vmatpush2.msra.mxu0 %v2715
    %v2717 = vand.u32 %v171, 4294901760
    %2718 = vmatprep.subr.mxu0 %v2717
    %v2719 = vand.u32 %v170, 4294901760
    %2720 = vmatpush2.msra.mxu0 %v2719
    %v2721 = vand.u32 %v169, 4294901760
    %2722 = vmatprep.subr.mxu0 %v2721
    %v2723 = vand.u32 %v168, 4294901760
    %2724 = vmatpush2.msra.mxu0 %v2723
    %v2725 = vand.u32 %v167, 4294901760
    %2726 = vmatprep.subr.mxu0 %v2725
    %v2727 = vand.u32 %v166, 4294901760
    %2728 = vmatpush2.msra.mxu0 %v2727
    %v2729 = vand.u32 %v165, 4294901760
    %2730 = vmatprep.subr.mxu0 %v2729
    %v2731 = vand.u32 %v164, 4294901760
    %2732 = vmatpush2.msra.mxu0 %v2731
    %v2733 = vand.u32 %v163, 4294901760
    %2734 = vmatprep.subr.mxu0 %v2733
    %v2735 = vand.u32 %v162, 4294901760
    %2736 = vmatpush2.msra.mxu0 %v2735
    %v2737 = vand.u32 %v161, 4294901760
    %2738 = vmatprep.subr.mxu0 %v2737
    %v2739 = vand.u32 %v160, 4294901760
    %2740 = vmatpush2.msra.mxu0 %v2739
    %v2741 = vand.u32 %v159, 4294901760
    %2742 = vmatprep.subr.mxu0 %v2741
    %v2743 = vand.u32 %v158, 4294901760
    %2744 = vmatpush2.msra.mxu0 %v2743
    %v2745 = vand.u32 %v157, 4294901760
    %2746 = vmatprep.subr.mxu0 %v2745
    %v2747 = vand.u32 %v156, 4294901760
    %2748 = vmatpush2.msra.mxu0 %v2747
    %v2749 = vand.u32 %v155, 4294901760
    %2750 = vmatprep.subr.mxu0 %v2749
    %v2751 = vand.u32 %v154, 4294901760
    %2752 = vmatpush2.msra.mxu0 %v2751
    %v2753 = vand.u32 %v153, 4294901760
    %2754 = vmatprep.subr.mxu0 %v2753
    %v2755 = vand.u32 %v152, 4294901760
    %2756 = vmatpush2.msra.mxu0 %v2755
    %v2757 = vand.u32 %v151, 4294901760
    %2758 = vmatprep.subr.mxu0 %v2757
    %v2759 = vand.u32 %v150, 4294901760
    %2760 = vmatpush2.msra.mxu0 %v2759
    %v2761 = vand.u32 %v149, 4294901760
    %2762 = vmatprep.subr.mxu0 %v2761
    %v2763 = vand.u32 %v148, 4294901760
    %2764 = vmatpush2.msra.mxu0 %v2763
    %v2765 = vand.u32 %v147, 4294901760
    %2766 = vmatprep.subr.mxu0 %v2765
    %v2767 = vand.u32 %v146, 4294901760
    %2768 = vmatpush2.msra.mxu0 %v2767
    %v2769 = vand.u32 %v145, 4294901760
    %2770 = vmatprep.subr.mxu0 %v2769
    %v2771 = vand.u32 %v144, 4294901760
    %2772 = vmatpush2.msra.mxu0 %v2771
    %v2773 = vand.u32 %v143, 4294901760
    %2774 = vmatprep.subr.mxu0 %v2773
    %v2775 = vand.u32 %v142, 4294901760
    %2776 = vmatpush2.msra.mxu0 %v2775
    %v2777 = vand.u32 %v44, 4294901760
    %2778 = vmatprep.mubr.f32.mxu0 %v2777
    %v2779 = vand.u32 %v43, 4294901760
    %2780 = vmatmul.mubr.f32.gmra.mxu0 %v2779
    %v2781 = vpop.f32.mrf.mxu0
    %v2782 = vadd.f32 %v2645, %v2781
    %v2783 = vpop.f32.mrf.mxu0
    %v2784 = vadd.f32 %v2647, %v2783
    %2785 = vdwg.mxu0
    %v2786 = vand.u32 %v205, 4294901760
    %2787 = vmatprep.subr.mxu0 %v2786
    %v2788 = vand.u32 %v204, 4294901760
    %2789 = vmatpush1.msra.mxu0 %v2788
    %v2790 = vand.u32 %v203, 4294901760
    %2791 = vmatprep.subr.mxu0 %v2790
    %v2792 = vand.u32 %v202, 4294901760
    %2793 = vmatpush1.msra.mxu0 %v2792
    %v2794 = vand.u32 %v201, 4294901760
    %2795 = vmatprep.subr.mxu0 %v2794
    %v2796 = vand.u32 %v200, 4294901760
    %2797 = vmatpush1.msra.mxu0 %v2796
    %v2798 = vand.u32 %v199, 4294901760
    %2799 = vmatprep.subr.mxu0 %v2798
    %v2800 = vand.u32 %v198, 4294901760
    %2801 = vmatpush1.msra.mxu0 %v2800
    %v2802 = vand.u32 %v197, 4294901760
    %2803 = vmatprep.subr.mxu0 %v2802
    %v2804 = vand.u32 %v196, 4294901760
    %2805 = vmatpush1.msra.mxu0 %v2804
    %v2806 = vand.u32 %v195, 4294901760
    %2807 = vmatprep.subr.mxu0 %v2806
    %v2808 = vand.u32 %v194, 4294901760
    %2809 = vmatpush1.msra.mxu0 %v2808
    %v2810 = vand.u32 %v193, 4294901760
    %2811 = vmatprep.subr.mxu0 %v2810
    %v2812 = vand.u32 %v192, 4294901760
    %2813 = vmatpush1.msra.mxu0 %v2812
    %v2814 = vand.u32 %v191, 4294901760
    %2815 = vmatprep.subr.mxu0 %v2814
    %v2816 = vand.u32 %v190, 4294901760
    %2817 = vmatpush1.msra.mxu0 %v2816
    %v2818 = vand.u32 %v189, 4294901760
    %2819 = vmatprep.subr.mxu0 %v2818
    %v2820 = vand.u32 %v188, 4294901760
    %2821 = vmatpush1.msra.mxu0 %v2820
    %v2822 = vand.u32 %v187, 4294901760
    %2823 = vmatprep.subr.mxu0 %v2822
    %v2824 = vand.u32 %v186, 4294901760
    %2825 = vmatpush1.msra.mxu0 %v2824
    %v2826 = vand.u32 %v185, 4294901760
    %2827 = vmatprep.subr.mxu0 %v2826
    %v2828 = vand.u32 %v184, 4294901760
    %2829 = vmatpush1.msra.mxu0 %v2828
    %v2830 = vand.u32 %v183, 4294901760
    %2831 = vmatprep.subr.mxu0 %v2830
    %v2832 = vand.u32 %v182, 4294901760
    %2833 = vmatpush1.msra.mxu0 %v2832
    %v2834 = vand.u32 %v181, 4294901760
    %2835 = vmatprep.subr.mxu0 %v2834
    %v2836 = vand.u32 %v180, 4294901760
    %2837 = vmatpush1.msra.mxu0 %v2836
    %v2838 = vand.u32 %v179, 4294901760
    %2839 = vmatprep.subr.mxu0 %v2838
    %v2840 = vand.u32 %v178, 4294901760
    %2841 = vmatpush1.msra.mxu0 %v2840
    %v2842 = vand.u32 %v177, 4294901760
    %2843 = vmatprep.subr.mxu0 %v2842
    %v2844 = vand.u32 %v176, 4294901760
    %2845 = vmatpush1.msra.mxu0 %v2844
    %v2846 = vand.u32 %v175, 4294901760
    %2847 = vmatprep.subr.mxu0 %v2846
    %v2848 = vand.u32 %v174, 4294901760
    %2849 = vmatpush1.msra.mxu0 %v2848
    %2850 = vmatprep.subr.mxu0 0.0
    %2851 = vmatpush2.msra.mxu0 0.0
    %2852 = vmatprep.subr.mxu0 0.0
    %2853 = vmatpush2.msra.mxu0 0.0
    %2854 = vmatprep.subr.mxu0 0.0
    %2855 = vmatpush2.msra.mxu0 0.0
    %2856 = vmatprep.subr.mxu0 0.0
    %2857 = vmatpush2.msra.mxu0 0.0
    %2858 = vmatprep.subr.mxu0 0.0
    %2859 = vmatpush2.msra.mxu0 0.0
    %2860 = vmatprep.subr.mxu0 0.0
    %2861 = vmatpush2.msra.mxu0 0.0
    %2862 = vmatprep.subr.mxu0 0.0
    %2863 = vmatpush2.msra.mxu0 0.0
    %2864 = vmatprep.subr.mxu0 0.0
    %2865 = vmatpush2.msra.mxu0 0.0
    %2866 = vmatprep.subr.mxu0 0.0
    %2867 = vmatpush2.msra.mxu0 0.0
    %2868 = vmatprep.subr.mxu0 0.0
    %2869 = vmatpush2.msra.mxu0 0.0
    %2870 = vmatprep.subr.mxu0 0.0
    %2871 = vmatpush2.msra.mxu0 0.0
    %2872 = vmatprep.subr.mxu0 0.0
    %2873 = vmatpush2.msra.mxu0 0.0
    %2874 = vmatprep.subr.mxu0 0.0
    %2875 = vmatpush2.msra.mxu0 0.0
    %2876 = vmatprep.subr.mxu0 0.0
    %2877 = vmatpush2.msra.mxu0 0.0
    %2878 = vmatprep.subr.mxu0 0.0
    %2879 = vmatpush2.msra.mxu0 0.0
    %2880 = vmatprep.subr.mxu0 0.0
    %2881 = vmatpush2.msra.mxu0 0.0
    %2882 = vmatprep.mubr.f32.mxu0 0.0
    %v2883 = vand.u32 %v45, 4294901760
    %v2884 = vsub.f32 %v45, %v2883
    %v2885 = vand.u32 %v2884, 4294901760
    %v2886 = vsub.f32 %v2884, %v2885
    %v2887 = vand.u32 %v2886, 4294901760
    %2888 = vmatmul.mubr.f32.gmra.mxu0 %v2887
    %v2889 = vpop.f32.mrf.mxu0
    %v2890 = vadd.f32 %v2782, %v2889
    %v2891 = vpop.f32.mrf.mxu0
    %v2892 = vadd.f32 %v2784, %v2891
    %2893 = vdwg.mxu0
    %v2894 = vand.u32 %v205, 4294901760
    %v2895 = vsub.f32 %v205, %v2894
    %v2896 = vand.u32 %v2895, 4294901760
    %v2897 = vsub.f32 %v2895, %v2896
    %v2898 = vand.u32 %v2897, 4294901760
    %2899 = vmatprep.subr.mxu0 %v2898
    %v2900 = vand.u32 %v204, 4294901760
    %v2901 = vsub.f32 %v204, %v2900
    %v2902 = vand.u32 %v2901, 4294901760
    %v2903 = vsub.f32 %v2901, %v2902
    %v2904 = vand.u32 %v2903, 4294901760
    %2905 = vmatpush1.msra.mxu0 %v2904
    %v2906 = vand.u32 %v203, 4294901760
    %v2907 = vsub.f32 %v203, %v2906
    %v2908 = vand.u32 %v2907, 4294901760
    %v2909 = vsub.f32 %v2907, %v2908
    %v2910 = vand.u32 %v2909, 4294901760
    %2911 = vmatprep.subr.mxu0 %v2910
    %v2912 = vand.u32 %v202, 4294901760
    %v2913 = vsub.f32 %v202, %v2912
    %v2914 = vand.u32 %v2913, 4294901760
    %v2915 = vsub.f32 %v2913, %v2914
    %v2916 = vand.u32 %v2915, 4294901760
    %2917 = vmatpush1.msra.mxu0 %v2916
    %v2918 = vand.u32 %v201, 4294901760
    %v2919 = vsub.f32 %v201, %v2918
    %v2920 = vand.u32 %v2919, 4294901760
    %v2921 = vsub.f32 %v2919, %v2920
    %v2922 = vand.u32 %v2921, 4294901760
    %2923 = vmatprep.subr.mxu0 %v2922
    %v2924 = vand.u32 %v200, 4294901760
    %v2925 = vsub.f32 %v200, %v2924
    %v2926 = vand.u32 %v2925, 4294901760
    %v2927 = vsub.f32 %v2925, %v2926
    %v2928 = vand.u32 %v2927, 4294901760
    %2929 = vmatpush1.msra.mxu0 %v2928
    %v2930 = vand.u32 %v199, 4294901760
    %v2931 = vsub.f32 %v199, %v2930
    %v2932 = vand.u32 %v2931, 4294901760
    %v2933 = vsub.f32 %v2931, %v2932
    %v2934 = vand.u32 %v2933, 4294901760
    %2935 = vmatprep.subr.mxu0 %v2934
    %v2936 = vand.u32 %v198, 4294901760
    %v2937 = vsub.f32 %v198, %v2936
    %v2938 = vand.u32 %v2937, 4294901760
    %v2939 = vsub.f32 %v2937, %v2938
    %v2940 = vand.u32 %v2939, 4294901760
    %2941 = vmatpush1.msra.mxu0 %v2940
    %v2942 = vand.u32 %v197, 4294901760
    %v2943 = vsub.f32 %v197, %v2942
    %v2944 = vand.u32 %v2943, 4294901760
    %v2945 = vsub.f32 %v2943, %v2944
    %v2946 = vand.u32 %v2945, 4294901760
    %2947 = vmatprep.subr.mxu0 %v2946
    %v2948 = vand.u32 %v196, 4294901760
    %v2949 = vsub.f32 %v196, %v2948
    %v2950 = vand.u32 %v2949, 4294901760
    %v2951 = vsub.f32 %v2949, %v2950
    %v2952 = vand.u32 %v2951, 4294901760
    %2953 = vmatpush1.msra.mxu0 %v2952
    %v2954 = vand.u32 %v195, 4294901760
    %v2955 = vsub.f32 %v195, %v2954
    %v2956 = vand.u32 %v2955, 4294901760
    %v2957 = vsub.f32 %v2955, %v2956
    %v2958 = vand.u32 %v2957, 4294901760
    %2959 = vmatprep.subr.mxu0 %v2958
    %v2960 = vand.u32 %v194, 4294901760
    %v2961 = vsub.f32 %v194, %v2960
    %v2962 = vand.u32 %v2961, 4294901760
    %v2963 = vsub.f32 %v2961, %v2962
    %v2964 = vand.u32 %v2963, 4294901760
    %2965 = vmatpush1.msra.mxu0 %v2964
    %v2966 = vand.u32 %v193, 4294901760
    %v2967 = vsub.f32 %v193, %v2966
    %v2968 = vand.u32 %v2967, 4294901760
    %v2969 = vsub.f32 %v2967, %v2968
    %v2970 = vand.u32 %v2969, 4294901760
    %2971 = vmatprep.subr.mxu0 %v2970
    %v2972 = vand.u32 %v192, 4294901760
    %v2973 = vsub.f32 %v192, %v2972
    %v2974 = vand.u32 %v2973, 4294901760
    %v2975 = vsub.f32 %v2973, %v2974
    %v2976 = vand.u32 %v2975, 4294901760
    %2977 = vmatpush1.msra.mxu0 %v2976
    %v2978 = vand.u32 %v191, 4294901760
    %v2979 = vsub.f32 %v191, %v2978
    %v2980 = vand.u32 %v2979, 4294901760
    %v2981 = vsub.f32 %v2979, %v2980
    %v2982 = vand.u32 %v2981, 4294901760
    %2983 = vmatprep.subr.mxu0 %v2982
    %v2984 = vand.u32 %v190, 4294901760
    %v2985 = vsub.f32 %v190, %v2984
    %v2986 = vand.u32 %v2985, 4294901760
    %v2987 = vsub.f32 %v2985, %v2986
    %v2988 = vand.u32 %v2987, 4294901760
    %2989 = vmatpush1.msra.mxu0 %v2988
    %v2990 = vand.u32 %v189, 4294901760
    %v2991 = vsub.f32 %v189, %v2990
    %v2992 = vand.u32 %v2991, 4294901760
    %v2993 = vsub.f32 %v2991, %v2992
    %v2994 = vand.u32 %v2993, 4294901760
    %2995 = vmatprep.subr.mxu0 %v2994
    %v2996 = vand.u32 %v188, 4294901760
    %v2997 = vsub.f32 %v188, %v2996
    %v2998 = vand.u32 %v2997, 4294901760
    %v2999 = vsub.f32 %v2997, %v2998
    %v3000 = vand.u32 %v2999, 4294901760
    %3001 = vmatpush1.msra.mxu0 %v3000
    %v3002 = vand.u32 %v187, 4294901760
    %v3003 = vsub.f32 %v187, %v3002
    %v3004 = vand.u32 %v3003, 4294901760
    %v3005 = vsub.f32 %v3003, %v3004
    %v3006 = vand.u32 %v3005, 4294901760
    %3007 = vmatprep.subr.mxu0 %v3006
    %v3008 = vand.u32 %v186, 4294901760
    %v3009 = vsub.f32 %v186, %v3008
    %v3010 = vand.u32 %v3009, 4294901760
    %v3011 = vsub.f32 %v3009, %v3010
    %v3012 = vand.u32 %v3011, 4294901760
    %3013 = vmatpush1.msra.mxu0 %v3012
    %v3014 = vand.u32 %v185, 4294901760
    %v3015 = vsub.f32 %v185, %v3014
    %v3016 = vand.u32 %v3015, 4294901760
    %v3017 = vsub.f32 %v3015, %v3016
    %v3018 = vand.u32 %v3017, 4294901760
    %3019 = vmatprep.subr.mxu0 %v3018
    %v3020 = vand.u32 %v184, 4294901760
    %v3021 = vsub.f32 %v184, %v3020
    %v3022 = vand.u32 %v3021, 4294901760
    %v3023 = vsub.f32 %v3021, %v3022
    %v3024 = vand.u32 %v3023, 4294901760
    %3025 = vmatpush1.msra.mxu0 %v3024
    %v3026 = vand.u32 %v183, 4294901760
    %v3027 = vsub.f32 %v183, %v3026
    %v3028 = vand.u32 %v3027, 4294901760
    %v3029 = vsub.f32 %v3027, %v3028
    %v3030 = vand.u32 %v3029, 4294901760
    %3031 = vmatprep.subr.mxu0 %v3030
    %v3032 = vand.u32 %v182, 4294901760
    %v3033 = vsub.f32 %v182, %v3032
    %v3034 = vand.u32 %v3033, 4294901760
    %v3035 = vsub.f32 %v3033, %v3034
    %v3036 = vand.u32 %v3035, 4294901760
    %3037 = vmatpush1.msra.mxu0 %v3036
    %v3038 = vand.u32 %v181, 4294901760
    %v3039 = vsub.f32 %v181, %v3038
    %v3040 = vand.u32 %v3039, 4294901760
    %v3041 = vsub.f32 %v3039, %v3040
    %v3042 = vand.u32 %v3041, 4294901760
    %3043 = vmatprep.subr.mxu0 %v3042
    %v3044 = vand.u32 %v180, 4294901760
    %v3045 = vsub.f32 %v180, %v3044
    %v3046 = vand.u32 %v3045, 4294901760
    %v3047 = vsub.f32 %v3045, %v3046
    %v3048 = vand.u32 %v3047, 4294901760
    %3049 = vmatpush1.msra.mxu0 %v3048
    %v3050 = vand.u32 %v179, 4294901760
    %v3051 = vsub.f32 %v179, %v3050
    %v3052 = vand.u32 %v3051, 4294901760
    %v3053 = vsub.f32 %v3051, %v3052
    %v3054 = vand.u32 %v3053, 4294901760
    %3055 = vmatprep.subr.mxu0 %v3054
    %v3056 = vand.u32 %v178, 4294901760
    %v3057 = vsub.f32 %v178, %v3056
    %v3058 = vand.u32 %v3057, 4294901760
    %v3059 = vsub.f32 %v3057, %v3058
    %v3060 = vand.u32 %v3059, 4294901760
    %3061 = vmatpush1.msra.mxu0 %v3060
    %v3062 = vand.u32 %v177, 4294901760
    %v3063 = vsub.f32 %v177, %v3062
    %v3064 = vand.u32 %v3063, 4294901760
    %v3065 = vsub.f32 %v3063, %v3064
    %v3066 = vand.u32 %v3065, 4294901760
    %3067 = vmatprep.subr.mxu0 %v3066
    %v3068 = vand.u32 %v176, 4294901760
    %v3069 = vsub.f32 %v176, %v3068
    %v3070 = vand.u32 %v3069, 4294901760
    %v3071 = vsub.f32 %v3069, %v3070
    %v3072 = vand.u32 %v3071, 4294901760
    %3073 = vmatpush1.msra.mxu0 %v3072
    %v3074 = vand.u32 %v175, 4294901760
    %v3075 = vsub.f32 %v175, %v3074
    %v3076 = vand.u32 %v3075, 4294901760
    %v3077 = vsub.f32 %v3075, %v3076
    %v3078 = vand.u32 %v3077, 4294901760
    %3079 = vmatprep.subr.mxu0 %v3078
    %v3080 = vand.u32 %v174, 4294901760
    %v3081 = vsub.f32 %v174, %v3080
    %v3082 = vand.u32 %v3081, 4294901760
    %v3083 = vsub.f32 %v3081, %v3082
    %v3084 = vand.u32 %v3083, 4294901760
    %3085 = vmatpush1.msra.mxu0 %v3084
    %3086 = vmatprep.subr.mxu0 0.0
    %3087 = vmatpush2.msra.mxu0 0.0
    %3088 = vmatprep.subr.mxu0 0.0
    %3089 = vmatpush2.msra.mxu0 0.0
    %3090 = vmatprep.subr.mxu0 0.0
    %3091 = vmatpush2.msra.mxu0 0.0
    %3092 = vmatprep.subr.mxu0 0.0
    %3093 = vmatpush2.msra.mxu0 0.0
    %3094 = vmatprep.subr.mxu0 0.0
    %3095 = vmatpush2.msra.mxu0 0.0
    %3096 = vmatprep.subr.mxu0 0.0
    %3097 = vmatpush2.msra.mxu0 0.0
    %3098 = vmatprep.subr.mxu0 0.0
    %3099 = vmatpush2.msra.mxu0 0.0
    %3100 = vmatprep.subr.mxu0 0.0
    %3101 = vmatpush2.msra.mxu0 0.0
    %3102 = vmatprep.subr.mxu0 0.0
    %3103 = vmatpush2.msra.mxu0 0.0
    %3104 = vmatprep.subr.mxu0 0.0
    %3105 = vmatpush2.msra.mxu0 0.0
    %3106 = vmatprep.subr.mxu0 0.0
    %3107 = vmatpush2.msra.mxu0 0.0
    %3108 = vmatprep.subr.mxu0 0.0
    %3109 = vmatpush2.msra.mxu0 0.0
    %3110 = vmatprep.subr.mxu0 0.0
    %3111 = vmatpush2.msra.mxu0 0.0
    %3112 = vmatprep.subr.mxu0 0.0
    %3113 = vmatpush2.msra.mxu0 0.0
    %3114 = vmatprep.subr.mxu0 0.0
    %3115 = vmatpush2.msra.mxu0 0.0
    %3116 = vmatprep.subr.mxu0 0.0
    %3117 = vmatpush2.msra.mxu0 0.0
    %3118 = vmatprep.mubr.f32.mxu0 0.0
    %v3119 = vand.u32 %v45, 4294901760
    %3120 = vmatmul.mubr.f32.gmra.mxu0 %v3119
    %v3121 = vpop.f32.mrf.mxu0
    %v3122 = vadd.f32 %v2890, %v3121
    %v3123 = vpop.f32.mrf.mxu0
    %v3124 = vadd.f32 %v2892, %v3123
    %3125 = vdwg.mxu0
    %v3126 = vand.u32 %v205, 4294901760
    %v3127 = vsub.f32 %v205, %v3126
    %3128 = vmatprep.subr.mxu0 %v3127
    %v3129 = vand.u32 %v204, 4294901760
    %v3130 = vsub.f32 %v204, %v3129
    %3131 = vmatpush1.msra.mxu0 %v3130
    %v3132 = vand.u32 %v203, 4294901760
    %v3133 = vsub.f32 %v203, %v3132
    %3134 = vmatprep.subr.mxu0 %v3133
    %v3135 = vand.u32 %v202, 4294901760
    %v3136 = vsub.f32 %v202, %v3135
    %3137 = vmatpush1.msra.mxu0 %v3136
    %v3138 = vand.u32 %v201, 4294901760
    %v3139 = vsub.f32 %v201, %v3138
    %3140 = vmatprep.subr.mxu0 %v3139
    %v3141 = vand.u32 %v200, 4294901760
    %v3142 = vsub.f32 %v200, %v3141
    %3143 = vmatpush1.msra.mxu0 %v3142
    %v3144 = vand.u32 %v199, 4294901760
    %v3145 = vsub.f32 %v199, %v3144
    %3146 = vmatprep.subr.mxu0 %v3145
    %v3147 = vand.u32 %v198, 4294901760
    %v3148 = vsub.f32 %v198, %v3147
    %3149 = vmatpush1.msra.mxu0 %v3148
    %v3150 = vand.u32 %v197, 4294901760
    %v3151 = vsub.f32 %v197, %v3150
    %3152 = vmatprep.subr.mxu0 %v3151
    %v3153 = vand.u32 %v196, 4294901760
    %v3154 = vsub.f32 %v196, %v3153
    %3155 = vmatpush1.msra.mxu0 %v3154
    %v3156 = vand.u32 %v195, 4294901760
    %v3157 = vsub.f32 %v195, %v3156
    %3158 = vmatprep.subr.mxu0 %v3157
    %v3159 = vand.u32 %v194, 4294901760
    %v3160 = vsub.f32 %v194, %v3159
    %3161 = vmatpush1.msra.mxu0 %v3160
    %v3162 = vand.u32 %v193, 4294901760
    %v3163 = vsub.f32 %v193, %v3162
    %3164 = vmatprep.subr.mxu0 %v3163
    %v3165 = vand.u32 %v192, 4294901760
    %v3166 = vsub.f32 %v192, %v3165
    %3167 = vmatpush1.msra.mxu0 %v3166
    %v3168 = vand.u32 %v191, 4294901760
    %v3169 = vsub.f32 %v191, %v3168
    %3170 = vmatprep.subr.mxu0 %v3169
    %v3171 = vand.u32 %v190, 4294901760
    %v3172 = vsub.f32 %v190, %v3171
    %3173 = vmatpush1.msra.mxu0 %v3172
    %v3174 = vand.u32 %v189, 4294901760
    %v3175 = vsub.f32 %v189, %v3174
    %3176 = vmatprep.subr.mxu0 %v3175
    %v3177 = vand.u32 %v188, 4294901760
    %v3178 = vsub.f32 %v188, %v3177
    %3179 = vmatpush1.msra.mxu0 %v3178
    %v3180 = vand.u32 %v187, 4294901760
    %v3181 = vsub.f32 %v187, %v3180
    %3182 = vmatprep.subr.mxu0 %v3181
    %v3183 = vand.u32 %v186, 4294901760
    %v3184 = vsub.f32 %v186, %v3183
    %3185 = vmatpush1.msra.mxu0 %v3184
    %v3186 = vand.u32 %v185, 4294901760
    %v3187 = vsub.f32 %v185, %v3186
    %3188 = vmatprep.subr.mxu0 %v3187
    %v3189 = vand.u32 %v184, 4294901760
    %v3190 = vsub.f32 %v184, %v3189
    %3191 = vmatpush1.msra.mxu0 %v3190
    %v3192 = vand.u32 %v183, 4294901760
    %v3193 = vsub.f32 %v183, %v3192
    %3194 = vmatprep.subr.mxu0 %v3193
    %v3195 = vand.u32 %v182, 4294901760
    %v3196 = vsub.f32 %v182, %v3195
    %3197 = vmatpush1.msra.mxu0 %v3196
    %v3198 = vand.u32 %v181, 4294901760
    %v3199 = vsub.f32 %v181, %v3198
    %3200 = vmatprep.subr.mxu0 %v3199
    %v3201 = vand.u32 %v180, 4294901760
    %v3202 = vsub.f32 %v180, %v3201
    %3203 = vmatpush1.msra.mxu0 %v3202
    %v3204 = vand.u32 %v179, 4294901760
    %v3205 = vsub.f32 %v179, %v3204
    %3206 = vmatprep.subr.mxu0 %v3205
    %v3207 = vand.u32 %v178, 4294901760
    %v3208 = vsub.f32 %v178, %v3207
    %3209 = vmatpush1.msra.mxu0 %v3208
    %v3210 = vand.u32 %v177, 4294901760
    %v3211 = vsub.f32 %v177, %v3210
    %3212 = vmatprep.subr.mxu0 %v3211
    %v3213 = vand.u32 %v176, 4294901760
    %v3214 = vsub.f32 %v176, %v3213
    %3215 = vmatpush1.msra.mxu0 %v3214
    %v3216 = vand.u32 %v175, 4294901760
    %v3217 = vsub.f32 %v175, %v3216
    %3218 = vmatprep.subr.mxu0 %v3217
    %v3219 = vand.u32 %v174, 4294901760
    %v3220 = vsub.f32 %v174, %v3219
    %3221 = vmatpush1.msra.mxu0 %v3220
    %3222 = vmatprep.subr.mxu0 0.0
    %3223 = vmatpush2.msra.mxu0 0.0
    %3224 = vmatprep.subr.mxu0 0.0
    %3225 = vmatpush2.msra.mxu0 0.0
    %3226 = vmatprep.subr.mxu0 0.0
    %3227 = vmatpush2.msra.mxu0 0.0
    %3228 = vmatprep.subr.mxu0 0.0
    %3229 = vmatpush2.msra.mxu0 0.0
    %3230 = vmatprep.subr.mxu0 0.0
    %3231 = vmatpush2.msra.mxu0 0.0
    %3232 = vmatprep.subr.mxu0 0.0
    %3233 = vmatpush2.msra.mxu0 0.0
    %3234 = vmatprep.subr.mxu0 0.0
    %3235 = vmatpush2.msra.mxu0 0.0
    %3236 = vmatprep.subr.mxu0 0.0
    %3237 = vmatpush2.msra.mxu0 0.0
    %3238 = vmatprep.subr.mxu0 0.0
    %3239 = vmatpush2.msra.mxu0 0.0
    %3240 = vmatprep.subr.mxu0 0.0
    %3241 = vmatpush2.msra.mxu0 0.0
    %3242 = vmatprep.subr.mxu0 0.0
    %3243 = vmatpush2.msra.mxu0 0.0
    %3244 = vmatprep.subr.mxu0 0.0
    %3245 = vmatpush2.msra.mxu0 0.0
    %3246 = vmatprep.subr.mxu0 0.0
    %3247 = vmatpush2.msra.mxu0 0.0
    %3248 = vmatprep.subr.mxu0 0.0
    %3249 = vmatpush2.msra.mxu0 0.0
    %3250 = vmatprep.subr.mxu0 0.0
    %3251 = vmatpush2.msra.mxu0 0.0
    %3252 = vmatprep.subr.mxu0 0.0
    %3253 = vmatpush2.msra.mxu0 0.0
    %3254 = vmatprep.mubr.f32.mxu0 0.0
    %v3255 = vand.u32 %v45, 4294901760
    %v3256 = vsub.f32 %v45, %v3255
    %3257 = vmatmul.mubr.f32.gmra.mxu0 %v3256
    %v3258 = vpop.f32.mrf.mxu0
    %v3259 = vadd.f32 %v3122, %v3258
    %v3260 = vpop.f32.mrf.mxu0
    %v3261 = vadd.f32 %v3124, %v3260
    %3262 = vdwg.mxu0
    %v3263 = vand.u32 %v205, 4294901760
    %3264 = vmatprep.subr.mxu0 %v3263
    %v3265 = vand.u32 %v204, 4294901760
    %3266 = vmatpush1.msra.mxu0 %v3265
    %v3267 = vand.u32 %v203, 4294901760
    %3268 = vmatprep.subr.mxu0 %v3267
    %v3269 = vand.u32 %v202, 4294901760
    %3270 = vmatpush1.msra.mxu0 %v3269
    %v3271 = vand.u32 %v201, 4294901760
    %3272 = vmatprep.subr.mxu0 %v3271
    %v3273 = vand.u32 %v200, 4294901760
    %3274 = vmatpush1.msra.mxu0 %v3273
    %v3275 = vand.u32 %v199, 4294901760
    %3276 = vmatprep.subr.mxu0 %v3275
    %v3277 = vand.u32 %v198, 4294901760
    %3278 = vmatpush1.msra.mxu0 %v3277
    %v3279 = vand.u32 %v197, 4294901760
    %3280 = vmatprep.subr.mxu0 %v3279
    %v3281 = vand.u32 %v196, 4294901760
    %3282 = vmatpush1.msra.mxu0 %v3281
    %v3283 = vand.u32 %v195, 4294901760
    %3284 = vmatprep.subr.mxu0 %v3283
    %v3285 = vand.u32 %v194, 4294901760
    %3286 = vmatpush1.msra.mxu0 %v3285
    %v3287 = vand.u32 %v193, 4294901760
    %3288 = vmatprep.subr.mxu0 %v3287
    %v3289 = vand.u32 %v192, 4294901760
    %3290 = vmatpush1.msra.mxu0 %v3289
    %v3291 = vand.u32 %v191, 4294901760
    %3292 = vmatprep.subr.mxu0 %v3291
    %v3293 = vand.u32 %v190, 4294901760
    %3294 = vmatpush1.msra.mxu0 %v3293
    %v3295 = vand.u32 %v189, 4294901760
    %3296 = vmatprep.subr.mxu0 %v3295
    %v3297 = vand.u32 %v188, 4294901760
    %3298 = vmatpush1.msra.mxu0 %v3297
    %v3299 = vand.u32 %v187, 4294901760
    %3300 = vmatprep.subr.mxu0 %v3299
    %v3301 = vand.u32 %v186, 4294901760
    %3302 = vmatpush1.msra.mxu0 %v3301
    %v3303 = vand.u32 %v185, 4294901760
    %3304 = vmatprep.subr.mxu0 %v3303
    %v3305 = vand.u32 %v184, 4294901760
    %3306 = vmatpush1.msra.mxu0 %v3305
    %v3307 = vand.u32 %v183, 4294901760
    %3308 = vmatprep.subr.mxu0 %v3307
    %v3309 = vand.u32 %v182, 4294901760
    %3310 = vmatpush1.msra.mxu0 %v3309
    %v3311 = vand.u32 %v181, 4294901760
    %3312 = vmatprep.subr.mxu0 %v3311
    %v3313 = vand.u32 %v180, 4294901760
    %3314 = vmatpush1.msra.mxu0 %v3313
    %v3315 = vand.u32 %v179, 4294901760
    %3316 = vmatprep.subr.mxu0 %v3315
    %v3317 = vand.u32 %v178, 4294901760
    %3318 = vmatpush1.msra.mxu0 %v3317
    %v3319 = vand.u32 %v177, 4294901760
    %3320 = vmatprep.subr.mxu0 %v3319
    %v3321 = vand.u32 %v176, 4294901760
    %3322 = vmatpush1.msra.mxu0 %v3321
    %v3323 = vand.u32 %v175, 4294901760
    %3324 = vmatprep.subr.mxu0 %v3323
    %v3325 = vand.u32 %v174, 4294901760
    %3326 = vmatpush1.msra.mxu0 %v3325
    %3327 = vmatprep.subr.mxu0 0.0
    %3328 = vmatpush2.msra.mxu0 0.0
    %3329 = vmatprep.subr.mxu0 0.0
    %3330 = vmatpush2.msra.mxu0 0.0
    %3331 = vmatprep.subr.mxu0 0.0
    %3332 = vmatpush2.msra.mxu0 0.0
    %3333 = vmatprep.subr.mxu0 0.0
    %3334 = vmatpush2.msra.mxu0 0.0
    %3335 = vmatprep.subr.mxu0 0.0
    %3336 = vmatpush2.msra.mxu0 0.0
    %3337 = vmatprep.subr.mxu0 0.0
    %3338 = vmatpush2.msra.mxu0 0.0
    %3339 = vmatprep.subr.mxu0 0.0
    %3340 = vmatpush2.msra.mxu0 0.0
    %3341 = vmatprep.subr.mxu0 0.0
    %3342 = vmatpush2.msra.mxu0 0.0
    %3343 = vmatprep.subr.mxu0 0.0
    %3344 = vmatpush2.msra.mxu0 0.0
    %3345 = vmatprep.subr.mxu0 0.0
    %3346 = vmatpush2.msra.mxu0 0.0
    %3347 = vmatprep.subr.mxu0 0.0
    %3348 = vmatpush2.msra.mxu0 0.0
    %3349 = vmatprep.subr.mxu0 0.0
    %3350 = vmatpush2.msra.mxu0 0.0
    %3351 = vmatprep.subr.mxu0 0.0
    %3352 = vmatpush2.msra.mxu0 0.0
    %3353 = vmatprep.subr.mxu0 0.0
    %3354 = vmatpush2.msra.mxu0 0.0
    %3355 = vmatprep.subr.mxu0 0.0
    %3356 = vmatpush2.msra.mxu0 0.0
    %3357 = vmatprep.subr.mxu0 0.0
    %3358 = vmatpush2.msra.mxu0 0.0
    %3359 = vmatprep.mubr.f32.mxu0 0.0
    %v3360 = vand.u32 %v45, 4294901760
    %v3361 = vsub.f32 %v45, %v3360
    %v3362 = vand.u32 %v3361, 4294901760
    %3363 = vmatmul.mubr.f32.gmra.mxu0 %v3362
    %v3364 = vpop.f32.mrf.mxu0
    %v3365 = vadd.f32 %v3259, %v3364
    %v3366 = vpop.f32.mrf.mxu0
    %v3367 = vadd.f32 %v3261, %v3366
    %3368 = vdwg.mxu0
    %v3369 = vand.u32 %v205, 4294901760
    %v3370 = vsub.f32 %v205, %v3369
    %v3371 = vand.u32 %v3370, 4294901760
    %3372 = vmatprep.subr.mxu0 %v3371
    %v3373 = vand.u32 %v204, 4294901760
    %v3374 = vsub.f32 %v204, %v3373
    %v3375 = vand.u32 %v3374, 4294901760
    %3376 = vmatpush1.msra.mxu0 %v3375
    %v3377 = vand.u32 %v203, 4294901760
    %v3378 = vsub.f32 %v203, %v3377
    %v3379 = vand.u32 %v3378, 4294901760
    %3380 = vmatprep.subr.mxu0 %v3379
    %v3381 = vand.u32 %v202, 4294901760
    %v3382 = vsub.f32 %v202, %v3381
    %v3383 = vand.u32 %v3382, 4294901760
    %3384 = vmatpush1.msra.mxu0 %v3383
    %v3385 = vand.u32 %v201, 4294901760
    %v3386 = vsub.f32 %v201, %v3385
    %v3387 = vand.u32 %v3386, 4294901760
    %3388 = vmatprep.subr.mxu0 %v3387
    %v3389 = vand.u32 %v200, 4294901760
    %v3390 = vsub.f32 %v200, %v3389
    %v3391 = vand.u32 %v3390, 4294901760
    %3392 = vmatpush1.msra.mxu0 %v3391
    %v3393 = vand.u32 %v199, 4294901760
    %v3394 = vsub.f32 %v199, %v3393
    %v3395 = vand.u32 %v3394, 4294901760
    %3396 = vmatprep.subr.mxu0 %v3395
    %v3397 = vand.u32 %v198, 4294901760
    %v3398 = vsub.f32 %v198, %v3397
    %v3399 = vand.u32 %v3398, 4294901760
    %3400 = vmatpush1.msra.mxu0 %v3399
    %v3401 = vand.u32 %v197, 4294901760
    %v3402 = vsub.f32 %v197, %v3401
    %v3403 = vand.u32 %v3402, 4294901760
    %3404 = vmatprep.subr.mxu0 %v3403
    %v3405 = vand.u32 %v196, 4294901760
    %v3406 = vsub.f32 %v196, %v3405
    %v3407 = vand.u32 %v3406, 4294901760
    %3408 = vmatpush1.msra.mxu0 %v3407
    %v3409 = vand.u32 %v195, 4294901760
    %v3410 = vsub.f32 %v195, %v3409
    %v3411 = vand.u32 %v3410, 4294901760
    %3412 = vmatprep.subr.mxu0 %v3411
    %v3413 = vand.u32 %v194, 4294901760
    %v3414 = vsub.f32 %v194, %v3413
    %v3415 = vand.u32 %v3414, 4294901760
    %3416 = vmatpush1.msra.mxu0 %v3415
    %v3417 = vand.u32 %v193, 4294901760
    %v3418 = vsub.f32 %v193, %v3417
    %v3419 = vand.u32 %v3418, 4294901760
    %3420 = vmatprep.subr.mxu0 %v3419
    %v3421 = vand.u32 %v192, 4294901760
    %v3422 = vsub.f32 %v192, %v3421
    %v3423 = vand.u32 %v3422, 4294901760
    %3424 = vmatpush1.msra.mxu0 %v3423
    %v3425 = vand.u32 %v191, 4294901760
    %v3426 = vsub.f32 %v191, %v3425
    %v3427 = vand.u32 %v3426, 4294901760
    %3428 = vmatprep.subr.mxu0 %v3427
    %v3429 = vand.u32 %v190, 4294901760
    %v3430 = vsub.f32 %v190, %v3429
    %v3431 = vand.u32 %v3430, 4294901760
    %3432 = vmatpush1.msra.mxu0 %v3431
    %v3433 = vand.u32 %v189, 4294901760
    %v3434 = vsub.f32 %v189, %v3433
    %v3435 = vand.u32 %v3434, 4294901760
    %3436 = vmatprep.subr.mxu0 %v3435
    %v3437 = vand.u32 %v188, 4294901760
    %v3438 = vsub.f32 %v188, %v3437
    %v3439 = vand.u32 %v3438, 4294901760
    %3440 = vmatpush1.msra.mxu0 %v3439
    %v3441 = vand.u32 %v187, 4294901760
    %v3442 = vsub.f32 %v187, %v3441
    %v3443 = vand.u32 %v3442, 4294901760
    %3444 = vmatprep.subr.mxu0 %v3443
    %v3445 = vand.u32 %v186, 4294901760
    %v3446 = vsub.f32 %v186, %v3445
    %v3447 = vand.u32 %v3446, 4294901760
    %3448 = vmatpush1.msra.mxu0 %v3447
    %v3449 = vand.u32 %v185, 4294901760
    %v3450 = vsub.f32 %v185, %v3449
    %v3451 = vand.u32 %v3450, 4294901760
    %3452 = vmatprep.subr.mxu0 %v3451
    %v3453 = vand.u32 %v184, 4294901760
    %v3454 = vsub.f32 %v184, %v3453
    %v3455 = vand.u32 %v3454, 4294901760
    %3456 = vmatpush1.msra.mxu0 %v3455
    %v3457 = vand.u32 %v183, 4294901760
    %v3458 = vsub.f32 %v183, %v3457
    %v3459 = vand.u32 %v3458, 4294901760
    %3460 = vmatprep.subr.mxu0 %v3459
    %v3461 = vand.u32 %v182, 4294901760
    %v3462 = vsub.f32 %v182, %v3461
    %v3463 = vand.u32 %v3462, 4294901760
    %3464 = vmatpush1.msra.mxu0 %v3463
    %v3465 = vand.u32 %v181, 4294901760
    %v3466 = vsub.f32 %v181, %v3465
    %v3467 = vand.u32 %v3466, 4294901760
    %3468 = vmatprep.subr.mxu0 %v3467
    %v3469 = vand.u32 %v180, 4294901760
    %v3470 = vsub.f32 %v180, %v3469
    %v3471 = vand.u32 %v3470, 4294901760
    %3472 = vmatpush1.msra.mxu0 %v3471
    %v3473 = vand.u32 %v179, 4294901760
    %v3474 = vsub.f32 %v179, %v3473
    %v3475 = vand.u32 %v3474, 4294901760
    %3476 = vmatprep.subr.mxu0 %v3475
    %v3477 = vand.u32 %v178, 4294901760
    %v3478 = vsub.f32 %v178, %v3477
    %v3479 = vand.u32 %v3478, 4294901760
    %3480 = vmatpush1.msra.mxu0 %v3479
    %v3481 = vand.u32 %v177, 4294901760
    %v3482 = vsub.f32 %v177, %v3481
    %v3483 = vand.u32 %v3482, 4294901760
    %3484 = vmatprep.subr.mxu0 %v3483
    %v3485 = vand.u32 %v176, 4294901760
    %v3486 = vsub.f32 %v176, %v3485
    %v3487 = vand.u32 %v3486, 4294901760
    %3488 = vmatpush1.msra.mxu0 %v3487
    %v3489 = vand.u32 %v175, 4294901760
    %v3490 = vsub.f32 %v175, %v3489
    %v3491 = vand.u32 %v3490, 4294901760
    %3492 = vmatprep.subr.mxu0 %v3491
    %v3493 = vand.u32 %v174, 4294901760
    %v3494 = vsub.f32 %v174, %v3493
    %v3495 = vand.u32 %v3494, 4294901760
    %3496 = vmatpush1.msra.mxu0 %v3495
    %3497 = vmatprep.subr.mxu0 0.0
    %3498 = vmatpush2.msra.mxu0 0.0
    %3499 = vmatprep.subr.mxu0 0.0
    %3500 = vmatpush2.msra.mxu0 0.0
    %3501 = vmatprep.subr.mxu0 0.0
    %3502 = vmatpush2.msra.mxu0 0.0
    %3503 = vmatprep.subr.mxu0 0.0
    %3504 = vmatpush2.msra.mxu0 0.0
    %3505 = vmatprep.subr.mxu0 0.0
    %3506 = vmatpush2.msra.mxu0 0.0
    %3507 = vmatprep.subr.mxu0 0.0
    %3508 = vmatpush2.msra.mxu0 0.0
    %3509 = vmatprep.subr.mxu0 0.0
    %3510 = vmatpush2.msra.mxu0 0.0
    %3511 = vmatprep.subr.mxu0 0.0
    %3512 = vmatpush2.msra.mxu0 0.0
    %3513 = vmatprep.subr.mxu0 0.0
    %3514 = vmatpush2.msra.mxu0 0.0
    %3515 = vmatprep.subr.mxu0 0.0
    %3516 = vmatpush2.msra.mxu0 0.0
    %3517 = vmatprep.subr.mxu0 0.0
    %3518 = vmatpush2.msra.mxu0 0.0
    %3519 = vmatprep.subr.mxu0 0.0
    %3520 = vmatpush2.msra.mxu0 0.0
    %3521 = vmatprep.subr.mxu0 0.0
    %3522 = vmatpush2.msra.mxu0 0.0
    %3523 = vmatprep.subr.mxu0 0.0
    %3524 = vmatpush2.msra.mxu0 0.0
    %3525 = vmatprep.subr.mxu0 0.0
    %3526 = vmatpush2.msra.mxu0 0.0
    %3527 = vmatprep.subr.mxu0 0.0
    %3528 = vmatpush2.msra.mxu0 0.0
    %3529 = vmatprep.mubr.f32.mxu0 0.0
    %v3530 = vand.u32 %v45, 4294901760
    %3531 = vmatmul.mubr.f32.gmra.mxu0 %v3530
    %v3532 = vpop.f32.mrf.mxu0
    %v3533 = vadd.f32 %v3365, %v3532
    %v3534 = vpop.f32.mrf.mxu0
    %v3535 = vadd.f32 %v3367, %v3534
    %3536 = vdwg.mxu0
    %v3537 = vand.u32 %v205, 4294901760
    %3538 = vmatprep.subr.mxu0 %v3537
    %v3539 = vand.u32 %v204, 4294901760
    %3540 = vmatpush1.msra.mxu0 %v3539
    %v3541 = vand.u32 %v203, 4294901760
    %3542 = vmatprep.subr.mxu0 %v3541
    %v3543 = vand.u32 %v202, 4294901760
    %3544 = vmatpush1.msra.mxu0 %v3543
    %v3545 = vand.u32 %v201, 4294901760
    %3546 = vmatprep.subr.mxu0 %v3545
    %v3547 = vand.u32 %v200, 4294901760
    %3548 = vmatpush1.msra.mxu0 %v3547
    %v3549 = vand.u32 %v199, 4294901760
    %3550 = vmatprep.subr.mxu0 %v3549
    %v3551 = vand.u32 %v198, 4294901760
    %3552 = vmatpush1.msra.mxu0 %v3551
    %v3553 = vand.u32 %v197, 4294901760
    %3554 = vmatprep.subr.mxu0 %v3553
    %v3555 = vand.u32 %v196, 4294901760
    %3556 = vmatpush1.msra.mxu0 %v3555
    %v3557 = vand.u32 %v195, 4294901760
    %3558 = vmatprep.subr.mxu0 %v3557
    %v3559 = vand.u32 %v194, 4294901760
    %3560 = vmatpush1.msra.mxu0 %v3559
    %v3561 = vand.u32 %v193, 4294901760
    %3562 = vmatprep.subr.mxu0 %v3561
    %v3563 = vand.u32 %v192, 4294901760
    %3564 = vmatpush1.msra.mxu0 %v3563
    %v3565 = vand.u32 %v191, 4294901760
    %3566 = vmatprep.subr.mxu0 %v3565
    %v3567 = vand.u32 %v190, 4294901760
    %3568 = vmatpush1.msra.mxu0 %v3567
    %v3569 = vand.u32 %v189, 4294901760
    %3570 = vmatprep.subr.mxu0 %v3569
    %v3571 = vand.u32 %v188, 4294901760
    %3572 = vmatpush1.msra.mxu0 %v3571
    %v3573 = vand.u32 %v187, 4294901760
    %3574 = vmatprep.subr.mxu0 %v3573
    %v3575 = vand.u32 %v186, 4294901760
    %3576 = vmatpush1.msra.mxu0 %v3575
    %v3577 = vand.u32 %v185, 4294901760
    %3578 = vmatprep.subr.mxu0 %v3577
    %v3579 = vand.u32 %v184, 4294901760
    %3580 = vmatpush1.msra.mxu0 %v3579
    %v3581 = vand.u32 %v183, 4294901760
    %3582 = vmatprep.subr.mxu0 %v3581
    %v3583 = vand.u32 %v182, 4294901760
    %3584 = vmatpush1.msra.mxu0 %v3583
    %v3585 = vand.u32 %v181, 4294901760
    %3586 = vmatprep.subr.mxu0 %v3585
    %v3587 = vand.u32 %v180, 4294901760
    %3588 = vmatpush1.msra.mxu0 %v3587
    %v3589 = vand.u32 %v179, 4294901760
    %3590 = vmatprep.subr.mxu0 %v3589
    %v3591 = vand.u32 %v178, 4294901760
    %3592 = vmatpush1.msra.mxu0 %v3591
    %v3593 = vand.u32 %v177, 4294901760
    %3594 = vmatprep.subr.mxu0 %v3593
    %v3595 = vand.u32 %v176, 4294901760
    %3596 = vmatpush1.msra.mxu0 %v3595
    %v3597 = vand.u32 %v175, 4294901760
    %3598 = vmatprep.subr.mxu0 %v3597
    %v3599 = vand.u32 %v174, 4294901760
    %3600 = vmatpush1.msra.mxu0 %v3599
    %3601 = vmatprep.subr.mxu0 0.0
    %3602 = vmatpush2.msra.mxu0 0.0
    %3603 = vmatprep.subr.mxu0 0.0
    %3604 = vmatpush2.msra.mxu0 0.0
    %3605 = vmatprep.subr.mxu0 0.0
    %3606 = vmatpush2.msra.mxu0 0.0
    %3607 = vmatprep.subr.mxu0 0.0
    %3608 = vmatpush2.msra.mxu0 0.0
    %3609 = vmatprep.subr.mxu0 0.0
    %3610 = vmatpush2.msra.mxu0 0.0
    %3611 = vmatprep.subr.mxu0 0.0
    %3612 = vmatpush2.msra.mxu0 0.0
    %3613 = vmatprep.subr.mxu0 0.0
    %3614 = vmatpush2.msra.mxu0 0.0
    %3615 = vmatprep.subr.mxu0 0.0
    %3616 = vmatpush2.msra.mxu0 0.0
    %3617 = vmatprep.subr.mxu0 0.0
    %3618 = vmatpush2.msra.mxu0 0.0
    %3619 = vmatprep.subr.mxu0 0.0
    %3620 = vmatpush2.msra.mxu0 0.0
    %3621 = vmatprep.subr.mxu0 0.0
    %3622 = vmatpush2.msra.mxu0 0.0
    %3623 = vmatprep.subr.mxu0 0.0
    %3624 = vmatpush2.msra.mxu0 0.0
    %3625 = vmatprep.subr.mxu0 0.0
    %3626 = vmatpush2.msra.mxu0 0.0
    %3627 = vmatprep.subr.mxu0 0.0
    %3628 = vmatpush2.msra.mxu0 0.0
    %3629 = vmatprep.subr.mxu0 0.0
    %3630 = vmatpush2.msra.mxu0 0.0
    %3631 = vmatprep.subr.mxu0 0.0
    %3632 = vmatpush2.msra.mxu0 0.0
    %3633 = vmatprep.mubr.f32.mxu0 0.0
    %v3634 = vand.u32 %v45, 4294901760
    %3635 = vmatmul.mubr.f32.gmra.mxu0 %v3634
    %v3636 = vpop.f32.mrf.mxu0
    %v3637 = vadd.f32 %v3533, %v3636
    %v3638 = vpop.f32.mrf.mxu0
    %v3639 = vadd.f32 %v3535, %v3638
    %3640 = vdwg.mxu0
    %v3641 = vtanh.pop %v3637
    %v3642 = vtanh.pop %v3639
    %3643 = vst [vmem:[#allocation7] sm:$0xff] %v3641
    %3644 = vst [vmem:[#allocation7 + $0x8] sm:$0xff] %v3642
    // Predicated region
    $region22: #{tpu_custom_call.1} parent=1 // pred_check
      _
    $region23: #{tpu_custom_call.1} parent=1 // pred_check_branch
      %3646 = sbr.rel (0) target = $region25
    $region24: #{tpu_custom_call.1} parent=1 // pred_region
      %s3648 = ssub.s32 256, 256
      %3649 = vsyncadd [#allocation4], %s3648
      %s3651 = sshll.u32 [#allocation7], 4
      %s3652 = int_to_ptr.vmem [resolvable:$true] %s3651
      %3654 = dma.vmem_to_hbm [thread:$0]  %s3652, 256, %s3, [#allocation4]
    $region25: #{tpu_custom_call.1} parent=1 // pred_fallthru
      _
    // Predicated region
    $region26: #{tpu_custom_call.1} parent=1 // pred_check
      _
    $region27: #{tpu_custom_call.1} parent=1 // pred_check_branch
      %3656 = sbr.rel (0) target = $region29
    $region28: #{tpu_custom_call.1} parent=1 // pred_region
      %3657 = dma.done [#allocation4], 256
    $region29: #{tpu_custom_call.1} parent=1 // pred_fallthru
      _
    %3658 = vsyncpa [#allocation3], 1
    %3659 = vsyncpa [#allocation6], 1
    %3660 = vsyncpa [#allocation4], 1

</llo_original>
